<compile_context>
chip_gen: v7x
topology: tpu7x:2x2x1
jax: 0.10.0
libtpu: 0.0.40
codegen_flags: <defaults>
</compile_context>

<pallas_src>
import math
from functools import partial

import jax
import jax.numpy as jnp
from jax.experimental import pallas as pl
from jax.experimental.pallas import tpu as pltpu

# bf16 MXU operands (f32 accumulation): native on v5e/v6e/v7x MXUs and halves
# weight/panel bytes.  Set to jnp.float32 for bit-exact f32 PyTorch parity.
MXU_DTYPE = jnp.bfloat16
BN_EPS = 1e-5


def _round_up(x, m):
    return ((x + m - 1) // m) * m


def _vmem_capacity_bytes():
    # Generation-aware budget: 64 MiB physical on v7x, 128 MiB on v5e/v6e.
    try:
        cap = getattr(pltpu.get_tpu_info(), "vmem_capacity_bytes", None)
        if cap:
            return int(cap)
    except Exception:
        pass
    return 128 * 1024 * 1024


_VMEM_LIMIT = min(_vmem_capacity_bytes() * 3 // 4, 100 * 1024 * 1024)


def _mosaic_params():
    return pltpu.CompilerParams(vmem_limit_bytes=_VMEM_LIMIT)


# ----------------------------------------------------------------------------
# In-kernel building blocks (operate on in-VMEM values, lane-dense (C, M))
# ----------------------------------------------------------------------------
def _col_coords(shape, H, W):
    """Per-column (h, w) spatial coordinates for a (C, M=N*H*W) tile."""
    cols = jax.lax.broadcasted_iota(jnp.int32, shape, 1)
    if W & (W - 1) == 0:
        w_idx = jnp.bitwise_and(cols, W - 1)
        hw = jnp.right_shift(cols, W.bit_length() - 1)
    else:
        w_idx = cols % W
        hw = cols // W
    h_idx = jnp.bitwise_and(hw, H - 1) if H & (H - 1) == 0 else hw % H
    return h_idx, w_idx


def _conv_bn_relu(x, wmat, bias, gamma, beta, *, taps, H, W):
    """One 'same' conv + training-mode BatchNorm + ReLU on an in-VMEM value.

    x:     (Cinp, M) f32, channel-padded, M = N*H*W lane-dense.
    wmat:  (Coutp, len(taps)*Cinp) MXU dtype, tap-major column order.
    bias/gamma/beta: (Coutp, 1) f32.
    Returns (Coutp, M) f32 post-ReLU activation (never leaves VMEM here).
    """
    C, M = x.shape
    h_idx, w_idx = _col_coords((C, M), H, W)
    pieces = []
    for oy, ox in taps:
        if oy == 0 and ox == 0:
            pieces.append(x)
            continue
        # piece[:, m] = x[:, m + oy*W + ox] when the tap stays inside the same
        # image and in bounds, else 0 (the 'same' zero padding).  Rotation
        # wrap-around only lands on positions the mask zeroes out.
        shifted = pltpu.roll(x, shift=(-(oy * W + ox)) % M, axis=1)
        conds = []
        if oy < 0:
            conds.append(h_idx >= -oy)
        elif oy > 0:
            conds.append(h_idx < H - oy)
        if ox < 0:
            conds.append(w_idx >= -ox)
        elif ox > 0:
            conds.append(w_idx < W - ox)
        cond = conds[0]
        for c in conds[1:]:
            cond = jnp.logical_and(cond, c)
        pieces.append(jnp.where(cond, shifted, 0.0))

    panel = jnp.concatenate(pieces, axis=0)              # (KK*Cinp, M), VMEM only
    y = jnp.dot(wmat, panel.astype(wmat.dtype),
                preferred_element_type=jnp.float32) + bias

    # BatchNorm (training mode): batch statistics over all M = N*H*W columns,
    # biased variance, centered formulation (avoids E[x^2]-E[x]^2 cancellation).
    inv_m = 1.0 / M
    mean = jnp.sum(y, axis=1, keepdims=True) * inv_m
    yc = y - mean
    var = jnp.sum(yc * yc, axis=1, keepdims=True) * inv_m
    scale = gamma * jax.lax.rsqrt(var + BN_EPS)
    return jnp.maximum(yc * scale + beta, 0.0)


def _make_block_kernel(n_in, prologue, taps, H, W):
    """Kernel for a whole UNetBlock (2x conv+BN+ReLU) with a fused prologue."""

    def kernel(*refs):
        x_refs = refs[:n_in]
        (w1_ref, b1_ref, g1_ref, be1_ref,
         w2_ref, b2_ref, g2_ref, be2_ref, o_ref) = refs[n_in:]
        if prologue == "max4":       # fused 2x2 max-pool combine (DownSampling)
            x = jnp.maximum(jnp.maximum(x_refs[0][...], x_refs[1][...]),
                            jnp.maximum(x_refs[2][...], x_refs[3][...]))
        elif prologue == "concat":   # fused torch.cat([skip, upsampled], dim=C)
            x = jnp.concatenate([r[...] for r in x_refs], axis=0)
        else:
            x = x_refs[0][...]
        h1 = _conv_bn_relu(x, w1_ref[...], b1_ref[...], g1_ref[...],
                           be1_ref[...], taps=taps, H=H, W=W)
        h2 = _conv_bn_relu(h1, w2_ref[...], b2_ref[...], g2_ref[...],
                           be2_ref[...], taps=taps, H=H, W=W)
        o_ref[...] = h2

    return kernel


def _final_conv_kernel(x_ref, w_ref, b_ref, o_ref):
    o_ref[...] = (jnp.dot(w_ref[...], x_ref[...].astype(w_ref.dtype),
                          preferred_element_type=jnp.float32) + b_ref[...])


# ----------------------------------------------------------------------------
# Host-side wrappers (weight packing, pallas_call construction)
# ----------------------------------------------------------------------------
def _pack_conv_params(w_hwio, b, gamma, beta, in_groups):
    """Pack one conv's params for the in-kernel tap-panel GEMM.

    w_hwio: (kh, kw, Cin, Cout).  in_groups: [(real_c, padded_c), ...] in the
    channel order the kernel will see (handles fused channel-concat inputs).
    Returns wmat (Coutp, kh*kw*sum(padded_c)) MXU dtype + f32 (Coutp,1) vectors.
    """
    kh, kw, cin, cout = w_hwio.shape
    assert sum(rc for rc, _ in in_groups) == cin
    coutp = _round_up(cout, 8)
    w = jnp.transpose(w_hwio, (3, 0, 1, 2))              # (Cout, kh, kw, Cin)
    pieces, off = [], 0
    for rc, pc in in_groups:
        piece = w[..., off:off + rc]
        if pc != rc:
            piece = jnp.pad(piece, ((0, 0), (0, 0), (0, 0), (0, pc - rc)))
        pieces.append(piece)
        off += rc
    w = jnp.concatenate(pieces, axis=-1) if len(pieces) > 1 else pieces[0]
    if coutp != cout:
        w = jnp.pad(w, ((0, coutp - cout), (0, 0), (0, 0), (0, 0)))
    cinp = sum(pc for _, pc in in_groups)
    wmat = w.reshape(coutp, kh * kw * cinp).astype(MXU_DTYPE)

    def col(v, pad_val):
        v = v.astype(jnp.float32)
        if coutp != cout:
            v = jnp.pad(v, (0, coutp - cout), constant_values=pad_val)
        return v.reshape(coutp, 1)

    return wmat, col(b, 0.0), col(gamma, 1.0), col(beta, 0.0), cout, coutp


def fused_unet_block(xs, in_groups, p, *, N, H, W, prologue="none", ks=3):
    """One pallas_call for a whole UNetBlock (+ optional fused prologue).

    xs:        list of (Cip, M) f32 arrays (channel counts padded to mult. of 8)
    in_groups: [(real_c, padded_c), ...] channel structure of the logical
               (post-prologue) input, in order.
    Returns (Cout, M) f32.
    """
    M = N * H * W
    ph = ks // 2
    taps = tuple((dy - ph, dx - ph) for dy in range(ks) for dx in range(ks))

    w1, b1, g1, be1, c1, c1p = _pack_conv_params(p["w1"], p["b1"], p["g1"],
                                                 p["be1"], in_groups)
    w2, b2, g2, be2, c2, c2p = _pack_conv_params(p["w2"], p["b2"], p["g2"],
                                                 p["be2"], [(c1, c1p)])

    cin_tot = sum(pc for _, pc in in_groups)
    kk = ks * ks
    est = 4 * M * ((kk + 2) * (cin_tot + c1p) + 2 * c2p)  # rough VMEM footprint
    if est > _VMEM_LIMIT:
        # TODO(synk): add an M/K-tiled two-pass-BN fallback for feature maps
        #             that do not fit VMEM (not needed at these sizes).
        raise NotImplementedError("feature map too large for the fused block")

    out = pl.pallas_call(
        _make_block_kernel(len(xs), prologue, taps, H, W),
        out_shape=jax.ShapeDtypeStruct((c2p, M), jnp.float32),
        compiler_params=_mosaic_params(),
    )(*xs, w1, b1, g1, be1, w2, b2, g2, be2)
    return out[:c2] if c2p != c2 else out


def final_conv(x, cin, w_hwio, b, *, M):
    """FinalConv: 1x1 conv as a single lane-dense MXU GEMM + bias."""
    cout = w_hwio.shape[3]
    cinp, coutp = x.shape[0], _round_up(cout, 8)
    wmat = jnp.transpose(w_hwio, (3, 0, 1, 2)).reshape(cout, cin)
    wmat = jnp.pad(wmat, ((0, coutp - cout), (0, cinp - cin)))
    bias = jnp.pad(b, (0, coutp - cout)).reshape(coutp, 1).astype(jnp.float32)
    out = pl.pallas_call(
        _final_conv_kernel,
        out_shape=jax.ShapeDtypeStruct((coutp, M), jnp.float32),
        compiler_params=_mosaic_params(),
    )(x, wmat.astype(MXU_DTYPE), bias)
    return out[:cout]


# ----------------------------------------------------------------------------
# XLA-side layout glue (tiny tensors); fused where practical, TODOs otherwise
# ----------------------------------------------------------------------------
def _pool_slices(x, N, H, W):
    """Four stride-2 views of a (Cp, N*H*W) map; their elementwise max (taken
    inside the next block's fused kernel) is the 2x2 max pool."""
    C = x.shape[0]
    H2, W2 = H // 2, W // 2
    x4 = x.reshape(C, N, H, W)[:, :, :2 * H2, :2 * W2]
    # TODO(synk): replace with a single-read strided gather inside the fused
    #             block kernel to avoid the four XLA strided-slice copies.
    return [x4[:, :, dy::2, dx::2].reshape(C, N * H2 * W2)
            for dy in (0, 1) for dx in (0, 1)], H2, W2


def _upsample_nearest2(x, N, H, W, out_h, out_w):
    """nn.Upsample(scale_factor=2, mode='nearest') + F.pad to (out_h, out_w)."""
    C = x.shape[0]
    up = jnp.repeat(jnp.repeat(x.reshape(C, N, H, W), 2, axis=2), 2, axis=3)
    pad_y, pad_x = out_h - up.shape[2], out_w - up.shape[3]
    if pad_y or pad_x:
        up = jnp.pad(up, ((0, 0), (0, 0),
                          (pad_y // 2, pad_y - pad_y // 2),
                          (pad_x // 2, pad_x - pad_x // 2)))
    # TODO(synk): fold the nearest-upsample (h//2, w//2 indexing) + pad into the
    #             decoder block's in-kernel tap gather to skip this HBM trip.
    return up.reshape(C, N * out_h * out_w)


# ----------------------------------------------------------------------------
# Deterministic parameter init (mirrors the PyTorch __init__ channel math)
# ----------------------------------------------------------------------------
def init_conv(key, kh, kw, cin, cout):
    k1, k2 = jax.random.split(key)
    bound = 1.0 / math.sqrt(kh * kw * cin)
    w = jax.random.uniform(k1, (kh, kw, cin, cout), jnp.float32, -bound, bound)
    b = jax.random.uniform(k2, (cout,), jnp.float32, -bound, bound)
    return w, b


def init_unet_block(key, cin, cout, ks=3):
    k1, k2 = jax.random.split(key)
    w1, b1 = init_conv(k1, ks, ks, cin, cout)
    w2, b2 = init_conv(k2, ks, ks, cout, cout)
    return {
        "w1": w1, "b1": b1, "g1": jnp.ones((cout,), jnp.float32),
        "be1": jnp.zeros((cout,), jnp.float32),
        "w2": w2, "b2": b2, "g2": jnp.ones((cout,), jnp.float32),
        "be2": jnp.zeros((cout,), jnp.float32),
    }


def init_unet(key, in_chs, n_cls, out_chs, depth, up_method):
    assert up_method in ("bilinear", "nearest", "tr_conv")
    factor = 2 if up_method in ("bilinear", "nearest") else 1
    keys = jax.random.split(key, 2 * depth + 2)
    params = {"init": init_unet_block(keys[0], in_chs, out_chs)}
    enc_params, dec_params = [], []
    dec_out_chs = None
    for idx, (enc, dec) in enumerate(zip(range(depth), reversed(range(depth)))):
        enc_in = out_chs * 2 ** enc
        if idx == depth - 1 and factor == 2:
            enc_out = 2 * out_chs * 2 ** (enc - 1)
        else:
            enc_out = 2 * out_chs * 2 ** enc
        enc_params.append(init_unet_block(keys[1 + idx], enc_in, int(enc_out)))
        dec_in = 2 * out_chs * 2 ** dec if idx == 0 else dec_out_chs
        dec_out_chs = (out_chs * 2 ** dec if idx != depth - 1
                       else factor * out_chs * 2 ** dec)
        dec_params.append(
            init_unet_block(keys[1 + depth + idx], dec_in, dec_out_chs // factor)
        )
    wf, bf = init_conv(keys[-1], 1, 1, out_chs, n_cls)
    params["enc"] = enc_params
    params["dec"] = dec_params
    params["final_w"] = wf
    params["final_b"] = bf
    return params


# ----------------------------------------------------------------------------
# Full UNet forward
# ----------------------------------------------------------------------------
def unet_apply(params, x_nchw, depth):
    N, cin, H, W = x_nchw.shape
    # NCHW -> channel-major lane-dense (C, N*H*W); pad channels to sublane mult.
    x = jnp.transpose(x_nchw, (1, 0, 2, 3)).reshape(cin, N * H * W)
    cinp = _round_up(cin, 8)
    if cinp != cin:
        x = jnp.pad(x, ((0, cinp - cin), (0, 0)))

    init_out = fused_unet_block([x], [(cin, cinp)], params["init"],
                                N=N, H=H, W=W)
    outputs = [(init_out, params["init"]["w2"].shape[3], H, W)]

    enc = outputs[0]
    for idx, bp in enumerate(params["enc"]):
        src, src_c, h, w = outputs[idx] if idx == 0 else enc
        slices, h2, w2 = _pool_slices(src, N, h, w)
        out = fused_unet_block(slices, [(src_c, src.shape[0])], bp,
                               N=N, H=h2, W=w2, prologue="max4")
        enc = (out, bp["w2"].shape[3], h2, w2)
        outputs.append(enc)

    dec = outputs[-1]
    for idx, bp in enumerate(params["dec"]):
        skip, skip_c, sh, sw = outputs[depth - idx - 1]
        d_arr, d_c, dh, dw = dec
        up = _upsample_nearest2(d_arr, N, dh, dw, sh, sw)
        out = fused_unet_block(
            [skip, up], [(skip_c, skip.shape[0]), (d_c, d_arr.shape[0])],
            bp, N=N, H=sh, W=sw, prologue="concat")
        dec = (out, bp["w2"].shape[3], sh, sw)

    d_arr, d_c, dh, dw = dec
    n_cls = params["final_w"].shape[3]
    y = final_conv(d_arr, d_c, params["final_w"], params["final_b"],
                   M=N * dh * dw)
    return jnp.transpose(y.reshape(n_cls, N, dh, dw), (1, 0, 2, 3))  # -> NCHW


if __name__ == "__main__":
    IN_CHS, N_CLS, OUT_CHS, DEPTH, UP = 4, 2, 8, 2, "nearest"
    key = jax.random.PRNGKey(0)
    kx, kp = jax.random.split(key)
    x = jax.random.normal(kx, (2, IN_CHS, 16, 16), jnp.float32)  # NCHW input
    params = init_unet(kp, IN_CHS, N_CLS, OUT_CHS, DEPTH, UP)

    fwd = jax.jit(partial(unet_apply, depth=DEPTH))
    out = jax.block_until_ready(fwd(params, x))
    assert out.shape == (2, N_CLS, 16, 16), out.shape
    assert jnp.isfinite(out).all()
    print("KERNEL_OK")
</pallas_src>

<mosaic_0001>
module attributes {stable_mosaic.version = 11 : i64} {
  func.func @kernel(%arg0: memref<8x512xf32, #tpu.memory_space<vmem>>, %arg1: memref<8x72xbf16, #tpu.memory_space<vmem>>, %arg2: memref<8x1xf32, #tpu.memory_space<vmem>>, %arg3: memref<8x1xf32, #tpu.memory_space<vmem>>, %arg4: memref<8x1xf32, #tpu.memory_space<vmem>>, %arg5: memref<8x72xbf16, #tpu.memory_space<vmem>>, %arg6: memref<8x1xf32, #tpu.memory_space<vmem>>, %arg7: memref<8x1xf32, #tpu.memory_space<vmem>>, %arg8: memref<8x1xf32, #tpu.memory_space<vmem>>, %arg9: memref<8x512xf32, #tpu.memory_space<vmem>>) attributes {dimension_semantics = [], scalar_prefetch = 0 : i64, scratch_operands = 0 : i64, tpu.core_type = #tpu.core_type<tc>} {
    %c0 = arith.constant 0 : index
    %c0_0 = arith.constant 0 : index
    %0 = vector.load %arg0[%c0, %c0_0] : memref<8x512xf32, #tpu.memory_space<vmem>>, vector<8x512xf32>
    %c0_1 = arith.constant 0 : index
    %c0_2 = arith.constant 0 : index
    %1 = vector.load %arg1[%c0_1, %c0_2] : memref<8x72xbf16, #tpu.memory_space<vmem>>, vector<8x72xbf16>
    %c0_3 = arith.constant 0 : index
    %c0_4 = arith.constant 0 : index
    %2 = vector.load %arg2[%c0_3, %c0_4] : memref<8x1xf32, #tpu.memory_space<vmem>>, vector<8x1xf32>
    %c0_5 = arith.constant 0 : index
    %c0_6 = arith.constant 0 : index
    %3 = vector.load %arg3[%c0_5, %c0_6] : memref<8x1xf32, #tpu.memory_space<vmem>>, vector<8x1xf32>
    %c0_7 = arith.constant 0 : index
    %c0_8 = arith.constant 0 : index
    %4 = vector.load %arg4[%c0_7, %c0_8] : memref<8x1xf32, #tpu.memory_space<vmem>>, vector<8x1xf32>
    %5 = tpu.iota {dimensions = array<i32: 1>} : vector<8x512xi32>
    %c15_i32 = arith.constant 15 : i32
    %6 = vector.broadcast %c15_i32 : i32 to vector<8x512xi32>
    %7 = arith.andi %5, %6 : vector<8x512xi32>
    %c4_i32 = arith.constant 4 : i32
    %8 = vector.broadcast %c4_i32 : i32 to vector<8x512xi32>
    %9 = arith.shrsi %5, %8 : vector<8x512xi32>
    %c15_i32_9 = arith.constant 15 : i32
    %10 = vector.broadcast %c15_i32_9 : i32 to vector<8x512xi32>
    %11 = arith.andi %9, %10 : vector<8x512xi32>
    %c17_i32 = arith.constant 17 : i32
    %12 = tpu.dynamic_rotate %0 by %c17_i32 dim 1 : vector<8x512xf32>, i32 -> vector<8x512xf32>
    %c1_i32 = arith.constant 1 : i32
    %13 = vector.broadcast %c1_i32 : i32 to vector<8x512xi32>
    %14 = arith.cmpi sge, %11, %13 : vector<8x512xi32>
    %c1_i32_10 = arith.constant 1 : i32
    %15 = vector.broadcast %c1_i32_10 : i32 to vector<8x512xi32>
    %16 = arith.cmpi sge, %7, %15 : vector<8x512xi32>
    %17 = arith.andi %14, %16 : vector<8x512xi1>
    %cst = arith.constant 0.000000e+00 : f32
    %18 = vector.broadcast %cst : f32 to vector<8x512xf32>
    %19 = arith.select %17, %12, %18 : vector<8x512xi1>, vector<8x512xf32>
    %c16_i32 = arith.constant 16 : i32
    %20 = tpu.dynamic_rotate %0 by %c16_i32 dim 1 : vector<8x512xf32>, i32 -> vector<8x512xf32>
    %c1_i32_11 = arith.constant 1 : i32
    %21 = vector.broadcast %c1_i32_11 : i32 to vector<8x512xi32>
    %22 = arith.cmpi sge, %11, %21 : vector<8x512xi32>
    %cst_12 = arith.constant 0.000000e+00 : f32
    %23 = vector.broadcast %cst_12 : f32 to vector<8x512xf32>
    %24 = arith.select %22, %20, %23 : vector<8x512xi1>, vector<8x512xf32>
    %c15_i32_13 = arith.constant 15 : i32
    %25 = tpu.dynamic_rotate %0 by %c15_i32_13 dim 1 : vector<8x512xf32>, i32 -> vector<8x512xf32>
    %c1_i32_14 = arith.constant 1 : i32
    %26 = vector.broadcast %c1_i32_14 : i32 to vector<8x512xi32>
    %27 = arith.cmpi sge, %11, %26 : vector<8x512xi32>
    %c15_i32_15 = arith.constant 15 : i32
    %28 = vector.broadcast %c15_i32_15 : i32 to vector<8x512xi32>
    %29 = arith.cmpi slt, %7, %28 : vector<8x512xi32>
    %30 = arith.andi %27, %29 : vector<8x512xi1>
    %cst_16 = arith.constant 0.000000e+00 : f32
    %31 = vector.broadcast %cst_16 : f32 to vector<8x512xf32>
    %32 = arith.select %30, %25, %31 : vector<8x512xi1>, vector<8x512xf32>
    %c1_i32_17 = arith.constant 1 : i32
    %33 = tpu.dynamic_rotate %0 by %c1_i32_17 dim 1 : vector<8x512xf32>, i32 -> vector<8x512xf32>
    %c1_i32_18 = arith.constant 1 : i32
    %34 = vector.broadcast %c1_i32_18 : i32 to vector<8x512xi32>
    %35 = arith.cmpi sge, %7, %34 : vector<8x512xi32>
    %cst_19 = arith.constant 0.000000e+00 : f32
    %36 = vector.broadcast %cst_19 : f32 to vector<8x512xf32>
    %37 = arith.select %35, %33, %36 : vector<8x512xi1>, vector<8x512xf32>
    %c511_i32 = arith.constant 511 : i32
    %38 = tpu.dynamic_rotate %0 by %c511_i32 dim 1 : vector<8x512xf32>, i32 -> vector<8x512xf32>
    %c15_i32_20 = arith.constant 15 : i32
    %39 = vector.broadcast %c15_i32_20 : i32 to vector<8x512xi32>
    %40 = arith.cmpi slt, %7, %39 : vector<8x512xi32>
    %cst_21 = arith.constant 0.000000e+00 : f32
    %41 = vector.broadcast %cst_21 : f32 to vector<8x512xf32>
    %42 = arith.select %40, %38, %41 : vector<8x512xi1>, vector<8x512xf32>
    %c497_i32 = arith.constant 497 : i32
    %43 = tpu.dynamic_rotate %0 by %c497_i32 dim 1 : vector<8x512xf32>, i32 -> vector<8x512xf32>
    %c15_i32_22 = arith.constant 15 : i32
    %44 = vector.broadcast %c15_i32_22 : i32 to vector<8x512xi32>
    %45 = arith.cmpi slt, %11, %44 : vector<8x512xi32>
    %c1_i32_23 = arith.constant 1 : i32
    %46 = vector.broadcast %c1_i32_23 : i32 to vector<8x512xi32>
    %47 = arith.cmpi sge, %7, %46 : vector<8x512xi32>
    %48 = arith.andi %45, %47 : vector<8x512xi1>
    %cst_24 = arith.constant 0.000000e+00 : f32
    %49 = vector.broadcast %cst_24 : f32 to vector<8x512xf32>
    %50 = arith.select %48, %43, %49 : vector<8x512xi1>, vector<8x512xf32>
    %c496_i32 = arith.constant 496 : i32
    %51 = tpu.dynamic_rotate %0 by %c496_i32 dim 1 : vector<8x512xf32>, i32 -> vector<8x512xf32>
    %c15_i32_25 = arith.constant 15 : i32
    %52 = vector.broadcast %c15_i32_25 : i32 to vector<8x512xi32>
    %53 = arith.cmpi slt, %11, %52 : vector<8x512xi32>
    %cst_26 = arith.constant 0.000000e+00 : f32
    %54 = vector.broadcast %cst_26 : f32 to vector<8x512xf32>
    %55 = arith.select %53, %51, %54 : vector<8x512xi1>, vector<8x512xf32>
    %c495_i32 = arith.constant 495 : i32
    %56 = tpu.dynamic_rotate %0 by %c495_i32 dim 1 : vector<8x512xf32>, i32 -> vector<8x512xf32>
    %c15_i32_27 = arith.constant 15 : i32
    %57 = vector.broadcast %c15_i32_27 : i32 to vector<8x512xi32>
    %58 = arith.cmpi slt, %11, %57 : vector<8x512xi32>
    %c15_i32_28 = arith.constant 15 : i32
    %59 = vector.broadcast %c15_i32_28 : i32 to vector<8x512xi32>
    %60 = arith.cmpi slt, %7, %59 : vector<8x512xi32>
    %61 = arith.andi %58, %60 : vector<8x512xi1>
    %cst_29 = arith.constant 0.000000e+00 : f32
    %62 = vector.broadcast %cst_29 : f32 to vector<8x512xf32>
    %63 = arith.select %61, %56, %62 : vector<8x512xi1>, vector<8x512xf32>
    %64 = tpu.concatenate %19, %24, %32, %37, %0, %42, %50, %55, %63 in 0 : vector<8x512xf32>, vector<8x512xf32>, vector<8x512xf32>, vector<8x512xf32>, vector<8x512xf32>, vector<8x512xf32>, vector<8x512xf32>, vector<8x512xf32>, vector<8x512xf32> -> vector<72x512xf32>
    %65 = arith.truncf %64 : vector<72x512xf32> to vector<72x512xbf16>
    %cst_30 = arith.constant dense<0.000000e+00> : vector<8x512xf32>
    %66 = tpu.matmul %1, %65, %cst_30 {dimension_numbers = #tpu.dot_dimension_numbers<[1], [0], [0], [1], [0, 0, 1, 1], [], []>} : vector<8x72xbf16>, vector<72x512xbf16>, vector<8x512xf32> -> vector<8x512xf32>
    %67 = vector.broadcast %2 : vector<8x1xf32> to vector<8x512xf32>
    %68 = arith.addf %66, %67 : vector<8x512xf32>
    %cst_31 = arith.constant dense<0.000000e+00> : vector<8xf32>
    %69 = vector.multi_reduction <add>, %68, %cst_31 [1] : vector<8x512xf32> to vector<8xf32>
    %70 = vector.shape_cast %69 : vector<8xf32> to vector<8x1xf32>
    %cst_32 = arith.constant 0.001953125 : f32
    %71 = vector.broadcast %cst_32 : f32 to vector<8x1xf32>
    %72 = arith.mulf %70, %71 : vector<8x1xf32>
    %73 = vector.broadcast %72 : vector<8x1xf32> to vector<8x512xf32>
    %74 = arith.subf %68, %73 : vector<8x512xf32>
    %75 = arith.mulf %74, %74 : vector<8x512xf32>
    %cst_33 = arith.constant dense<0.000000e+00> : vector<8xf32>
    %76 = vector.multi_reduction <add>, %75, %cst_33 [1] : vector<8x512xf32> to vector<8xf32>
    %77 = vector.shape_cast %76 : vector<8xf32> to vector<8x1xf32>
    %cst_34 = arith.constant 0.001953125 : f32
    %78 = vector.broadcast %cst_34 : f32 to vector<8x1xf32>
    %79 = arith.mulf %77, %78 : vector<8x1xf32>
    %cst_35 = arith.constant 9.99999974E-6 : f32
    %80 = vector.broadcast %cst_35 : f32 to vector<8x1xf32>
    %81 = arith.addf %79, %80 : vector<8x1xf32>
    %82 = math.rsqrt %81 : vector<8x1xf32>
    %83 = arith.mulf %3, %82 : vector<8x1xf32>
    %84 = vector.broadcast %83 : vector<8x1xf32> to vector<8x512xf32>
    %85 = arith.mulf %74, %84 : vector<8x512xf32>
    %86 = vector.broadcast %4 : vector<8x1xf32> to vector<8x512xf32>
    %87 = arith.addf %85, %86 : vector<8x512xf32>
    %cst_36 = arith.constant 0.000000e+00 : f32
    %88 = vector.broadcast %cst_36 : f32 to vector<8x512xf32>
    %89 = arith.maximumf %87, %88 : vector<8x512xf32>
    %c0_37 = arith.constant 0 : index
    %c0_38 = arith.constant 0 : index
    %90 = vector.load %arg5[%c0_37, %c0_38] : memref<8x72xbf16, #tpu.memory_space<vmem>>, vector<8x72xbf16>
    %c0_39 = arith.constant 0 : index
    %c0_40 = arith.constant 0 : index
    %91 = vector.load %arg6[%c0_39, %c0_40] : memref<8x1xf32, #tpu.memory_space<vmem>>, vector<8x1xf32>
    %c0_41 = arith.constant 0 : index
    %c0_42 = arith.constant 0 : index
    %92 = vector.load %arg7[%c0_41, %c0_42] : memref<8x1xf32, #tpu.memory_space<vmem>>, vector<8x1xf32>
    %c0_43 = arith.constant 0 : index
    %c0_44 = arith.constant 0 : index
    %93 = vector.load %arg8[%c0_43, %c0_44] : memref<8x1xf32, #tpu.memory_space<vmem>>, vector<8x1xf32>
    %94 = tpu.iota {dimensions = array<i32: 1>} : vector<8x512xi32>
    %c15_i32_45 = arith.constant 15 : i32
    %95 = vector.broadcast %c15_i32_45 : i32 to vector<8x512xi32>
    %96 = arith.andi %94, %95 : vector<8x512xi32>
    %c4_i32_46 = arith.constant 4 : i32
    %97 = vector.broadcast %c4_i32_46 : i32 to vector<8x512xi32>
    %98 = arith.shrsi %94, %97 : vector<8x512xi32>
    %c15_i32_47 = arith.constant 15 : i32
    %99 = vector.broadcast %c15_i32_47 : i32 to vector<8x512xi32>
    %100 = arith.andi %98, %99 : vector<8x512xi32>
    %c17_i32_48 = arith.constant 17 : i32
    %101 = tpu.dynamic_rotate %89 by %c17_i32_48 dim 1 : vector<8x512xf32>, i32 -> vector<8x512xf32>
    %c1_i32_49 = arith.constant 1 : i32
    %102 = vector.broadcast %c1_i32_49 : i32 to vector<8x512xi32>
    %103 = arith.cmpi sge, %100, %102 : vector<8x512xi32>
    %c1_i32_50 = arith.constant 1 : i32
    %104 = vector.broadcast %c1_i32_50 : i32 to vector<8x512xi32>
    %105 = arith.cmpi sge, %96, %104 : vector<8x512xi32>
    %106 = arith.andi %103, %105 : vector<8x512xi1>
    %cst_51 = arith.constant 0.000000e+00 : f32
    %107 = vector.broadcast %cst_51 : f32 to vector<8x512xf32>
    %108 = arith.select %106, %101, %107 : vector<8x512xi1>, vector<8x512xf32>
    %c16_i32_52 = arith.constant 16 : i32
    %109 = tpu.dynamic_rotate %89 by %c16_i32_52 dim 1 : vector<8x512xf32>, i32 -> vector<8x512xf32>
    %c1_i32_53 = arith.constant 1 : i32
    %110 = vector.broadcast %c1_i32_53 : i32 to vector<8x512xi32>
    %111 = arith.cmpi sge, %100, %110 : vector<8x512xi32>
    %cst_54 = arith.constant 0.000000e+00 : f32
    %112 = vector.broadcast %cst_54 : f32 to vector<8x512xf32>
    %113 = arith.select %111, %109, %112 : vector<8x512xi1>, vector<8x512xf32>
    %c15_i32_55 = arith.constant 15 : i32
    %114 = tpu.dynamic_rotate %89 by %c15_i32_55 dim 1 : vector<8x512xf32>, i32 -> vector<8x512xf32>
    %c1_i32_56 = arith.constant 1 : i32
    %115 = vector.broadcast %c1_i32_56 : i32 to vector<8x512xi32>
    %116 = arith.cmpi sge, %100, %115 : vector<8x512xi32>
    %c15_i32_57 = arith.constant 15 : i32
    %117 = vector.broadcast %c15_i32_57 : i32 to vector<8x512xi32>
    %118 = arith.cmpi slt, %96, %117 : vector<8x512xi32>
    %119 = arith.andi %116, %118 : vector<8x512xi1>
    %cst_58 = arith.constant 0.000000e+00 : f32
    %120 = vector.broadcast %cst_58 : f32 to vector<8x512xf32>
    %121 = arith.select %119, %114, %120 : vector<8x512xi1>, vector<8x512xf32>
    %c1_i32_59 = arith.constant 1 : i32
    %122 = tpu.dynamic_rotate %89 by %c1_i32_59 dim 1 : vector<8x512xf32>, i32 -> vector<8x512xf32>
    %c1_i32_60 = arith.constant 1 : i32
    %123 = vector.broadcast %c1_i32_60 : i32 to vector<8x512xi32>
    %124 = arith.cmpi sge, %96, %123 : vector<8x512xi32>
    %cst_61 = arith.constant 0.000000e+00 : f32
    %125 = vector.broadcast %cst_61 : f32 to vector<8x512xf32>
    %126 = arith.select %124, %122, %125 : vector<8x512xi1>, vector<8x512xf32>
    %c511_i32_62 = arith.constant 511 : i32
    %127 = tpu.dynamic_rotate %89 by %c511_i32_62 dim 1 : vector<8x512xf32>, i32 -> vector<8x512xf32>
    %c15_i32_63 = arith.constant 15 : i32
    %128 = vector.broadcast %c15_i32_63 : i32 to vector<8x512xi32>
    %129 = arith.cmpi slt, %96, %128 : vector<8x512xi32>
    %cst_64 = arith.constant 0.000000e+00 : f32
    %130 = vector.broadcast %cst_64 : f32 to vector<8x512xf32>
    %131 = arith.select %129, %127, %130 : vector<8x512xi1>, vector<8x512xf32>
    %c497_i32_65 = arith.constant 497 : i32
    %132 = tpu.dynamic_rotate %89 by %c497_i32_65 dim 1 : vector<8x512xf32>, i32 -> vector<8x512xf32>
    %c15_i32_66 = arith.constant 15 : i32
    %133 = vector.broadcast %c15_i32_66 : i32 to vector<8x512xi32>
    %134 = arith.cmpi slt, %100, %133 : vector<8x512xi32>
    %c1_i32_67 = arith.constant 1 : i32
    %135 = vector.broadcast %c1_i32_67 : i32 to vector<8x512xi32>
    %136 = arith.cmpi sge, %96, %135 : vector<8x512xi32>
    %137 = arith.andi %134, %136 : vector<8x512xi1>
    %cst_68 = arith.constant 0.000000e+00 : f32
    %138 = vector.broadcast %cst_68 : f32 to vector<8x512xf32>
    %139 = arith.select %137, %132, %138 : vector<8x512xi1>, vector<8x512xf32>
    %c496_i32_69 = arith.constant 496 : i32
    %140 = tpu.dynamic_rotate %89 by %c496_i32_69 dim 1 : vector<8x512xf32>, i32 -> vector<8x512xf32>
    %c15_i32_70 = arith.constant 15 : i32
    %141 = vector.broadcast %c15_i32_70 : i32 to vector<8x512xi32>
    %142 = arith.cmpi slt, %100, %141 : vector<8x512xi32>
    %cst_71 = arith.constant 0.000000e+00 : f32
    %143 = vector.broadcast %cst_71 : f32 to vector<8x512xf32>
    %144 = arith.select %142, %140, %143 : vector<8x512xi1>, vector<8x512xf32>
    %c495_i32_72 = arith.constant 495 : i32
    %145 = tpu.dynamic_rotate %89 by %c495_i32_72 dim 1 : vector<8x512xf32>, i32 -> vector<8x512xf32>
    %c15_i32_73 = arith.constant 15 : i32
    %146 = vector.broadcast %c15_i32_73 : i32 to vector<8x512xi32>
    %147 = arith.cmpi slt, %100, %146 : vector<8x512xi32>
    %c15_i32_74 = arith.constant 15 : i32
    %148 = vector.broadcast %c15_i32_74 : i32 to vector<8x512xi32>
    %149 = arith.cmpi slt, %96, %148 : vector<8x512xi32>
    %150 = arith.andi %147, %149 : vector<8x512xi1>
    %cst_75 = arith.constant 0.000000e+00 : f32
    %151 = vector.broadcast %cst_75 : f32 to vector<8x512xf32>
    %152 = arith.select %150, %145, %151 : vector<8x512xi1>, vector<8x512xf32>
    %153 = tpu.concatenate %108, %113, %121, %126, %89, %131, %139, %144, %152 in 0 : vector<8x512xf32>, vector<8x512xf32>, vector<8x512xf32>, vector<8x512xf32>, vector<8x512xf32>, vector<8x512xf32>, vector<8x512xf32>, vector<8x512xf32>, vector<8x512xf32> -> vector<72x512xf32>
    %154 = arith.truncf %153 : vector<72x512xf32> to vector<72x512xbf16>
    %cst_76 = arith.constant dense<0.000000e+00> : vector<8x512xf32>
    %155 = tpu.matmul %90, %154, %cst_76 {dimension_numbers = #tpu.dot_dimension_numbers<[1], [0], [0], [1], [0, 0, 1, 1], [], []>} : vector<8x72xbf16>, vector<72x512xbf16>, vector<8x512xf32> -> vector<8x512xf32>
    %156 = vector.broadcast %91 : vector<8x1xf32> to vector<8x512xf32>
    %157 = arith.addf %155, %156 : vector<8x512xf32>
    %cst_77 = arith.constant dense<0.000000e+00> : vector<8xf32>
    %158 = vector.multi_reduction <add>, %157, %cst_77 [1] : vector<8x512xf32> to vector<8xf32>
    %159 = vector.shape_cast %158 : vector<8xf32> to vector<8x1xf32>
    %cst_78 = arith.constant 0.001953125 : f32
    %160 = vector.broadcast %cst_78 : f32 to vector<8x1xf32>
    %161 = arith.mulf %159, %160 : vector<8x1xf32>
    %162 = vector.broadcast %161 : vector<8x1xf32> to vector<8x512xf32>
    %163 = arith.subf %157, %162 : vector<8x512xf32>
    %164 = arith.mulf %163, %163 : vector<8x512xf32>
    %cst_79 = arith.constant dense<0.000000e+00> : vector<8xf32>
    %165 = vector.multi_reduction <add>, %164, %cst_79 [1] : vector<8x512xf32> to vector<8xf32>
    %166 = vector.shape_cast %165 : vector<8xf32> to vector<8x1xf32>
    %cst_80 = arith.constant 0.001953125 : f32
    %167 = vector.broadcast %cst_80 : f32 to vector<8x1xf32>
    %168 = arith.mulf %166, %167 : vector<8x1xf32>
    %cst_81 = arith.constant 9.99999974E-6 : f32
    %169 = vector.broadcast %cst_81 : f32 to vector<8x1xf32>
    %170 = arith.addf %168, %169 : vector<8x1xf32>
    %171 = math.rsqrt %170 : vector<8x1xf32>
    %172 = arith.mulf %92, %171 : vector<8x1xf32>
    %173 = vector.broadcast %172 : vector<8x1xf32> to vector<8x512xf32>
    %174 = arith.mulf %163, %173 : vector<8x512xf32>
    %175 = vector.broadcast %93 : vector<8x1xf32> to vector<8x512xf32>
    %176 = arith.addf %174, %175 : vector<8x512xf32>
    %cst_82 = arith.constant 0.000000e+00 : f32
    %177 = vector.broadcast %cst_82 : f32 to vector<8x512xf32>
    %178 = arith.maximumf %176, %177 : vector<8x512xf32>
    %c0_83 = arith.constant 0 : index
    %c0_84 = arith.constant 0 : index
    %179 = vector.load %arg9[%c0_83, %c0_84] : memref<8x512xf32, #tpu.memory_space<vmem>>, vector<8x512xf32>
    tpu.vector_store %arg9[%c0_83, %c0_84], %178 {strides = array<i32>} : memref<8x512xf32, #tpu.memory_space<vmem>>, vector<8x512xf32>,
    return
  }
}

module attributes {stable_mosaic.version = 11 : i64} {
  func.func @kernel(%arg0: memref<8x128xf32, #tpu.memory_space<vmem>>, %arg1: memref<8x128xf32, #tpu.memory_space<vmem>>, %arg2: memref<8x128xf32, #tpu.memory_space<vmem>>, %arg3: memref<8x128xf32, #tpu.memory_space<vmem>>, %arg4: memref<16x72xbf16, #tpu.memory_space<vmem>>, %arg5: memref<16x1xf32, #tpu.memory_space<vmem>>, %arg6: memref<16x1xf32, #tpu.memory_space<vmem>>, %arg7: memref<16x1xf32, #tpu.memory_space<vmem>>, %arg8: memref<16x144xbf16, #tpu.memory_space<vmem>>, %arg9: memref<16x1xf32, #tpu.memory_space<vmem>>, %arg10: memref<16x1xf32, #tpu.memory_space<vmem>>, %arg11: memref<16x1xf32, #tpu.memory_space<vmem>>, %arg12: memref<16x128xf32, #tpu.memory_space<vmem>>) attributes {dimension_semantics = [], scalar_prefetch = 0 : i64, scratch_operands = 0 : i64, tpu.core_type = #tpu.core_type<tc>} {
    %c0 = arith.constant 0 : index
    %c0_0 = arith.constant 0 : index
    %0 = vector.load %arg0[%c0, %c0_0] : memref<8x128xf32, #tpu.memory_space<vmem>>, vector<8x128xf32>
    %c0_1 = arith.constant 0 : index
    %c0_2 = arith.constant 0 : index
    %1 = vector.load %arg1[%c0_1, %c0_2] : memref<8x128xf32, #tpu.memory_space<vmem>>, vector<8x128xf32>
    %2 = arith.maximumf %0, %1 : vector<8x128xf32>
    %c0_3 = arith.constant 0 : index
    %c0_4 = arith.constant 0 : index
    %3 = vector.load %arg2[%c0_3, %c0_4] : memref<8x128xf32, #tpu.memory_space<vmem>>, vector<8x128xf32>
    %c0_5 = arith.constant 0 : index
    %c0_6 = arith.constant 0 : index
    %4 = vector.load %arg3[%c0_5, %c0_6] : memref<8x128xf32, #tpu.memory_space<vmem>>, vector<8x128xf32>
    %5 = arith.maximumf %3, %4 : vector<8x128xf32>
    %6 = arith.maximumf %2, %5 : vector<8x128xf32>
    %c0_7 = arith.constant 0 : index
    %c0_8 = arith.constant 0 : index
    %7 = vector.load %arg4[%c0_7, %c0_8] : memref<16x72xbf16, #tpu.memory_space<vmem>>, vector<16x72xbf16>
    %c0_9 = arith.constant 0 : index
    %c0_10 = arith.constant 0 : index
    %8 = vector.load %arg5[%c0_9, %c0_10] : memref<16x1xf32, #tpu.memory_space<vmem>>, vector<16x1xf32>
    %c0_11 = arith.constant 0 : index
    %c0_12 = arith.constant 0 : index
    %9 = vector.load %arg6[%c0_11, %c0_12] : memref<16x1xf32, #tpu.memory_space<vmem>>, vector<16x1xf32>
    %c0_13 = arith.constant 0 : index
    %c0_14 = arith.constant 0 : index
    %10 = vector.load %arg7[%c0_13, %c0_14] : memref<16x1xf32, #tpu.memory_space<vmem>>, vector<16x1xf32>
    %11 = tpu.iota {dimensions = array<i32: 1>} : vector<8x128xi32>
    %c7_i32 = arith.constant 7 : i32
    %12 = vector.broadcast %c7_i32 : i32 to vector<8x128xi32>
    %13 = arith.andi %11, %12 : vector<8x128xi32>
    %c3_i32 = arith.constant 3 : i32
    %14 = vector.broadcast %c3_i32 : i32 to vector<8x128xi32>
    %15 = arith.shrsi %11, %14 : vector<8x128xi32>
    %c7_i32_15 = arith.constant 7 : i32
    %16 = vector.broadcast %c7_i32_15 : i32 to vector<8x128xi32>
    %17 = arith.andi %15, %16 : vector<8x128xi32>
    %c9_i32 = arith.constant 9 : i32
    %18 = tpu.dynamic_rotate %6 by %c9_i32 dim 1 : vector<8x128xf32>, i32 -> vector<8x128xf32>
    %c1_i32 = arith.constant 1 : i32
    %19 = vector.broadcast %c1_i32 : i32 to vector<8x128xi32>
    %20 = arith.cmpi sge, %17, %19 : vector<8x128xi32>
    %c1_i32_16 = arith.constant 1 : i32
    %21 = vector.broadcast %c1_i32_16 : i32 to vector<8x128xi32>
    %22 = arith.cmpi sge, %13, %21 : vector<8x128xi32>
    %23 = arith.andi %20, %22 : vector<8x128xi1>
    %cst = arith.constant 0.000000e+00 : f32
    %24 = vector.broadcast %cst : f32 to vector<8x128xf32>
    %25 = arith.select %23, %18, %24 : vector<8x128xi1>, vector<8x128xf32>
    %c8_i32 = arith.constant 8 : i32
    %26 = tpu.dynamic_rotate %6 by %c8_i32 dim 1 : vector<8x128xf32>, i32 -> vector<8x128xf32>
    %c1_i32_17 = arith.constant 1 : i32
    %27 = vector.broadcast %c1_i32_17 : i32 to vector<8x128xi32>
    %28 = arith.cmpi sge, %17, %27 : vector<8x128xi32>
    %cst_18 = arith.constant 0.000000e+00 : f32
    %29 = vector.broadcast %cst_18 : f32 to vector<8x128xf32>
    %30 = arith.select %28, %26, %29 : vector<8x128xi1>, vector<8x128xf32>
    %c7_i32_19 = arith.constant 7 : i32
    %31 = tpu.dynamic_rotate %6 by %c7_i32_19 dim 1 : vector<8x128xf32>, i32 -> vector<8x128xf32>
    %c1_i32_20 = arith.constant 1 : i32
    %32 = vector.broadcast %c1_i32_20 : i32 to vector<8x128xi32>
    %33 = arith.cmpi sge, %17, %32 : vector<8x128xi32>
    %c7_i32_21 = arith.constant 7 : i32
    %34 = vector.broadcast %c7_i32_21 : i32 to vector<8x128xi32>
    %35 = arith.cmpi slt, %13, %34 : vector<8x128xi32>
    %36 = arith.andi %33, %35 : vector<8x128xi1>
    %cst_22 = arith.constant 0.000000e+00 : f32
    %37 = vector.broadcast %cst_22 : f32 to vector<8x128xf32>
    %38 = arith.select %36, %31, %37 : vector<8x128xi1>, vector<8x128xf32>
    %c1_i32_23 = arith.constant 1 : i32
    %39 = tpu.dynamic_rotate %6 by %c1_i32_23 dim 1 : vector<8x128xf32>, i32 -> vector<8x128xf32>
    %c1_i32_24 = arith.constant 1 : i32
    %40 = vector.broadcast %c1_i32_24 : i32 to vector<8x128xi32>
    %41 = arith.cmpi sge, %13, %40 : vector<8x128xi32>
    %cst_25 = arith.constant 0.000000e+00 : f32
    %42 = vector.broadcast %cst_25 : f32 to vector<8x128xf32>
    %43 = arith.select %41, %39, %42 : vector<8x128xi1>, vector<8x128xf32>
    %c127_i32 = arith.constant 127 : i32
    %44 = tpu.dynamic_rotate %6 by %c127_i32 dim 1 : vector<8x128xf32>, i32 -> vector<8x128xf32>
    %c7_i32_26 = arith.constant 7 : i32
    %45 = vector.broadcast %c7_i32_26 : i32 to vector<8x128xi32>
    %46 = arith.cmpi slt, %13, %45 : vector<8x128xi32>
    %cst_27 = arith.constant 0.000000e+00 : f32
    %47 = vector.broadcast %cst_27 : f32 to vector<8x128xf32>
    %48 = arith.select %46, %44, %47 : vector<8x128xi1>, vector<8x128xf32>
    %c121_i32 = arith.constant 121 : i32
    %49 = tpu.dynamic_rotate %6 by %c121_i32 dim 1 : vector<8x128xf32>, i32 -> vector<8x128xf32>
    %c7_i32_28 = arith.constant 7 : i32
    %50 = vector.broadcast %c7_i32_28 : i32 to vector<8x128xi32>
    %51 = arith.cmpi slt, %17, %50 : vector<8x128xi32>
    %c1_i32_29 = arith.constant 1 : i32
    %52 = vector.broadcast %c1_i32_29 : i32 to vector<8x128xi32>
    %53 = arith.cmpi sge, %13, %52 : vector<8x128xi32>
    %54 = arith.andi %51, %53 : vector<8x128xi1>
    %cst_30 = arith.constant 0.000000e+00 : f32
    %55 = vector.broadcast %cst_30 : f32 to vector<8x128xf32>
    %56 = arith.select %54, %49, %55 : vector<8x128xi1>, vector<8x128xf32>
    %c120_i32 = arith.constant 120 : i32
    %57 = tpu.dynamic_rotate %6 by %c120_i32 dim 1 : vector<8x128xf32>, i32 -> vector<8x128xf32>
    %c7_i32_31 = arith.constant 7 : i32
    %58 = vector.broadcast %c7_i32_31 : i32 to vector<8x128xi32>
    %59 = arith.cmpi slt, %17, %58 : vector<8x128xi32>
    %cst_32 = arith.constant 0.000000e+00 : f32
    %60 = vector.broadcast %cst_32 : f32 to vector<8x128xf32>
    %61 = arith.select %59, %57, %60 : vector<8x128xi1>, vector<8x128xf32>
    %c119_i32 = arith.constant 119 : i32
    %62 = tpu.dynamic_rotate %6 by %c119_i32 dim 1 : vector<8x128xf32>, i32 -> vector<8x128xf32>
    %c7_i32_33 = arith.constant 7 : i32
    %63 = vector.broadcast %c7_i32_33 : i32 to vector<8x128xi32>
    %64 = arith.cmpi slt, %17, %63 : vector<8x128xi32>
    %c7_i32_34 = arith.constant 7 : i32
    %65 = vector.broadcast %c7_i32_34 : i32 to vector<8x128xi32>
    %66 = arith.cmpi slt, %13, %65 : vector<8x128xi32>
    %67 = arith.andi %64, %66 : vector<8x128xi1>
    %cst_35 = arith.constant 0.000000e+00 : f32
    %68 = vector.broadcast %cst_35 : f32 to vector<8x128xf32>
    %69 = arith.select %67, %62, %68 : vector<8x128xi1>, vector<8x128xf32>
    %70 = tpu.concatenate %25, %30, %38, %43, %6, %48, %56, %61, %69 in 0 : vector<8x128xf32>, vector<8x128xf32>, vector<8x128xf32>, vector<8x128xf32>, vector<8x128xf32>, vector<8x128xf32>, vector<8x128xf32>, vector<8x128xf32>, vector<8x128xf32> -> vector<72x128xf32>
    %71 = arith.truncf %70 : vector<72x128xf32> to vector<72x128xbf16>
    %cst_36 = arith.constant dense<0.000000e+00> : vector<16x128xf32>
    %72 = tpu.matmul %7, %71, %cst_36 {dimension_numbers = #tpu.dot_dimension_numbers<[1], [0], [0], [1], [0, 0, 1, 1], [], []>} : vector<16x72xbf16>, vector<72x128xbf16>, vector<16x128xf32> -> vector<16x128xf32>
    %73 = vector.broadcast %8 : vector<16x1xf32> to vector<16x128xf32>
    %74 = arith.addf %72, %73 : vector<16x128xf32>
    %cst_37 = arith.constant dense<0.000000e+00> : vector<16xf32>
    %75 = vector.multi_reduction <add>, %74, %cst_37 [1] : vector<16x128xf32> to vector<16xf32>
    %76 = vector.shape_cast %75 : vector<16xf32> to vector<16x1xf32>
    %cst_38 = arith.constant 7.812500e-03 : f32
    %77 = vector.broadcast %cst_38 : f32 to vector<16x1xf32>
    %78 = arith.mulf %76, %77 : vector<16x1xf32>
    %79 = vector.broadcast %78 : vector<16x1xf32> to vector<16x128xf32>
    %80 = arith.subf %74, %79 : vector<16x128xf32>
    %81 = arith.mulf %80, %80 : vector<16x128xf32>
    %cst_39 = arith.constant dense<0.000000e+00> : vector<16xf32>
    %82 = vector.multi_reduction <add>, %81, %cst_39 [1] : vector<16x128xf32> to vector<16xf32>
    %83 = vector.shape_cast %82 : vector<16xf32> to vector<16x1xf32>
    %cst_40 = arith.constant 7.812500e-03 : f32
    %84 = vector.broadcast %cst_40 : f32 to vector<16x1xf32>
    %85 = arith.mulf %83, %84 : vector<16x1xf32>
    %cst_41 = arith.constant 9.99999974E-6 : f32
    %86 = vector.broadcast %cst_41 : f32 to vector<16x1xf32>
    %87 = arith.addf %85, %86 : vector<16x1xf32>
    %88 = math.rsqrt %87 : vector<16x1xf32>
    %89 = arith.mulf %9, %88 : vector<16x1xf32>
    %90 = vector.broadcast %89 : vector<16x1xf32> to vector<16x128xf32>
    %91 = arith.mulf %80, %90 : vector<16x128xf32>
    %92 = vector.broadcast %10 : vector<16x1xf32> to vector<16x128xf32>
    %93 = arith.addf %91, %92 : vector<16x128xf32>
    %cst_42 = arith.constant 0.000000e+00 : f32
    %94 = vector.broadcast %cst_42 : f32 to vector<16x128xf32>
    %95 = arith.maximumf %93, %94 : vector<16x128xf32>
    %c0_43 = arith.constant 0 : index
    %c0_44 = arith.constant 0 : index
    %96 = vector.load %arg8[%c0_43, %c0_44] : memref<16x144xbf16, #tpu.memory_space<vmem>>, vector<16x144xbf16>
    %c0_45 = arith.constant 0 : index
    %c0_46 = arith.constant 0 : index
    %97 = vector.load %arg9[%c0_45, %c0_46] : memref<16x1xf32, #tpu.memory_space<vmem>>, vector<16x1xf32>
    %c0_47 = arith.constant 0 : index
    %c0_48 = arith.constant 0 : index
    %98 = vector.load %arg10[%c0_47, %c0_48] : memref<16x1xf32, #tpu.memory_space<vmem>>, vector<16x1xf32>
    %c0_49 = arith.constant 0 : index
    %c0_50 = arith.constant 0 : index
    %99 = vector.load %arg11[%c0_49, %c0_50] : memref<16x1xf32, #tpu.memory_space<vmem>>, vector<16x1xf32>
    %100 = tpu.iota {dimensions = array<i32: 1>} : vector<16x128xi32>
    %c7_i32_51 = arith.constant 7 : i32
    %101 = vector.broadcast %c7_i32_51 : i32 to vector<16x128xi32>
    %102 = arith.andi %100, %101 : vector<16x128xi32>
    %c3_i32_52 = arith.constant 3 : i32
    %103 = vector.broadcast %c3_i32_52 : i32 to vector<16x128xi32>
    %104 = arith.shrsi %100, %103 : vector<16x128xi32>
    %c7_i32_53 = arith.constant 7 : i32
    %105 = vector.broadcast %c7_i32_53 : i32 to vector<16x128xi32>
    %106 = arith.andi %104, %105 : vector<16x128xi32>
    %c9_i32_54 = arith.constant 9 : i32
    %107 = tpu.dynamic_rotate %95 by %c9_i32_54 dim 1 : vector<16x128xf32>, i32 -> vector<16x128xf32>
    %c1_i32_55 = arith.constant 1 : i32
    %108 = vector.broadcast %c1_i32_55 : i32 to vector<16x128xi32>
    %109 = arith.cmpi sge, %106, %108 : vector<16x128xi32>
    %c1_i32_56 = arith.constant 1 : i32
    %110 = vector.broadcast %c1_i32_56 : i32 to vector<16x128xi32>
    %111 = arith.cmpi sge, %102, %110 : vector<16x128xi32>
    %112 = arith.andi %109, %111 : vector<16x128xi1>
    %cst_57 = arith.constant 0.000000e+00 : f32
    %113 = vector.broadcast %cst_57 : f32 to vector<16x128xf32>
    %114 = arith.select %112, %107, %113 : vector<16x128xi1>, vector<16x128xf32>
    %c8_i32_58 = arith.constant 8 : i32
    %115 = tpu.dynamic_rotate %95 by %c8_i32_58 dim 1 : vector<16x128xf32>, i32 -> vector<16x128xf32>
    %c1_i32_59 = arith.constant 1 : i32
    %116 = vector.broadcast %c1_i32_59 : i32 to vector<16x128xi32>
    %117 = arith.cmpi sge, %106, %116 : vector<16x128xi32>
    %cst_60 = arith.constant 0.000000e+00 : f32
    %118 = vector.broadcast %cst_60 : f32 to vector<16x128xf32>
    %119 = arith.select %117, %115, %118 : vector<16x128xi1>, vector<16x128xf32>
    %c7_i32_61 = arith.constant 7 : i32
    %120 = tpu.dynamic_rotate %95 by %c7_i32_61 dim 1 : vector<16x128xf32>, i32 -> vector<16x128xf32>
    %c1_i32_62 = arith.constant 1 : i32
    %121 = vector.broadcast %c1_i32_62 : i32 to vector<16x128xi32>
    %122 = arith.cmpi sge, %106, %121 : vector<16x128xi32>
    %c7_i32_63 = arith.constant 7 : i32
    %123 = vector.broadcast %c7_i32_63 : i32 to vector<16x128xi32>
    %124 = arith.cmpi slt, %102, %123 : vector<16x128xi32>
    %125 = arith.andi %122, %124 : vector<16x128xi1>
    %cst_64 = arith.constant 0.000000e+00 : f32
    %126 = vector.broadcast %cst_64 : f32 to vector<16x128xf32>
    %127 = arith.select %125, %120, %126 : vector<16x128xi1>, vector<16x128xf32>
    %c1_i32_65 = arith.constant 1 : i32
    %128 = tpu.dynamic_rotate %95 by %c1_i32_65 dim 1 : vector<16x128xf32>, i32 -> vector<16x128xf32>
    %c1_i32_66 = arith.constant 1 : i32
    %129 = vector.broadcast %c1_i32_66 : i32 to vector<16x128xi32>
    %130 = arith.cmpi sge, %102, %129 : vector<16x128xi32>
    %cst_67 = arith.constant 0.000000e+00 : f32
    %131 = vector.broadcast %cst_67 : f32 to vector<16x128xf32>
    %132 = arith.select %130, %128, %131 : vector<16x128xi1>, vector<16x128xf32>
    %c127_i32_68 = arith.constant 127 : i32
    %133 = tpu.dynamic_rotate %95 by %c127_i32_68 dim 1 : vector<16x128xf32>, i32 -> vector<16x128xf32>
    %c7_i32_69 = arith.constant 7 : i32
    %134 = vector.broadcast %c7_i32_69 : i32 to vector<16x128xi32>
    %135 = arith.cmpi slt, %102, %134 : vector<16x128xi32>
    %cst_70 = arith.constant 0.000000e+00 : f32
    %136 = vector.broadcast %cst_70 : f32 to vector<16x128xf32>
    %137 = arith.select %135, %133, %136 : vector<16x128xi1>, vector<16x128xf32>
    %c121_i32_71 = arith.constant 121 : i32
    %138 = tpu.dynamic_rotate %95 by %c121_i32_71 dim 1 : vector<16x128xf32>, i32 -> vector<16x128xf32>
    %c7_i32_72 = arith.constant 7 : i32
    %139 = vector.broadcast %c7_i32_72 : i32 to vector<16x128xi32>
    %140 = arith.cmpi slt, %106, %139 : vector<16x128xi32>
    %c1_i32_73 = arith.constant 1 : i32
    %141 = vector.broadcast %c1_i32_73 : i32 to vector<16x128xi32>
    %142 = arith.cmpi sge, %102, %141 : vector<16x128xi32>
    %143 = arith.andi %140, %142 : vector<16x128xi1>
    %cst_74 = arith.constant 0.000000e+00 : f32
    %144 = vector.broadcast %cst_74 : f32 to vector<16x128xf32>
    %145 = arith.select %143, %138, %144 : vector<16x128xi1>, vector<16x128xf32>
    %c120_i32_75 = arith.constant 120 : i32
    %146 = tpu.dynamic_rotate %95 by %c120_i32_75 dim 1 : vector<16x128xf32>, i32 -> vector<16x128xf32>
    %c7_i32_76 = arith.constant 7 : i32
    %147 = vector.broadcast %c7_i32_76 : i32 to vector<16x128xi32>
    %148 = arith.cmpi slt, %106, %147 : vector<16x128xi32>
    %cst_77 = arith.constant 0.000000e+00 : f32
    %149 = vector.broadcast %cst_77 : f32 to vector<16x128xf32>
    %150 = arith.select %148, %146, %149 : vector<16x128xi1>, vector<16x128xf32>
    %c119_i32_78 = arith.constant 119 : i32
    %151 = tpu.dynamic_rotate %95 by %c119_i32_78 dim 1 : vector<16x128xf32>, i32 -> vector<16x128xf32>
    %c7_i32_79 = arith.constant 7 : i32
    %152 = vector.broadcast %c7_i32_79 : i32 to vector<16x128xi32>
    %153 = arith.cmpi slt, %106, %152 : vector<16x128xi32>
    %c7_i32_80 = arith.constant 7 : i32
    %154 = vector.broadcast %c7_i32_80 : i32 to vector<16x128xi32>
    %155 = arith.cmpi slt, %102, %154 : vector<16x128xi32>
    %156 = arith.andi %153, %155 : vector<16x128xi1>
    %cst_81 = arith.constant 0.000000e+00 : f32
    %157 = vector.broadcast %cst_81 : f32 to vector<16x128xf32>
    %158 = arith.select %156, %151, %157 : vector<16x128xi1>, vector<16x128xf32>
    %159 = tpu.concatenate %114, %119, %127, %132, %95, %137, %145, %150, %158 in 0 : vector<16x128xf32>, vector<16x128xf32>, vector<16x128xf32>, vector<16x128xf32>, vector<16x128xf32>, vector<16x128xf32>, vector<16x128xf32>, vector<16x128xf32>, vector<16x128xf32> -> vector<144x128xf32>
    %160 = arith.truncf %159 : vector<144x128xf32> to vector<144x128xbf16>
    %cst_82 = arith.constant dense<0.000000e+00> : vector<16x128xf32>
    %161 = tpu.matmul %96, %160, %cst_82 {dimension_numbers = #tpu.dot_dimension_numbers<[1], [0], [0], [1], [0, 0, 1, 1], [], []>} : vector<16x144xbf16>, vector<144x128xbf16>, vector<16x128xf32> -> vector<16x128xf32>
    %162 = vector.broadcast %97 : vector<16x1xf32> to vector<16x128xf32>
    %163 = arith.addf %161, %162 : vector<16x128xf32>
    %cst_83 = arith.constant dense<0.000000e+00> : vector<16xf32>
    %164 = vector.multi_reduction <add>, %163, %cst_83 [1] : vector<16x128xf32> to vector<16xf32>
    %165 = vector.shape_cast %164 : vector<16xf32> to vector<16x1xf32>
    %cst_84 = arith.constant 7.812500e-03 : f32
    %166 = vector.broadcast %cst_84 : f32 to vector<16x1xf32>
    %167 = arith.mulf %165, %166 : vector<16x1xf32>
    %168 = vector.broadcast %167 : vector<16x1xf32> to vector<16x128xf32>
    %169 = arith.subf %163, %168 : vector<16x128xf32>
    %170 = arith.mulf %169, %169 : vector<16x128xf32>
    %cst_85 = arith.constant dense<0.000000e+00> : vector<16xf32>
    %171 = vector.multi_reduction <add>, %170, %cst_85 [1] : vector<16x128xf32> to vector<16xf32>
    %172 = vector.shape_cast %171 : vector<16xf32> to vector<16x1xf32>
    %cst_86 = arith.constant 7.812500e-03 : f32
    %173 = vector.broadcast %cst_86 : f32 to vector<16x1xf32>
    %174 = arith.mulf %172, %173 : vector<16x1xf32>
    %cst_87 = arith.constant 9.99999974E-6 : f32
    %175 = vector.broadcast %cst_87 : f32 to vector<16x1xf32>
    %176 = arith.addf %174, %175 : vector<16x1xf32>
    %177 = math.rsqrt %176 : vector<16x1xf32>
    %178 = arith.mulf %98, %177 : vector<16x1xf32>
    %179 = vector.broadcast %178 : vector<16x1xf32> to vector<16x128xf32>
    %180 = arith.mulf %169, %179 : vector<16x128xf32>
    %181 = vector.broadcast %99 : vector<16x1xf32> to vector<16x128xf32>
    %182 = arith.addf %180, %181 : vector<16x128xf32>
    %cst_88 = arith.constant 0.000000e+00 : f32
    %183 = vector.broadcast %cst_88 : f32 to vector<16x128xf32>
    %184 = arith.maximumf %182, %183 : vector<16x128xf32>
    %c0_89 = arith.constant 0 : index
    %c0_90 = arith.constant 0 : index
    %185 = vector.load %arg12[%c0_89, %c0_90] : memref<16x128xf32, #tpu.memory_space<vmem>>, vector<16x128xf32>
    tpu.vector_store %arg12[%c0_89, %c0_90], %184 {strides = array<i32>} : memref<16x128xf32, #tpu.memory_space<vmem>>, vector<16x128xf32>,
    return
  }
}

module attributes {stable_mosaic.version = 11 : i64} {
  func.func @kernel(%arg0: memref<16x32xf32, #tpu.memory_space<vmem>>, %arg1: memref<16x32xf32, #tpu.memory_space<vmem>>, %arg2: memref<16x32xf32, #tpu.memory_space<vmem>>, %arg3: memref<16x32xf32, #tpu.memory_space<vmem>>, %arg4: memref<16x144xbf16, #tpu.memory_space<vmem>>, %arg5: memref<16x1xf32, #tpu.memory_space<vmem>>, %arg6: memref<16x1xf32, #tpu.memory_space<vmem>>, %arg7: memref<16x1xf32, #tpu.memory_space<vmem>>, %arg8: memref<16x144xbf16, #tpu.memory_space<vmem>>, %arg9: memref<16x1xf32, #tpu.memory_space<vmem>>, %arg10: memref<16x1xf32, #tpu.memory_space<vmem>>, %arg11: memref<16x1xf32, #tpu.memory_space<vmem>>, %arg12: memref<16x32xf32, #tpu.memory_space<vmem>>) attributes {dimension_semantics = [], scalar_prefetch = 0 : i64, scratch_operands = 0 : i64, tpu.core_type = #tpu.core_type<tc>} {
    %c0 = arith.constant 0 : index
    %c0_0 = arith.constant 0 : index
    %0 = vector.load %arg0[%c0, %c0_0] : memref<16x32xf32, #tpu.memory_space<vmem>>, vector<16x32xf32>
    %c0_1 = arith.constant 0 : index
    %c0_2 = arith.constant 0 : index
    %1 = vector.load %arg1[%c0_1, %c0_2] : memref<16x32xf32, #tpu.memory_space<vmem>>, vector<16x32xf32>
    %2 = arith.maximumf %0, %1 : vector<16x32xf32>
    %c0_3 = arith.constant 0 : index
    %c0_4 = arith.constant 0 : index
    %3 = vector.load %arg2[%c0_3, %c0_4] : memref<16x32xf32, #tpu.memory_space<vmem>>, vector<16x32xf32>
    %c0_5 = arith.constant 0 : index
    %c0_6 = arith.constant 0 : index
    %4 = vector.load %arg3[%c0_5, %c0_6] : memref<16x32xf32, #tpu.memory_space<vmem>>, vector<16x32xf32>
    %5 = arith.maximumf %3, %4 : vector<16x32xf32>
    %6 = arith.maximumf %2, %5 : vector<16x32xf32>
    %c0_7 = arith.constant 0 : index
    %c0_8 = arith.constant 0 : index
    %7 = vector.load %arg4[%c0_7, %c0_8] : memref<16x144xbf16, #tpu.memory_space<vmem>>, vector<16x144xbf16>
    %c0_9 = arith.constant 0 : index
    %c0_10 = arith.constant 0 : index
    %8 = vector.load %arg5[%c0_9, %c0_10] : memref<16x1xf32, #tpu.memory_space<vmem>>, vector<16x1xf32>
    %c0_11 = arith.constant 0 : index
    %c0_12 = arith.constant 0 : index
    %9 = vector.load %arg6[%c0_11, %c0_12] : memref<16x1xf32, #tpu.memory_space<vmem>>, vector<16x1xf32>
    %c0_13 = arith.constant 0 : index
    %c0_14 = arith.constant 0 : index
    %10 = vector.load %arg7[%c0_13, %c0_14] : memref<16x1xf32, #tpu.memory_space<vmem>>, vector<16x1xf32>
    %11 = tpu.iota {dimensions = array<i32: 1>} : vector<16x32xi32>
    %c3_i32 = arith.constant 3 : i32
    %12 = vector.broadcast %c3_i32 : i32 to vector<16x32xi32>
    %13 = arith.andi %11, %12 : vector<16x32xi32>
    %c2_i32 = arith.constant 2 : i32
    %14 = vector.broadcast %c2_i32 : i32 to vector<16x32xi32>
    %15 = arith.shrsi %11, %14 : vector<16x32xi32>
    %c3_i32_15 = arith.constant 3 : i32
    %16 = vector.broadcast %c3_i32_15 : i32 to vector<16x32xi32>
    %17 = arith.andi %15, %16 : vector<16x32xi32>
    %c5_i32 = arith.constant 5 : i32
    %18 = tpu.dynamic_rotate %6 by %c5_i32 dim 1 : vector<16x32xf32>, i32 -> vector<16x32xf32>
    %c1_i32 = arith.constant 1 : i32
    %19 = vector.broadcast %c1_i32 : i32 to vector<16x32xi32>
    %20 = arith.cmpi sge, %17, %19 : vector<16x32xi32>
    %c1_i32_16 = arith.constant 1 : i32
    %21 = vector.broadcast %c1_i32_16 : i32 to vector<16x32xi32>
    %22 = arith.cmpi sge, %13, %21 : vector<16x32xi32>
    %23 = arith.andi %20, %22 : vector<16x32xi1>
    %cst = arith.constant 0.000000e+00 : f32
    %24 = vector.broadcast %cst : f32 to vector<16x32xf32>
    %25 = arith.select %23, %18, %24 : vector<16x32xi1>, vector<16x32xf32>
    %c4_i32 = arith.constant 4 : i32
    %26 = tpu.dynamic_rotate %6 by %c4_i32 dim 1 : vector<16x32xf32>, i32 -> vector<16x32xf32>
    %c1_i32_17 = arith.constant 1 : i32
    %27 = vector.broadcast %c1_i32_17 : i32 to vector<16x32xi32>
    %28 = arith.cmpi sge, %17, %27 : vector<16x32xi32>
    %cst_18 = arith.constant 0.000000e+00 : f32
    %29 = vector.broadcast %cst_18 : f32 to vector<16x32xf32>
    %30 = arith.select %28, %26, %29 : vector<16x32xi1>, vector<16x32xf32>
    %c3_i32_19 = arith.constant 3 : i32
    %31 = tpu.dynamic_rotate %6 by %c3_i32_19 dim 1 : vector<16x32xf32>, i32 -> vector<16x32xf32>
    %c1_i32_20 = arith.constant 1 : i32
    %32 = vector.broadcast %c1_i32_20 : i32 to vector<16x32xi32>
    %33 = arith.cmpi sge, %17, %32 : vector<16x32xi32>
    %c3_i32_21 = arith.constant 3 : i32
    %34 = vector.broadcast %c3_i32_21 : i32 to vector<16x32xi32>
    %35 = arith.cmpi slt, %13, %34 : vector<16x32xi32>
    %36 = arith.andi %33, %35 : vector<16x32xi1>
    %cst_22 = arith.constant 0.000000e+00 : f32
    %37 = vector.broadcast %cst_22 : f32 to vector<16x32xf32>
    %38 = arith.select %36, %31, %37 : vector<16x32xi1>, vector<16x32xf32>
    %c1_i32_23 = arith.constant 1 : i32
    %39 = tpu.dynamic_rotate %6 by %c1_i32_23 dim 1 : vector<16x32xf32>, i32 -> vector<16x32xf32>
    %c1_i32_24 = arith.constant 1 : i32
    %40 = vector.broadcast %c1_i32_24 : i32 to vector<16x32xi32>
    %41 = arith.cmpi sge, %13, %40 : vector<16x32xi32>
    %cst_25 = arith.constant 0.000000e+00 : f32
    %42 = vector.broadcast %cst_25 : f32 to vector<16x32xf32>
    %43 = arith.select %41, %39, %42 : vector<16x32xi1>, vector<16x32xf32>
    %c31_i32 = arith.constant 31 : i32
    %44 = tpu.dynamic_rotate %6 by %c31_i32 dim 1 : vector<16x32xf32>, i32 -> vector<16x32xf32>
    %c3_i32_26 = arith.constant 3 : i32
    %45 = vector.broadcast %c3_i32_26 : i32 to vector<16x32xi32>
    %46 = arith.cmpi slt, %13, %45 : vector<16x32xi32>
    %cst_27 = arith.constant 0.000000e+00 : f32
    %47 = vector.broadcast %cst_27 : f32 to vector<16x32xf32>
    %48 = arith.select %46, %44, %47 : vector<16x32xi1>, vector<16x32xf32>
    %c29_i32 = arith.constant 29 : i32
    %49 = tpu.dynamic_rotate %6 by %c29_i32 dim 1 : vector<16x32xf32>, i32 -> vector<16x32xf32>
    %c3_i32_28 = arith.constant 3 : i32
    %50 = vector.broadcast %c3_i32_28 : i32 to vector<16x32xi32>
    %51 = arith.cmpi slt, %17, %50 : vector<16x32xi32>
    %c1_i32_29 = arith.constant 1 : i32
    %52 = vector.broadcast %c1_i32_29 : i32 to vector<16x32xi32>
    %53 = arith.cmpi sge, %13, %52 : vector<16x32xi32>
    %54 = arith.andi %51, %53 : vector<16x32xi1>
    %cst_30 = arith.constant 0.000000e+00 : f32
    %55 = vector.broadcast %cst_30 : f32 to vector<16x32xf32>
    %56 = arith.select %54, %49, %55 : vector<16x32xi1>, vector<16x32xf32>
    %c28_i32 = arith.constant 28 : i32
    %57 = tpu.dynamic_rotate %6 by %c28_i32 dim 1 : vector<16x32xf32>, i32 -> vector<16x32xf32>
    %c3_i32_31 = arith.constant 3 : i32
    %58 = vector.broadcast %c3_i32_31 : i32 to vector<16x32xi32>
    %59 = arith.cmpi slt, %17, %58 : vector<16x32xi32>
    %cst_32 = arith.constant 0.000000e+00 : f32
    %60 = vector.broadcast %cst_32 : f32 to vector<16x32xf32>
    %61 = arith.select %59, %57, %60 : vector<16x32xi1>, vector<16x32xf32>
    %c27_i32 = arith.constant 27 : i32
    %62 = tpu.dynamic_rotate %6 by %c27_i32 dim 1 : vector<16x32xf32>, i32 -> vector<16x32xf32>
    %c3_i32_33 = arith.constant 3 : i32
    %63 = vector.broadcast %c3_i32_33 : i32 to vector<16x32xi32>
    %64 = arith.cmpi slt, %17, %63 : vector<16x32xi32>
    %c3_i32_34 = arith.constant 3 : i32
    %65 = vector.broadcast %c3_i32_34 : i32 to vector<16x32xi32>
    %66 = arith.cmpi slt, %13, %65 : vector<16x32xi32>
    %67 = arith.andi %64, %66 : vector<16x32xi1>
    %cst_35 = arith.constant 0.000000e+00 : f32
    %68 = vector.broadcast %cst_35 : f32 to vector<16x32xf32>
    %69 = arith.select %67, %62, %68 : vector<16x32xi1>, vector<16x32xf32>
    %70 = tpu.concatenate %25, %30, %38, %43, %6, %48, %56, %61, %69 in 0 : vector<16x32xf32>, vector<16x32xf32>, vector<16x32xf32>, vector<16x32xf32>, vector<16x32xf32>, vector<16x32xf32>, vector<16x32xf32>, vector<16x32xf32>, vector<16x32xf32> -> vector<144x32xf32>
    %71 = arith.truncf %70 : vector<144x32xf32> to vector<144x32xbf16>
    %cst_36 = arith.constant dense<0.000000e+00> : vector<16x32xf32>
    %72 = tpu.matmul %7, %71, %cst_36 {dimension_numbers = #tpu.dot_dimension_numbers<[1], [0], [0], [1], [0, 0, 1, 1], [], []>} : vector<16x144xbf16>, vector<144x32xbf16>, vector<16x32xf32> -> vector<16x32xf32>
    %73 = vector.broadcast %8 : vector<16x1xf32> to vector<16x32xf32>
    %74 = arith.addf %72, %73 : vector<16x32xf32>
    %cst_37 = arith.constant dense<0.000000e+00> : vector<16xf32>
    %75 = vector.multi_reduction <add>, %74, %cst_37 [1] : vector<16x32xf32> to vector<16xf32>
    %76 = vector.shape_cast %75 : vector<16xf32> to vector<16x1xf32>
    %cst_38 = arith.constant 3.125000e-02 : f32
    %77 = vector.broadcast %cst_38 : f32 to vector<16x1xf32>
    %78 = arith.mulf %76, %77 : vector<16x1xf32>
    %79 = vector.broadcast %78 : vector<16x1xf32> to vector<16x32xf32>
    %80 = arith.subf %74, %79 : vector<16x32xf32>
    %81 = arith.mulf %80, %80 : vector<16x32xf32>
    %cst_39 = arith.constant dense<0.000000e+00> : vector<16xf32>
    %82 = vector.multi_reduction <add>, %81, %cst_39 [1] : vector<16x32xf32> to vector<16xf32>
    %83 = vector.shape_cast %82 : vector<16xf32> to vector<16x1xf32>
    %cst_40 = arith.constant 3.125000e-02 : f32
    %84 = vector.broadcast %cst_40 : f32 to vector<16x1xf32>
    %85 = arith.mulf %83, %84 : vector<16x1xf32>
    %cst_41 = arith.constant 9.99999974E-6 : f32
    %86 = vector.broadcast %cst_41 : f32 to vector<16x1xf32>
    %87 = arith.addf %85, %86 : vector<16x1xf32>
    %88 = math.rsqrt %87 : vector<16x1xf32>
    %89 = arith.mulf %9, %88 : vector<16x1xf32>
    %90 = vector.broadcast %89 : vector<16x1xf32> to vector<16x32xf32>
    %91 = arith.mulf %80, %90 : vector<16x32xf32>
    %92 = vector.broadcast %10 : vector<16x1xf32> to vector<16x32xf32>
    %93 = arith.addf %91, %92 : vector<16x32xf32>
    %cst_42 = arith.constant 0.000000e+00 : f32
    %94 = vector.broadcast %cst_42 : f32 to vector<16x32xf32>
    %95 = arith.maximumf %93, %94 : vector<16x32xf32>
    %c0_43 = arith.constant 0 : index
    %c0_44 = arith.constant 0 : index
    %96 = vector.load %arg8[%c0_43, %c0_44] : memref<16x144xbf16, #tpu.memory_space<vmem>>, vector<16x144xbf16>
    %c0_45 = arith.constant 0 : index
    %c0_46 = arith.constant 0 : index
    %97 = vector.load %arg9[%c0_45, %c0_46] : memref<16x1xf32, #tpu.memory_space<vmem>>, vector<16x1xf32>
    %c0_47 = arith.constant 0 : index
    %c0_48 = arith.constant 0 : index
    %98 = vector.load %arg10[%c0_47, %c0_48] : memref<16x1xf32, #tpu.memory_space<vmem>>, vector<16x1xf32>
    %c0_49 = arith.constant 0 : index
    %c0_50 = arith.constant 0 : index
    %99 = vector.load %arg11[%c0_49, %c0_50] : memref<16x1xf32, #tpu.memory_space<vmem>>, vector<16x1xf32>
    %100 = tpu.iota {dimensions = array<i32: 1>} : vector<16x32xi32>
    %c3_i32_51 = arith.constant 3 : i32
    %101 = vector.broadcast %c3_i32_51 : i32 to vector<16x32xi32>
    %102 = arith.andi %100, %101 : vector<16x32xi32>
    %c2_i32_52 = arith.constant 2 : i32
    %103 = vector.broadcast %c2_i32_52 : i32 to vector<16x32xi32>
    %104 = arith.shrsi %100, %103 : vector<16x32xi32>
    %c3_i32_53 = arith.constant 3 : i32
    %105 = vector.broadcast %c3_i32_53 : i32 to vector<16x32xi32>
    %106 = arith.andi %104, %105 : vector<16x32xi32>
    %c5_i32_54 = arith.constant 5 : i32
    %107 = tpu.dynamic_rotate %95 by %c5_i32_54 dim 1 : vector<16x32xf32>, i32 -> vector<16x32xf32>
    %c1_i32_55 = arith.constant 1 : i32
    %108 = vector.broadcast %c1_i32_55 : i32 to vector<16x32xi32>
    %109 = arith.cmpi sge, %106, %108 : vector<16x32xi32>
    %c1_i32_56 = arith.constant 1 : i32
    %110 = vector.broadcast %c1_i32_56 : i32 to vector<16x32xi32>
    %111 = arith.cmpi sge, %102, %110 : vector<16x32xi32>
    %112 = arith.andi %109, %111 : vector<16x32xi1>
    %cst_57 = arith.constant 0.000000e+00 : f32
    %113 = vector.broadcast %cst_57 : f32 to vector<16x32xf32>
    %114 = arith.select %112, %107, %113 : vector<16x32xi1>, vector<16x32xf32>
    %c4_i32_58 = arith.constant 4 : i32
    %115 = tpu.dynamic_rotate %95 by %c4_i32_58 dim 1 : vector<16x32xf32>, i32 -> vector<16x32xf32>
    %c1_i32_59 = arith.constant 1 : i32
    %116 = vector.broadcast %c1_i32_59 : i32 to vector<16x32xi32>
    %117 = arith.cmpi sge, %106, %116 : vector<16x32xi32>
    %cst_60 = arith.constant 0.000000e+00 : f32
    %118 = vector.broadcast %cst_60 : f32 to vector<16x32xf32>
    %119 = arith.select %117, %115, %118 : vector<16x32xi1>, vector<16x32xf32>
    %c3_i32_61 = arith.constant 3 : i32
    %120 = tpu.dynamic_rotate %95 by %c3_i32_61 dim 1 : vector<16x32xf32>, i32 -> vector<16x32xf32>
    %c1_i32_62 = arith.constant 1 : i32
    %121 = vector.broadcast %c1_i32_62 : i32 to vector<16x32xi32>
    %122 = arith.cmpi sge, %106, %121 : vector<16x32xi32>
    %c3_i32_63 = arith.constant 3 : i32
    %123 = vector.broadcast %c3_i32_63 : i32 to vector<16x32xi32>
    %124 = arith.cmpi slt, %102, %123 : vector<16x32xi32>
    %125 = arith.andi %122, %124 : vector<16x32xi1>
    %cst_64 = arith.constant 0.000000e+00 : f32
    %126 = vector.broadcast %cst_64 : f32 to vector<16x32xf32>
    %127 = arith.select %125, %120, %126 : vector<16x32xi1>, vector<16x32xf32>
    %c1_i32_65 = arith.constant 1 : i32
    %128 = tpu.dynamic_rotate %95 by %c1_i32_65 dim 1 : vector<16x32xf32>, i32 -> vector<16x32xf32>
    %c1_i32_66 = arith.constant 1 : i32
    %129 = vector.broadcast %c1_i32_66 : i32 to vector<16x32xi32>
    %130 = arith.cmpi sge, %102, %129 : vector<16x32xi32>
    %cst_67 = arith.constant 0.000000e+00 : f32
    %131 = vector.broadcast %cst_67 : f32 to vector<16x32xf32>
    %132 = arith.select %130, %128, %131 : vector<16x32xi1>, vector<16x32xf32>
    %c31_i32_68 = arith.constant 31 : i32
    %133 = tpu.dynamic_rotate %95 by %c31_i32_68 dim 1 : vector<16x32xf32>, i32 -> vector<16x32xf32>
    %c3_i32_69 = arith.constant 3 : i32
    %134 = vector.broadcast %c3_i32_69 : i32 to vector<16x32xi32>
    %135 = arith.cmpi slt, %102, %134 : vector<16x32xi32>
    %cst_70 = arith.constant 0.000000e+00 : f32
    %136 = vector.broadcast %cst_70 : f32 to vector<16x32xf32>
    %137 = arith.select %135, %133, %136 : vector<16x32xi1>, vector<16x32xf32>
    %c29_i32_71 = arith.constant 29 : i32
    %138 = tpu.dynamic_rotate %95 by %c29_i32_71 dim 1 : vector<16x32xf32>, i32 -> vector<16x32xf32>
    %c3_i32_72 = arith.constant 3 : i32
    %139 = vector.broadcast %c3_i32_72 : i32 to vector<16x32xi32>
    %140 = arith.cmpi slt, %106, %139 : vector<16x32xi32>
    %c1_i32_73 = arith.constant 1 : i32
    %141 = vector.broadcast %c1_i32_73 : i32 to vector<16x32xi32>
    %142 = arith.cmpi sge, %102, %141 : vector<16x32xi32>
    %143 = arith.andi %140, %142 : vector<16x32xi1>
    %cst_74 = arith.constant 0.000000e+00 : f32
    %144 = vector.broadcast %cst_74 : f32 to vector<16x32xf32>
    %145 = arith.select %143, %138, %144 : vector<16x32xi1>, vector<16x32xf32>
    %c28_i32_75 = arith.constant 28 : i32
    %146 = tpu.dynamic_rotate %95 by %c28_i32_75 dim 1 : vector<16x32xf32>, i32 -> vector<16x32xf32>
    %c3_i32_76 = arith.constant 3 : i32
    %147 = vector.broadcast %c3_i32_76 : i32 to vector<16x32xi32>
    %148 = arith.cmpi slt, %106, %147 : vector<16x32xi32>
    %cst_77 = arith.constant 0.000000e+00 : f32
    %149 = vector.broadcast %cst_77 : f32 to vector<16x32xf32>
    %150 = arith.select %148, %146, %149 : vector<16x32xi1>, vector<16x32xf32>
    %c27_i32_78 = arith.constant 27 : i32
    %151 = tpu.dynamic_rotate %95 by %c27_i32_78 dim 1 : vector<16x32xf32>, i32 -> vector<16x32xf32>
    %c3_i32_79 = arith.constant 3 : i32
    %152 = vector.broadcast %c3_i32_79 : i32 to vector<16x32xi32>
    %153 = arith.cmpi slt, %106, %152 : vector<16x32xi32>
    %c3_i32_80 = arith.constant 3 : i32
    %154 = vector.broadcast %c3_i32_80 : i32 to vector<16x32xi32>
    %155 = arith.cmpi slt, %102, %154 : vector<16x32xi32>
    %156 = arith.andi %153, %155 : vector<16x32xi1>
    %cst_81 = arith.constant 0.000000e+00 : f32
    %157 = vector.broadcast %cst_81 : f32 to vector<16x32xf32>
    %158 = arith.select %156, %151, %157 : vector<16x32xi1>, vector<16x32xf32>
    %159 = tpu.concatenate %114, %119, %127, %132, %95, %137, %145, %150, %158 in 0 : vector<16x32xf32>, vector<16x32xf32>, vector<16x32xf32>, vector<16x32xf32>, vector<16x32xf32>, vector<16x32xf32>, vector<16x32xf32>, vector<16x32xf32>, vector<16x32xf32> -> vector<144x32xf32>
    %160 = arith.truncf %159 : vector<144x32xf32> to vector<144x32xbf16>
    %cst_82 = arith.constant dense<0.000000e+00> : vector<16x32xf32>
    %161 = tpu.matmul %96, %160, %cst_82 {dimension_numbers = #tpu.dot_dimension_numbers<[1], [0], [0], [1], [0, 0, 1, 1], [], []>} : vector<16x144xbf16>, vector<144x32xbf16>, vector<16x32xf32> -> vector<16x32xf32>
    %162 = vector.broadcast %97 : vector<16x1xf32> to vector<16x32xf32>
    %163 = arith.addf %161, %162 : vector<16x32xf32>
    %cst_83 = arith.constant dense<0.000000e+00> : vector<16xf32>
    %164 = vector.multi_reduction <add>, %163, %cst_83 [1] : vector<16x32xf32> to vector<16xf32>
    %165 = vector.shape_cast %164 : vector<16xf32> to vector<16x1xf32>
    %cst_84 = arith.constant 3.125000e-02 : f32
    %166 = vector.broadcast %cst_84 : f32 to vector<16x1xf32>
    %167 = arith.mulf %165, %166 : vector<16x1xf32>
    %168 = vector.broadcast %167 : vector<16x1xf32> to vector<16x32xf32>
    %169 = arith.subf %163, %168 : vector<16x32xf32>
    %170 = arith.mulf %169, %169 : vector<16x32xf32>
    %cst_85 = arith.constant dense<0.000000e+00> : vector<16xf32>
    %171 = vector.multi_reduction <add>, %170, %cst_85 [1] : vector<16x32xf32> to vector<16xf32>
    %172 = vector.shape_cast %171 : vector<16xf32> to vector<16x1xf32>
    %cst_86 = arith.constant 3.125000e-02 : f32
    %173 = vector.broadcast %cst_86 : f32 to vector<16x1xf32>
    %174 = arith.mulf %172, %173 : vector<16x1xf32>
    %cst_87 = arith.constant 9.99999974E-6 : f32
    %175 = vector.broadcast %cst_87 : f32 to vector<16x1xf32>
    %176 = arith.addf %174, %175 : vector<16x1xf32>
    %177 = math.rsqrt %176 : vector<16x1xf32>
    %178 = arith.mulf %98, %177 : vector<16x1xf32>
    %179 = vector.broadcast %178 : vector<16x1xf32> to vector<16x32xf32>
    %180 = arith.mulf %169, %179 : vector<16x32xf32>
    %181 = vector.broadcast %99 : vector<16x1xf32> to vector<16x32xf32>
    %182 = arith.addf %180, %181 : vector<16x32xf32>
    %cst_88 = arith.constant 0.000000e+00 : f32
    %183 = vector.broadcast %cst_88 : f32 to vector<16x32xf32>
    %184 = arith.maximumf %182, %183 : vector<16x32xf32>
    %c0_89 = arith.constant 0 : index
    %c0_90 = arith.constant 0 : index
    %185 = vector.load %arg12[%c0_89, %c0_90] : memref<16x32xf32, #tpu.memory_space<vmem>>, vector<16x32xf32>
    tpu.vector_store %arg12[%c0_89, %c0_90], %184 {strides = array<i32>} : memref<16x32xf32, #tpu.memory_space<vmem>>, vector<16x32xf32>,
    return
  }
}

module attributes {stable_mosaic.version = 11 : i64} {
  func.func @kernel(%arg0: memref<16x128xf32, #tpu.memory_space<vmem>>, %arg1: memref<16x128xf32, #tpu.memory_space<vmem>>, %arg2: memref<8x288xbf16, #tpu.memory_space<vmem>>, %arg3: memref<8x1xf32, #tpu.memory_space<vmem>>, %arg4: memref<8x1xf32, #tpu.memory_space<vmem>>, %arg5: memref<8x1xf32, #tpu.memory_space<vmem>>, %arg6: memref<8x72xbf16, #tpu.memory_space<vmem>>, %arg7: memref<8x1xf32, #tpu.memory_space<vmem>>, %arg8: memref<8x1xf32, #tpu.memory_space<vmem>>, %arg9: memref<8x1xf32, #tpu.memory_space<vmem>>, %arg10: memref<8x128xf32, #tpu.memory_space<vmem>>) attributes {dimension_semantics = [], scalar_prefetch = 0 : i64, scratch_operands = 0 : i64, tpu.core_type = #tpu.core_type<tc>} {
    %c0 = arith.constant 0 : index
    %c0_0 = arith.constant 0 : index
    %0 = vector.load %arg0[%c0, %c0_0] : memref<16x128xf32, #tpu.memory_space<vmem>>, vector<16x128xf32>
    %c0_1 = arith.constant 0 : index
    %c0_2 = arith.constant 0 : index
    %1 = vector.load %arg1[%c0_1, %c0_2] : memref<16x128xf32, #tpu.memory_space<vmem>>, vector<16x128xf32>
    %2 = tpu.concatenate %0, %1 in 0 : vector<16x128xf32>, vector<16x128xf32> -> vector<32x128xf32>
    %c0_3 = arith.constant 0 : index
    %c0_4 = arith.constant 0 : index
    %3 = vector.load %arg2[%c0_3, %c0_4] : memref<8x288xbf16, #tpu.memory_space<vmem>>, vector<8x288xbf16>
    %c0_5 = arith.constant 0 : index
    %c0_6 = arith.constant 0 : index
    %4 = vector.load %arg3[%c0_5, %c0_6] : memref<8x1xf32, #tpu.memory_space<vmem>>, vector<8x1xf32>
    %c0_7 = arith.constant 0 : index
    %c0_8 = arith.constant 0 : index
    %5 = vector.load %arg4[%c0_7, %c0_8] : memref<8x1xf32, #tpu.memory_space<vmem>>, vector<8x1xf32>
    %c0_9 = arith.constant 0 : index
    %c0_10 = arith.constant 0 : index
    %6 = vector.load %arg5[%c0_9, %c0_10] : memref<8x1xf32, #tpu.memory_space<vmem>>, vector<8x1xf32>
    %7 = tpu.iota {dimensions = array<i32: 1>} : vector<32x128xi32>
    %c7_i32 = arith.constant 7 : i32
    %8 = vector.broadcast %c7_i32 : i32 to vector<32x128xi32>
    %9 = arith.andi %7, %8 : vector<32x128xi32>
    %c3_i32 = arith.constant 3 : i32
    %10 = vector.broadcast %c3_i32 : i32 to vector<32x128xi32>
    %11 = arith.shrsi %7, %10 : vector<32x128xi32>
    %c7_i32_11 = arith.constant 7 : i32
    %12 = vector.broadcast %c7_i32_11 : i32 to vector<32x128xi32>
    %13 = arith.andi %11, %12 : vector<32x128xi32>
    %c9_i32 = arith.constant 9 : i32
    %14 = tpu.dynamic_rotate %2 by %c9_i32 dim 1 : vector<32x128xf32>, i32 -> vector<32x128xf32>
    %c1_i32 = arith.constant 1 : i32
    %15 = vector.broadcast %c1_i32 : i32 to vector<32x128xi32>
    %16 = arith.cmpi sge, %13, %15 : vector<32x128xi32>
    %c1_i32_12 = arith.constant 1 : i32
    %17 = vector.broadcast %c1_i32_12 : i32 to vector<32x128xi32>
    %18 = arith.cmpi sge, %9, %17 : vector<32x128xi32>
    %19 = arith.andi %16, %18 : vector<32x128xi1>
    %cst = arith.constant 0.000000e+00 : f32
    %20 = vector.broadcast %cst : f32 to vector<32x128xf32>
    %21 = arith.select %19, %14, %20 : vector<32x128xi1>, vector<32x128xf32>
    %c8_i32 = arith.constant 8 : i32
    %22 = tpu.dynamic_rotate %2 by %c8_i32 dim 1 : vector<32x128xf32>, i32 -> vector<32x128xf32>
    %c1_i32_13 = arith.constant 1 : i32
    %23 = vector.broadcast %c1_i32_13 : i32 to vector<32x128xi32>
    %24 = arith.cmpi sge, %13, %23 : vector<32x128xi32>
    %cst_14 = arith.constant 0.000000e+00 : f32
    %25 = vector.broadcast %cst_14 : f32 to vector<32x128xf32>
    %26 = arith.select %24, %22, %25 : vector<32x128xi1>, vector<32x128xf32>
    %c7_i32_15 = arith.constant 7 : i32
    %27 = tpu.dynamic_rotate %2 by %c7_i32_15 dim 1 : vector<32x128xf32>, i32 -> vector<32x128xf32>
    %c1_i32_16 = arith.constant 1 : i32
    %28 = vector.broadcast %c1_i32_16 : i32 to vector<32x128xi32>
    %29 = arith.cmpi sge, %13, %28 : vector<32x128xi32>
    %c7_i32_17 = arith.constant 7 : i32
    %30 = vector.broadcast %c7_i32_17 : i32 to vector<32x128xi32>
    %31 = arith.cmpi slt, %9, %30 : vector<32x128xi32>
    %32 = arith.andi %29, %31 : vector<32x128xi1>
    %cst_18 = arith.constant 0.000000e+00 : f32
    %33 = vector.broadcast %cst_18 : f32 to vector<32x128xf32>
    %34 = arith.select %32, %27, %33 : vector<32x128xi1>, vector<32x128xf32>
    %c1_i32_19 = arith.constant 1 : i32
    %35 = tpu.dynamic_rotate %2 by %c1_i32_19 dim 1 : vector<32x128xf32>, i32 -> vector<32x128xf32>
    %c1_i32_20 = arith.constant 1 : i32
    %36 = vector.broadcast %c1_i32_20 : i32 to vector<32x128xi32>
    %37 = arith.cmpi sge, %9, %36 : vector<32x128xi32>
    %cst_21 = arith.constant 0.000000e+00 : f32
    %38 = vector.broadcast %cst_21 : f32 to vector<32x128xf32>
    %39 = arith.select %37, %35, %38 : vector<32x128xi1>, vector<32x128xf32>
    %c127_i32 = arith.constant 127 : i32
    %40 = tpu.dynamic_rotate %2 by %c127_i32 dim 1 : vector<32x128xf32>, i32 -> vector<32x128xf32>
    %c7_i32_22 = arith.constant 7 : i32
    %41 = vector.broadcast %c7_i32_22 : i32 to vector<32x128xi32>
    %42 = arith.cmpi slt, %9, %41 : vector<32x128xi32>
    %cst_23 = arith.constant 0.000000e+00 : f32
    %43 = vector.broadcast %cst_23 : f32 to vector<32x128xf32>
    %44 = arith.select %42, %40, %43 : vector<32x128xi1>, vector<32x128xf32>
    %c121_i32 = arith.constant 121 : i32
    %45 = tpu.dynamic_rotate %2 by %c121_i32 dim 1 : vector<32x128xf32>, i32 -> vector<32x128xf32>
    %c7_i32_24 = arith.constant 7 : i32
    %46 = vector.broadcast %c7_i32_24 : i32 to vector<32x128xi32>
    %47 = arith.cmpi slt, %13, %46 : vector<32x128xi32>
    %c1_i32_25 = arith.constant 1 : i32
    %48 = vector.broadcast %c1_i32_25 : i32 to vector<32x128xi32>
    %49 = arith.cmpi sge, %9, %48 : vector<32x128xi32>
    %50 = arith.andi %47, %49 : vector<32x128xi1>
    %cst_26 = arith.constant 0.000000e+00 : f32
    %51 = vector.broadcast %cst_26 : f32 to vector<32x128xf32>
    %52 = arith.select %50, %45, %51 : vector<32x128xi1>, vector<32x128xf32>
    %c120_i32 = arith.constant 120 : i32
    %53 = tpu.dynamic_rotate %2 by %c120_i32 dim 1 : vector<32x128xf32>, i32 -> vector<32x128xf32>
    %c7_i32_27 = arith.constant 7 : i32
    %54 = vector.broadcast %c7_i32_27 : i32 to vector<32x128xi32>
    %55 = arith.cmpi slt, %13, %54 : vector<32x128xi32>
    %cst_28 = arith.constant 0.000000e+00 : f32
    %56 = vector.broadcast %cst_28 : f32 to vector<32x128xf32>
    %57 = arith.select %55, %53, %56 : vector<32x128xi1>, vector<32x128xf32>
    %c119_i32 = arith.constant 119 : i32
    %58 = tpu.dynamic_rotate %2 by %c119_i32 dim 1 : vector<32x128xf32>, i32 -> vector<32x128xf32>
    %c7_i32_29 = arith.constant 7 : i32
    %59 = vector.broadcast %c7_i32_29 : i32 to vector<32x128xi32>
    %60 = arith.cmpi slt, %13, %59 : vector<32x128xi32>
    %c7_i32_30 = arith.constant 7 : i32
    %61 = vector.broadcast %c7_i32_30 : i32 to vector<32x128xi32>
    %62 = arith.cmpi slt, %9, %61 : vector<32x128xi32>
    %63 = arith.andi %60, %62 : vector<32x128xi1>
    %cst_31 = arith.constant 0.000000e+00 : f32
    %64 = vector.broadcast %cst_31 : f32 to vector<32x128xf32>
    %65 = arith.select %63, %58, %64 : vector<32x128xi1>, vector<32x128xf32>
    %66 = tpu.concatenate %21, %26, %34, %39, %2, %44, %52, %57, %65 in 0 : vector<32x128xf32>, vector<32x128xf32>, vector<32x128xf32>, vector<32x128xf32>, vector<32x128xf32>, vector<32x128xf32>, vector<32x128xf32>, vector<32x128xf32>, vector<32x128xf32> -> vector<288x128xf32>
    %67 = arith.truncf %66 : vector<288x128xf32> to vector<288x128xbf16>
    %cst_32 = arith.constant dense<0.000000e+00> : vector<8x128xf32>
    %68 = tpu.matmul %3, %67, %cst_32 {dimension_numbers = #tpu.dot_dimension_numbers<[1], [0], [0], [1], [0, 0, 1, 1], [], []>} : vector<8x288xbf16>, vector<288x128xbf16>, vector<8x128xf32> -> vector<8x128xf32>
    %69 = vector.broadcast %4 : vector<8x1xf32> to vector<8x128xf32>
    %70 = arith.addf %68, %69 : vector<8x128xf32>
    %cst_33 = arith.constant dense<0.000000e+00> : vector<8xf32>
    %71 = vector.multi_reduction <add>, %70, %cst_33 [1] : vector<8x128xf32> to vector<8xf32>
    %72 = vector.shape_cast %71 : vector<8xf32> to vector<8x1xf32>
    %cst_34 = arith.constant 7.812500e-03 : f32
    %73 = vector.broadcast %cst_34 : f32 to vector<8x1xf32>
    %74 = arith.mulf %72, %73 : vector<8x1xf32>
    %75 = vector.broadcast %74 : vector<8x1xf32> to vector<8x128xf32>
    %76 = arith.subf %70, %75 : vector<8x128xf32>
    %77 = arith.mulf %76, %76 : vector<8x128xf32>
    %cst_35 = arith.constant dense<0.000000e+00> : vector<8xf32>
    %78 = vector.multi_reduction <add>, %77, %cst_35 [1] : vector<8x128xf32> to vector<8xf32>
    %79 = vector.shape_cast %78 : vector<8xf32> to vector<8x1xf32>
    %cst_36 = arith.constant 7.812500e-03 : f32
    %80 = vector.broadcast %cst_36 : f32 to vector<8x1xf32>
    %81 = arith.mulf %79, %80 : vector<8x1xf32>
    %cst_37 = arith.constant 9.99999974E-6 : f32
    %82 = vector.broadcast %cst_37 : f32 to vector<8x1xf32>
    %83 = arith.addf %81, %82 : vector<8x1xf32>
    %84 = math.rsqrt %83 : vector<8x1xf32>
    %85 = arith.mulf %5, %84 : vector<8x1xf32>
    %86 = vector.broadcast %85 : vector<8x1xf32> to vector<8x128xf32>
    %87 = arith.mulf %76, %86 : vector<8x128xf32>
    %88 = vector.broadcast %6 : vector<8x1xf32> to vector<8x128xf32>
    %89 = arith.addf %87, %88 : vector<8x128xf32>
    %cst_38 = arith.constant 0.000000e+00 : f32
    %90 = vector.broadcast %cst_38 : f32 to vector<8x128xf32>
    %91 = arith.maximumf %89, %90 : vector<8x128xf32>
    %c0_39 = arith.constant 0 : index
    %c0_40 = arith.constant 0 : index
    %92 = vector.load %arg6[%c0_39, %c0_40] : memref<8x72xbf16, #tpu.memory_space<vmem>>, vector<8x72xbf16>
    %c0_41 = arith.constant 0 : index
    %c0_42 = arith.constant 0 : index
    %93 = vector.load %arg7[%c0_41, %c0_42] : memref<8x1xf32, #tpu.memory_space<vmem>>, vector<8x1xf32>
    %c0_43 = arith.constant 0 : index
    %c0_44 = arith.constant 0 : index
    %94 = vector.load %arg8[%c0_43, %c0_44] : memref<8x1xf32, #tpu.memory_space<vmem>>, vector<8x1xf32>
    %c0_45 = arith.constant 0 : index
    %c0_46 = arith.constant 0 : index
    %95 = vector.load %arg9[%c0_45, %c0_46] : memref<8x1xf32, #tpu.memory_space<vmem>>, vector<8x1xf32>
    %96 = tpu.iota {dimensions = array<i32: 1>} : vector<8x128xi32>
    %c7_i32_47 = arith.constant 7 : i32
    %97 = vector.broadcast %c7_i32_47 : i32 to vector<8x128xi32>
    %98 = arith.andi %96, %97 : vector<8x128xi32>
    %c3_i32_48 = arith.constant 3 : i32
    %99 = vector.broadcast %c3_i32_48 : i32 to vector<8x128xi32>
    %100 = arith.shrsi %96, %99 : vector<8x128xi32>
    %c7_i32_49 = arith.constant 7 : i32
    %101 = vector.broadcast %c7_i32_49 : i32 to vector<8x128xi32>
    %102 = arith.andi %100, %101 : vector<8x128xi32>
    %c9_i32_50 = arith.constant 9 : i32
    %103 = tpu.dynamic_rotate %91 by %c9_i32_50 dim 1 : vector<8x128xf32>, i32 -> vector<8x128xf32>
    %c1_i32_51 = arith.constant 1 : i32
    %104 = vector.broadcast %c1_i32_51 : i32 to vector<8x128xi32>
    %105 = arith.cmpi sge, %102, %104 : vector<8x128xi32>
    %c1_i32_52 = arith.constant 1 : i32
    %106 = vector.broadcast %c1_i32_52 : i32 to vector<8x128xi32>
    %107 = arith.cmpi sge, %98, %106 : vector<8x128xi32>
    %108 = arith.andi %105, %107 : vector<8x128xi1>
    %cst_53 = arith.constant 0.000000e+00 : f32
    %109 = vector.broadcast %cst_53 : f32 to vector<8x128xf32>
    %110 = arith.select %108, %103, %109 : vector<8x128xi1>, vector<8x128xf32>
    %c8_i32_54 = arith.constant 8 : i32
    %111 = tpu.dynamic_rotate %91 by %c8_i32_54 dim 1 : vector<8x128xf32>, i32 -> vector<8x128xf32>
    %c1_i32_55 = arith.constant 1 : i32
    %112 = vector.broadcast %c1_i32_55 : i32 to vector<8x128xi32>
    %113 = arith.cmpi sge, %102, %112 : vector<8x128xi32>
    %cst_56 = arith.constant 0.000000e+00 : f32
    %114 = vector.broadcast %cst_56 : f32 to vector<8x128xf32>
    %115 = arith.select %113, %111, %114 : vector<8x128xi1>, vector<8x128xf32>
    %c7_i32_57 = arith.constant 7 : i32
    %116 = tpu.dynamic_rotate %91 by %c7_i32_57 dim 1 : vector<8x128xf32>, i32 -> vector<8x128xf32>
    %c1_i32_58 = arith.constant 1 : i32
    %117 = vector.broadcast %c1_i32_58 : i32 to vector<8x128xi32>
    %118 = arith.cmpi sge, %102, %117 : vector<8x128xi32>
    %c7_i32_59 = arith.constant 7 : i32
    %119 = vector.broadcast %c7_i32_59 : i32 to vector<8x128xi32>
    %120 = arith.cmpi slt, %98, %119 : vector<8x128xi32>
    %121 = arith.andi %118, %120 : vector<8x128xi1>
    %cst_60 = arith.constant 0.000000e+00 : f32
    %122 = vector.broadcast %cst_60 : f32 to vector<8x128xf32>
    %123 = arith.select %121, %116, %122 : vector<8x128xi1>, vector<8x128xf32>
    %c1_i32_61 = arith.constant 1 : i32
    %124 = tpu.dynamic_rotate %91 by %c1_i32_61 dim 1 : vector<8x128xf32>, i32 -> vector<8x128xf32>
    %c1_i32_62 = arith.constant 1 : i32
    %125 = vector.broadcast %c1_i32_62 : i32 to vector<8x128xi32>
    %126 = arith.cmpi sge, %98, %125 : vector<8x128xi32>
    %cst_63 = arith.constant 0.000000e+00 : f32
    %127 = vector.broadcast %cst_63 : f32 to vector<8x128xf32>
    %128 = arith.select %126, %124, %127 : vector<8x128xi1>, vector<8x128xf32>
    %c127_i32_64 = arith.constant 127 : i32
    %129 = tpu.dynamic_rotate %91 by %c127_i32_64 dim 1 : vector<8x128xf32>, i32 -> vector<8x128xf32>
    %c7_i32_65 = arith.constant 7 : i32
    %130 = vector.broadcast %c7_i32_65 : i32 to vector<8x128xi32>
    %131 = arith.cmpi slt, %98, %130 : vector<8x128xi32>
    %cst_66 = arith.constant 0.000000e+00 : f32
    %132 = vector.broadcast %cst_66 : f32 to vector<8x128xf32>
    %133 = arith.select %131, %129, %132 : vector<8x128xi1>, vector<8x128xf32>
    %c121_i32_67 = arith.constant 121 : i32
    %134 = tpu.dynamic_rotate %91 by %c121_i32_67 dim 1 : vector<8x128xf32>, i32 -> vector<8x128xf32>
    %c7_i32_68 = arith.constant 7 : i32
    %135 = vector.broadcast %c7_i32_68 : i32 to vector<8x128xi32>
    %136 = arith.cmpi slt, %102, %135 : vector<8x128xi32>
    %c1_i32_69 = arith.constant 1 : i32
    %137 = vector.broadcast %c1_i32_69 : i32 to vector<8x128xi32>
    %138 = arith.cmpi sge, %98, %137 : vector<8x128xi32>
    %139 = arith.andi %136, %138 : vector<8x128xi1>
    %cst_70 = arith.constant 0.000000e+00 : f32
    %140 = vector.broadcast %cst_70 : f32 to vector<8x128xf32>
    %141 = arith.select %139, %134, %140 : vector<8x128xi1>, vector<8x128xf32>
    %c120_i32_71 = arith.constant 120 : i32
    %142 = tpu.dynamic_rotate %91 by %c120_i32_71 dim 1 : vector<8x128xf32>, i32 -> vector<8x128xf32>
    %c7_i32_72 = arith.constant 7 : i32
    %143 = vector.broadcast %c7_i32_72 : i32 to vector<8x128xi32>
    %144 = arith.cmpi slt, %102, %143 : vector<8x128xi32>
    %cst_73 = arith.constant 0.000000e+00 : f32
    %145 = vector.broadcast %cst_73 : f32 to vector<8x128xf32>
    %146 = arith.select %144, %142, %145 : vector<8x128xi1>, vector<8x128xf32>
    %c119_i32_74 = arith.constant 119 : i32
    %147 = tpu.dynamic_rotate %91 by %c119_i32_74 dim 1 : vector<8x128xf32>, i32 -> vector<8x128xf32>
    %c7_i32_75 = arith.constant 7 : i32
    %148 = vector.broadcast %c7_i32_75 : i32 to vector<8x128xi32>
    %149 = arith.cmpi slt, %102, %148 : vector<8x128xi32>
    %c7_i32_76 = arith.constant 7 : i32
    %150 = vector.broadcast %c7_i32_76 : i32 to vector<8x128xi32>
    %151 = arith.cmpi slt, %98, %150 : vector<8x128xi32>
    %152 = arith.andi %149, %151 : vector<8x128xi1>
    %cst_77 = arith.constant 0.000000e+00 : f32
    %153 = vector.broadcast %cst_77 : f32 to vector<8x128xf32>
    %154 = arith.select %152, %147, %153 : vector<8x128xi1>, vector<8x128xf32>
    %155 = tpu.concatenate %110, %115, %123, %128, %91, %133, %141, %146, %154 in 0 : vector<8x128xf32>, vector<8x128xf32>, vector<8x128xf32>, vector<8x128xf32>, vector<8x128xf32>, vector<8x128xf32>, vector<8x128xf32>, vector<8x128xf32>, vector<8x128xf32> -> vector<72x128xf32>
    %156 = arith.truncf %155 : vector<72x128xf32> to vector<72x128xbf16>
    %cst_78 = arith.constant dense<0.000000e+00> : vector<8x128xf32>
    %157 = tpu.matmul %92, %156, %cst_78 {dimension_numbers = #tpu.dot_dimension_numbers<[1], [0], [0], [1], [0, 0, 1, 1], [], []>} : vector<8x72xbf16>, vector<72x128xbf16>, vector<8x128xf32> -> vector<8x128xf32>
    %158 = vector.broadcast %93 : vector<8x1xf32> to vector<8x128xf32>
    %159 = arith.addf %157, %158 : vector<8x128xf32>
    %cst_79 = arith.constant dense<0.000000e+00> : vector<8xf32>
    %160 = vector.multi_reduction <add>, %159, %cst_79 [1] : vector<8x128xf32> to vector<8xf32>
    %161 = vector.shape_cast %160 : vector<8xf32> to vector<8x1xf32>
    %cst_80 = arith.constant 7.812500e-03 : f32
    %162 = vector.broadcast %cst_80 : f32 to vector<8x1xf32>
    %163 = arith.mulf %161, %162 : vector<8x1xf32>
    %164 = vector.broadcast %163 : vector<8x1xf32> to vector<8x128xf32>
    %165 = arith.subf %159, %164 : vector<8x128xf32>
    %166 = arith.mulf %165, %165 : vector<8x128xf32>
    %cst_81 = arith.constant dense<0.000000e+00> : vector<8xf32>
    %167 = vector.multi_reduction <add>, %166, %cst_81 [1] : vector<8x128xf32> to vector<8xf32>
    %168 = vector.shape_cast %167 : vector<8xf32> to vector<8x1xf32>
    %cst_82 = arith.constant 7.812500e-03 : f32
    %169 = vector.broadcast %cst_82 : f32 to vector<8x1xf32>
    %170 = arith.mulf %168, %169 : vector<8x1xf32>
    %cst_83 = arith.constant 9.99999974E-6 : f32
    %171 = vector.broadcast %cst_83 : f32 to vector<8x1xf32>
    %172 = arith.addf %170, %171 : vector<8x1xf32>
    %173 = math.rsqrt %172 : vector<8x1xf32>
    %174 = arith.mulf %94, %173 : vector<8x1xf32>
    %175 = vector.broadcast %174 : vector<8x1xf32> to vector<8x128xf32>
    %176 = arith.mulf %165, %175 : vector<8x128xf32>
    %177 = vector.broadcast %95 : vector<8x1xf32> to vector<8x128xf32>
    %178 = arith.addf %176, %177 : vector<8x128xf32>
    %cst_84 = arith.constant 0.000000e+00 : f32
    %179 = vector.broadcast %cst_84 : f32 to vector<8x128xf32>
    %180 = arith.maximumf %178, %179 : vector<8x128xf32>
    %c0_85 = arith.constant 0 : index
    %c0_86 = arith.constant 0 : index
    %181 = vector.load %arg10[%c0_85, %c0_86] : memref<8x128xf32, #tpu.memory_space<vmem>>, vector<8x128xf32>
    tpu.vector_store %arg10[%c0_85, %c0_86], %180 {strides = array<i32>} : memref<8x128xf32, #tpu.memory_space<vmem>>, vector<8x128xf32>,
    return
  }
}

module attributes {stable_mosaic.version = 11 : i64} {
  func.func @kernel(%arg0: memref<8x512xf32, #tpu.memory_space<vmem>>, %arg1: memref<8x512xf32, #tpu.memory_space<vmem>>, %arg2: memref<8x144xbf16, #tpu.memory_space<vmem>>, %arg3: memref<8x1xf32, #tpu.memory_space<vmem>>, %arg4: memref<8x1xf32, #tpu.memory_space<vmem>>, %arg5: memref<8x1xf32, #tpu.memory_space<vmem>>, %arg6: memref<8x72xbf16, #tpu.memory_space<vmem>>, %arg7: memref<8x1xf32, #tpu.memory_space<vmem>>, %arg8: memref<8x1xf32, #tpu.memory_space<vmem>>, %arg9: memref<8x1xf32, #tpu.memory_space<vmem>>, %arg10: memref<8x512xf32, #tpu.memory_space<vmem>>) attributes {dimension_semantics = [], scalar_prefetch = 0 : i64, scratch_operands = 0 : i64, tpu.core_type = #tpu.core_type<tc>} {
    %c0 = arith.constant 0 : index
    %c0_0 = arith.constant 0 : index
    %0 = vector.load %arg0[%c0, %c0_0] : memref<8x512xf32, #tpu.memory_space<vmem>>, vector<8x512xf32>
    %c0_1 = arith.constant 0 : index
    %c0_2 = arith.constant 0 : index
    %1 = vector.load %arg1[%c0_1, %c0_2] : memref<8x512xf32, #tpu.memory_space<vmem>>, vector<8x512xf32>
    %2 = tpu.concatenate %0, %1 in 0 : vector<8x512xf32>, vector<8x512xf32> -> vector<16x512xf32>
    %c0_3 = arith.constant 0 : index
    %c0_4 = arith.constant 0 : index
    %3 = vector.load %arg2[%c0_3, %c0_4] : memref<8x144xbf16, #tpu.memory_space<vmem>>, vector<8x144xbf16>
    %c0_5 = arith.constant 0 : index
    %c0_6 = arith.constant 0 : index
    %4 = vector.load %arg3[%c0_5, %c0_6] : memref<8x1xf32, #tpu.memory_space<vmem>>, vector<8x1xf32>
    %c0_7 = arith.constant 0 : index
    %c0_8 = arith.constant 0 : index
    %5 = vector.load %arg4[%c0_7, %c0_8] : memref<8x1xf32, #tpu.memory_space<vmem>>, vector<8x1xf32>
    %c0_9 = arith.constant 0 : index
    %c0_10 = arith.constant 0 : index
    %6 = vector.load %arg5[%c0_9, %c0_10] : memref<8x1xf32, #tpu.memory_space<vmem>>, vector<8x1xf32>
    %7 = tpu.iota {dimensions = array<i32: 1>} : vector<16x512xi32>
    %c15_i32 = arith.constant 15 : i32
    %8 = vector.broadcast %c15_i32 : i32 to vector<16x512xi32>
    %9 = arith.andi %7, %8 : vector<16x512xi32>
    %c4_i32 = arith.constant 4 : i32
    %10 = vector.broadcast %c4_i32 : i32 to vector<16x512xi32>
    %11 = arith.shrsi %7, %10 : vector<16x512xi32>
    %c15_i32_11 = arith.constant 15 : i32
    %12 = vector.broadcast %c15_i32_11 : i32 to vector<16x512xi32>
    %13 = arith.andi %11, %12 : vector<16x512xi32>
    %c17_i32 = arith.constant 17 : i32
    %14 = tpu.dynamic_rotate %2 by %c17_i32 dim 1 : vector<16x512xf32>, i32 -> vector<16x512xf32>
    %c1_i32 = arith.constant 1 : i32
    %15 = vector.broadcast %c1_i32 : i32 to vector<16x512xi32>
    %16 = arith.cmpi sge, %13, %15 : vector<16x512xi32>
    %c1_i32_12 = arith.constant 1 : i32
    %17 = vector.broadcast %c1_i32_12 : i32 to vector<16x512xi32>
    %18 = arith.cmpi sge, %9, %17 : vector<16x512xi32>
    %19 = arith.andi %16, %18 : vector<16x512xi1>
    %cst = arith.constant 0.000000e+00 : f32
    %20 = vector.broadcast %cst : f32 to vector<16x512xf32>
    %21 = arith.select %19, %14, %20 : vector<16x512xi1>, vector<16x512xf32>
    %c16_i32 = arith.constant 16 : i32
    %22 = tpu.dynamic_rotate %2 by %c16_i32 dim 1 : vector<16x512xf32>, i32 -> vector<16x512xf32>
    %c1_i32_13 = arith.constant 1 : i32
    %23 = vector.broadcast %c1_i32_13 : i32 to vector<16x512xi32>
    %24 = arith.cmpi sge, %13, %23 : vector<16x512xi32>
    %cst_14 = arith.constant 0.000000e+00 : f32
    %25 = vector.broadcast %cst_14 : f32 to vector<16x512xf32>
    %26 = arith.select %24, %22, %25 : vector<16x512xi1>, vector<16x512xf32>
    %c15_i32_15 = arith.constant 15 : i32
    %27 = tpu.dynamic_rotate %2 by %c15_i32_15 dim 1 : vector<16x512xf32>, i32 -> vector<16x512xf32>
    %c1_i32_16 = arith.constant 1 : i32
    %28 = vector.broadcast %c1_i32_16 : i32 to vector<16x512xi32>
    %29 = arith.cmpi sge, %13, %28 : vector<16x512xi32>
    %c15_i32_17 = arith.constant 15 : i32
    %30 = vector.broadcast %c15_i32_17 : i32 to vector<16x512xi32>
    %31 = arith.cmpi slt, %9, %30 : vector<16x512xi32>
    %32 = arith.andi %29, %31 : vector<16x512xi1>
    %cst_18 = arith.constant 0.000000e+00 : f32
    %33 = vector.broadcast %cst_18 : f32 to vector<16x512xf32>
    %34 = arith.select %32, %27, %33 : vector<16x512xi1>, vector<16x512xf32>
    %c1_i32_19 = arith.constant 1 : i32
    %35 = tpu.dynamic_rotate %2 by %c1_i32_19 dim 1 : vector<16x512xf32>, i32 -> vector<16x512xf32>
    %c1_i32_20 = arith.constant 1 : i32
    %36 = vector.broadcast %c1_i32_20 : i32 to vector<16x512xi32>
    %37 = arith.cmpi sge, %9, %36 : vector<16x512xi32>
    %cst_21 = arith.constant 0.000000e+00 : f32
    %38 = vector.broadcast %cst_21 : f32 to vector<16x512xf32>
    %39 = arith.select %37, %35, %38 : vector<16x512xi1>, vector<16x512xf32>
    %c511_i32 = arith.constant 511 : i32
    %40 = tpu.dynamic_rotate %2 by %c511_i32 dim 1 : vector<16x512xf32>, i32 -> vector<16x512xf32>
    %c15_i32_22 = arith.constant 15 : i32
    %41 = vector.broadcast %c15_i32_22 : i32 to vector<16x512xi32>
    %42 = arith.cmpi slt, %9, %41 : vector<16x512xi32>
    %cst_23 = arith.constant 0.000000e+00 : f32
    %43 = vector.broadcast %cst_23 : f32 to vector<16x512xf32>
    %44 = arith.select %42, %40, %43 : vector<16x512xi1>, vector<16x512xf32>
    %c497_i32 = arith.constant 497 : i32
    %45 = tpu.dynamic_rotate %2 by %c497_i32 dim 1 : vector<16x512xf32>, i32 -> vector<16x512xf32>
    %c15_i32_24 = arith.constant 15 : i32
    %46 = vector.broadcast %c15_i32_24 : i32 to vector<16x512xi32>
    %47 = arith.cmpi slt, %13, %46 : vector<16x512xi32>
    %c1_i32_25 = arith.constant 1 : i32
    %48 = vector.broadcast %c1_i32_25 : i32 to vector<16x512xi32>
    %49 = arith.cmpi sge, %9, %48 : vector<16x512xi32>
    %50 = arith.andi %47, %49 : vector<16x512xi1>
    %cst_26 = arith.constant 0.000000e+00 : f32
    %51 = vector.broadcast %cst_26 : f32 to vector<16x512xf32>
    %52 = arith.select %50, %45, %51 : vector<16x512xi1>, vector<16x512xf32>
    %c496_i32 = arith.constant 496 : i32
    %53 = tpu.dynamic_rotate %2 by %c496_i32 dim 1 : vector<16x512xf32>, i32 -> vector<16x512xf32>
    %c15_i32_27 = arith.constant 15 : i32
    %54 = vector.broadcast %c15_i32_27 : i32 to vector<16x512xi32>
    %55 = arith.cmpi slt, %13, %54 : vector<16x512xi32>
    %cst_28 = arith.constant 0.000000e+00 : f32
    %56 = vector.broadcast %cst_28 : f32 to vector<16x512xf32>
    %57 = arith.select %55, %53, %56 : vector<16x512xi1>, vector<16x512xf32>
    %c495_i32 = arith.constant 495 : i32
    %58 = tpu.dynamic_rotate %2 by %c495_i32 dim 1 : vector<16x512xf32>, i32 -> vector<16x512xf32>
    %c15_i32_29 = arith.constant 15 : i32
    %59 = vector.broadcast %c15_i32_29 : i32 to vector<16x512xi32>
    %60 = arith.cmpi slt, %13, %59 : vector<16x512xi32>
    %c15_i32_30 = arith.constant 15 : i32
    %61 = vector.broadcast %c15_i32_30 : i32 to vector<16x512xi32>
    %62 = arith.cmpi slt, %9, %61 : vector<16x512xi32>
    %63 = arith.andi %60, %62 : vector<16x512xi1>
    %cst_31 = arith.constant 0.000000e+00 : f32
    %64 = vector.broadcast %cst_31 : f32 to vector<16x512xf32>
    %65 = arith.select %63, %58, %64 : vector<16x512xi1>, vector<16x512xf32>
    %66 = tpu.concatenate %21, %26, %34, %39, %2, %44, %52, %57, %65 in 0 : vector<16x512xf32>, vector<16x512xf32>, vector<16x512xf32>, vector<16x512xf32>, vector<16x512xf32>, vector<16x512xf32>, vector<16x512xf32>, vector<16x512xf32>, vector<16x512xf32> -> vector<144x512xf32>
    %67 = arith.truncf %66 : vector<144x512xf32> to vector<144x512xbf16>
    %cst_32 = arith.constant dense<0.000000e+00> : vector<8x512xf32>
    %68 = tpu.matmul %3, %67, %cst_32 {dimension_numbers = #tpu.dot_dimension_numbers<[1], [0], [0], [1], [0, 0, 1, 1], [], []>} : vector<8x144xbf16>, vector<144x512xbf16>, vector<8x512xf32> -> vector<8x512xf32>
    %69 = vector.broadcast %4 : vector<8x1xf32> to vector<8x512xf32>
    %70 = arith.addf %68, %69 : vector<8x512xf32>
    %cst_33 = arith.constant dense<0.000000e+00> : vector<8xf32>
    %71 = vector.multi_reduction <add>, %70, %cst_33 [1] : vector<8x512xf32> to vector<8xf32>
    %72 = vector.shape_cast %71 : vector<8xf32> to vector<8x1xf32>
    %cst_34 = arith.constant 0.001953125 : f32
    %73 = vector.broadcast %cst_34 : f32 to vector<8x1xf32>
    %74 = arith.mulf %72, %73 : vector<8x1xf32>
    %75 = vector.broadcast %74 : vector<8x1xf32> to vector<8x512xf32>
    %76 = arith.subf %70, %75 : vector<8x512xf32>
    %77 = arith.mulf %76, %76 : vector<8x512xf32>
    %cst_35 = arith.constant dense<0.000000e+00> : vector<8xf32>
    %78 = vector.multi_reduction <add>, %77, %cst_35 [1] : vector<8x512xf32> to vector<8xf32>
    %79 = vector.shape_cast %78 : vector<8xf32> to vector<8x1xf32>
    %cst_36 = arith.constant 0.001953125 : f32
    %80 = vector.broadcast %cst_36 : f32 to vector<8x1xf32>
    %81 = arith.mulf %79, %80 : vector<8x1xf32>
    %cst_37 = arith.constant 9.99999974E-6 : f32
    %82 = vector.broadcast %cst_37 : f32 to vector<8x1xf32>
    %83 = arith.addf %81, %82 : vector<8x1xf32>
    %84 = math.rsqrt %83 : vector<8x1xf32>
    %85 = arith.mulf %5, %84 : vector<8x1xf32>
    %86 = vector.broadcast %85 : vector<8x1xf32> to vector<8x512xf32>
    %87 = arith.mulf %76, %86 : vector<8x512xf32>
    %88 = vector.broadcast %6 : vector<8x1xf32> to vector<8x512xf32>
    %89 = arith.addf %87, %88 : vector<8x512xf32>
    %cst_38 = arith.constant 0.000000e+00 : f32
    %90 = vector.broadcast %cst_38 : f32 to vector<8x512xf32>
    %91 = arith.maximumf %89, %90 : vector<8x512xf32>
    %c0_39 = arith.constant 0 : index
    %c0_40 = arith.constant 0 : index
    %92 = vector.load %arg6[%c0_39, %c0_40] : memref<8x72xbf16, #tpu.memory_space<vmem>>, vector<8x72xbf16>
    %c0_41 = arith.constant 0 : index
    %c0_42 = arith.constant 0 : index
    %93 = vector.load %arg7[%c0_41, %c0_42] : memref<8x1xf32, #tpu.memory_space<vmem>>, vector<8x1xf32>
    %c0_43 = arith.constant 0 : index
    %c0_44 = arith.constant 0 : index
    %94 = vector.load %arg8[%c0_43, %c0_44] : memref<8x1xf32, #tpu.memory_space<vmem>>, vector<8x1xf32>
    %c0_45 = arith.constant 0 : index
    %c0_46 = arith.constant 0 : index
    %95 = vector.load %arg9[%c0_45, %c0_46] : memref<8x1xf32, #tpu.memory_space<vmem>>, vector<8x1xf32>
    %96 = tpu.iota {dimensions = array<i32: 1>} : vector<8x512xi32>
    %c15_i32_47 = arith.constant 15 : i32
    %97 = vector.broadcast %c15_i32_47 : i32 to vector<8x512xi32>
    %98 = arith.andi %96, %97 : vector<8x512xi32>
    %c4_i32_48 = arith.constant 4 : i32
    %99 = vector.broadcast %c4_i32_48 : i32 to vector<8x512xi32>
    %100 = arith.shrsi %96, %99 : vector<8x512xi32>
    %c15_i32_49 = arith.constant 15 : i32
    %101 = vector.broadcast %c15_i32_49 : i32 to vector<8x512xi32>
    %102 = arith.andi %100, %101 : vector<8x512xi32>
    %c17_i32_50 = arith.constant 17 : i32
    %103 = tpu.dynamic_rotate %91 by %c17_i32_50 dim 1 : vector<8x512xf32>, i32 -> vector<8x512xf32>
    %c1_i32_51 = arith.constant 1 : i32
    %104 = vector.broadcast %c1_i32_51 : i32 to vector<8x512xi32>
    %105 = arith.cmpi sge, %102, %104 : vector<8x512xi32>
    %c1_i32_52 = arith.constant 1 : i32
    %106 = vector.broadcast %c1_i32_52 : i32 to vector<8x512xi32>
    %107 = arith.cmpi sge, %98, %106 : vector<8x512xi32>
    %108 = arith.andi %105, %107 : vector<8x512xi1>
    %cst_53 = arith.constant 0.000000e+00 : f32
    %109 = vector.broadcast %cst_53 : f32 to vector<8x512xf32>
    %110 = arith.select %108, %103, %109 : vector<8x512xi1>, vector<8x512xf32>
    %c16_i32_54 = arith.constant 16 : i32
    %111 = tpu.dynamic_rotate %91 by %c16_i32_54 dim 1 : vector<8x512xf32>, i32 -> vector<8x512xf32>
    %c1_i32_55 = arith.constant 1 : i32
    %112 = vector.broadcast %c1_i32_55 : i32 to vector<8x512xi32>
    %113 = arith.cmpi sge, %102, %112 : vector<8x512xi32>
    %cst_56 = arith.constant 0.000000e+00 : f32
    %114 = vector.broadcast %cst_56 : f32 to vector<8x512xf32>
    %115 = arith.select %113, %111, %114 : vector<8x512xi1>, vector<8x512xf32>
    %c15_i32_57 = arith.constant 15 : i32
    %116 = tpu.dynamic_rotate %91 by %c15_i32_57 dim 1 : vector<8x512xf32>, i32 -> vector<8x512xf32>
    %c1_i32_58 = arith.constant 1 : i32
    %117 = vector.broadcast %c1_i32_58 : i32 to vector<8x512xi32>
    %118 = arith.cmpi sge, %102, %117 : vector<8x512xi32>
    %c15_i32_59 = arith.constant 15 : i32
    %119 = vector.broadcast %c15_i32_59 : i32 to vector<8x512xi32>
    %120 = arith.cmpi slt, %98, %119 : vector<8x512xi32>
    %121 = arith.andi %118, %120 : vector<8x512xi1>
    %cst_60 = arith.constant 0.000000e+00 : f32
    %122 = vector.broadcast %cst_60 : f32 to vector<8x512xf32>
    %123 = arith.select %121, %116, %122 : vector<8x512xi1>, vector<8x512xf32>
    %c1_i32_61 = arith.constant 1 : i32
    %124 = tpu.dynamic_rotate %91 by %c1_i32_61 dim 1 : vector<8x512xf32>, i32 -> vector<8x512xf32>
    %c1_i32_62 = arith.constant 1 : i32
    %125 = vector.broadcast %c1_i32_62 : i32 to vector<8x512xi32>
    %126 = arith.cmpi sge, %98, %125 : vector<8x512xi32>
    %cst_63 = arith.constant 0.000000e+00 : f32
    %127 = vector.broadcast %cst_63 : f32 to vector<8x512xf32>
    %128 = arith.select %126, %124, %127 : vector<8x512xi1>, vector<8x512xf32>
    %c511_i32_64 = arith.constant 511 : i32
    %129 = tpu.dynamic_rotate %91 by %c511_i32_64 dim 1 : vector<8x512xf32>, i32 -> vector<8x512xf32>
    %c15_i32_65 = arith.constant 15 : i32
    %130 = vector.broadcast %c15_i32_65 : i32 to vector<8x512xi32>
    %131 = arith.cmpi slt, %98, %130 : vector<8x512xi32>
    %cst_66 = arith.constant 0.000000e+00 : f32
    %132 = vector.broadcast %cst_66 : f32 to vector<8x512xf32>
    %133 = arith.select %131, %129, %132 : vector<8x512xi1>, vector<8x512xf32>
    %c497_i32_67 = arith.constant 497 : i32
    %134 = tpu.dynamic_rotate %91 by %c497_i32_67 dim 1 : vector<8x512xf32>, i32 -> vector<8x512xf32>
    %c15_i32_68 = arith.constant 15 : i32
    %135 = vector.broadcast %c15_i32_68 : i32 to vector<8x512xi32>
    %136 = arith.cmpi slt, %102, %135 : vector<8x512xi32>
    %c1_i32_69 = arith.constant 1 : i32
    %137 = vector.broadcast %c1_i32_69 : i32 to vector<8x512xi32>
    %138 = arith.cmpi sge, %98, %137 : vector<8x512xi32>
    %139 = arith.andi %136, %138 : vector<8x512xi1>
    %cst_70 = arith.constant 0.000000e+00 : f32
    %140 = vector.broadcast %cst_70 : f32 to vector<8x512xf32>
    %141 = arith.select %139, %134, %140 : vector<8x512xi1>, vector<8x512xf32>
    %c496_i32_71 = arith.constant 496 : i32
    %142 = tpu.dynamic_rotate %91 by %c496_i32_71 dim 1 : vector<8x512xf32>, i32 -> vector<8x512xf32>
    %c15_i32_72 = arith.constant 15 : i32
    %143 = vector.broadcast %c15_i32_72 : i32 to vector<8x512xi32>
    %144 = arith.cmpi slt, %102, %143 : vector<8x512xi32>
    %cst_73 = arith.constant 0.000000e+00 : f32
    %145 = vector.broadcast %cst_73 : f32 to vector<8x512xf32>
    %146 = arith.select %144, %142, %145 : vector<8x512xi1>, vector<8x512xf32>
    %c495_i32_74 = arith.constant 495 : i32
    %147 = tpu.dynamic_rotate %91 by %c495_i32_74 dim 1 : vector<8x512xf32>, i32 -> vector<8x512xf32>
    %c15_i32_75 = arith.constant 15 : i32
    %148 = vector.broadcast %c15_i32_75 : i32 to vector<8x512xi32>
    %149 = arith.cmpi slt, %102, %148 : vector<8x512xi32>
    %c15_i32_76 = arith.constant 15 : i32
    %150 = vector.broadcast %c15_i32_76 : i32 to vector<8x512xi32>
    %151 = arith.cmpi slt, %98, %150 : vector<8x512xi32>
    %152 = arith.andi %149, %151 : vector<8x512xi1>
    %cst_77 = arith.constant 0.000000e+00 : f32
    %153 = vector.broadcast %cst_77 : f32 to vector<8x512xf32>
    %154 = arith.select %152, %147, %153 : vector<8x512xi1>, vector<8x512xf32>
    %155 = tpu.concatenate %110, %115, %123, %128, %91, %133, %141, %146, %154 in 0 : vector<8x512xf32>, vector<8x512xf32>, vector<8x512xf32>, vector<8x512xf32>, vector<8x512xf32>, vector<8x512xf32>, vector<8x512xf32>, vector<8x512xf32>, vector<8x512xf32> -> vector<72x512xf32>
    %156 = arith.truncf %155 : vector<72x512xf32> to vector<72x512xbf16>
    %cst_78 = arith.constant dense<0.000000e+00> : vector<8x512xf32>
    %157 = tpu.matmul %92, %156, %cst_78 {dimension_numbers = #tpu.dot_dimension_numbers<[1], [0], [0], [1], [0, 0, 1, 1], [], []>} : vector<8x72xbf16>, vector<72x512xbf16>, vector<8x512xf32> -> vector<8x512xf32>
    %158 = vector.broadcast %93 : vector<8x1xf32> to vector<8x512xf32>
    %159 = arith.addf %157, %158 : vector<8x512xf32>
    %cst_79 = arith.constant dense<0.000000e+00> : vector<8xf32>
    %160 = vector.multi_reduction <add>, %159, %cst_79 [1] : vector<8x512xf32> to vector<8xf32>
    %161 = vector.shape_cast %160 : vector<8xf32> to vector<8x1xf32>
    %cst_80 = arith.constant 0.001953125 : f32
    %162 = vector.broadcast %cst_80 : f32 to vector<8x1xf32>
    %163 = arith.mulf %161, %162 : vector<8x1xf32>
    %164 = vector.broadcast %163 : vector<8x1xf32> to vector<8x512xf32>
    %165 = arith.subf %159, %164 : vector<8x512xf32>
    %166 = arith.mulf %165, %165 : vector<8x512xf32>
    %cst_81 = arith.constant dense<0.000000e+00> : vector<8xf32>
    %167 = vector.multi_reduction <add>, %166, %cst_81 [1] : vector<8x512xf32> to vector<8xf32>
    %168 = vector.shape_cast %167 : vector<8xf32> to vector<8x1xf32>
    %cst_82 = arith.constant 0.001953125 : f32
    %169 = vector.broadcast %cst_82 : f32 to vector<8x1xf32>
    %170 = arith.mulf %168, %169 : vector<8x1xf32>
    %cst_83 = arith.constant 9.99999974E-6 : f32
    %171 = vector.broadcast %cst_83 : f32 to vector<8x1xf32>
    %172 = arith.addf %170, %171 : vector<8x1xf32>
    %173 = math.rsqrt %172 : vector<8x1xf32>
    %174 = arith.mulf %94, %173 : vector<8x1xf32>
    %175 = vector.broadcast %174 : vector<8x1xf32> to vector<8x512xf32>
    %176 = arith.mulf %165, %175 : vector<8x512xf32>
    %177 = vector.broadcast %95 : vector<8x1xf32> to vector<8x512xf32>
    %178 = arith.addf %176, %177 : vector<8x512xf32>
    %cst_84 = arith.constant 0.000000e+00 : f32
    %179 = vector.broadcast %cst_84 : f32 to vector<8x512xf32>
    %180 = arith.maximumf %178, %179 : vector<8x512xf32>
    %c0_85 = arith.constant 0 : index
    %c0_86 = arith.constant 0 : index
    %181 = vector.load %arg10[%c0_85, %c0_86] : memref<8x512xf32, #tpu.memory_space<vmem>>, vector<8x512xf32>
    tpu.vector_store %arg10[%c0_85, %c0_86], %180 {strides = array<i32>} : memref<8x512xf32, #tpu.memory_space<vmem>>, vector<8x512xf32>,
    return
  }
}

module attributes {stable_mosaic.version = 11 : i64} {
  func.func @_final_conv_kernel(%arg0: memref<8x512xf32, #tpu.memory_space<vmem>>, %arg1: memref<8x8xbf16, #tpu.memory_space<vmem>>, %arg2: memref<8x1xf32, #tpu.memory_space<vmem>>, %arg3: memref<8x512xf32, #tpu.memory_space<vmem>>) attributes {dimension_semantics = [], scalar_prefetch = 0 : i64, scratch_operands = 0 : i64, tpu.core_type = #tpu.core_type<tc>} {
    %c0 = arith.constant 0 : index
    %c0_0 = arith.constant 0 : index
    %0 = vector.load %arg1[%c0, %c0_0] : memref<8x8xbf16, #tpu.memory_space<vmem>>, vector<8x8xbf16>
    %c0_1 = arith.constant 0 : index
    %c0_2 = arith.constant 0 : index
    %1 = vector.load %arg0[%c0_1, %c0_2] : memref<8x512xf32, #tpu.memory_space<vmem>>, vector<8x512xf32>
    %2 = arith.truncf %1 : vector<8x512xf32> to vector<8x512xbf16>
    %cst = arith.constant dense<0.000000e+00> : vector<8x512xf32>
    %3 = tpu.matmul %0, %2, %cst {dimension_numbers = #tpu.dot_dimension_numbers<[1], [0], [0], [1], [0, 0, 1, 1], [], []>} : vector<8x8xbf16>, vector<8x512xbf16>, vector<8x512xf32> -> vector<8x512xf32>
    %c0_3 = arith.constant 0 : index
    %c0_4 = arith.constant 0 : index
    %4 = vector.load %arg2[%c0_3, %c0_4] : memref<8x1xf32, #tpu.memory_space<vmem>>, vector<8x1xf32>
    %5 = vector.broadcast %4 : vector<8x1xf32> to vector<8x512xf32>
    %6 = arith.addf %3, %5 : vector<8x512xf32>
    %c0_5 = arith.constant 0 : index
    %c0_6 = arith.constant 0 : index
    %7 = vector.load %arg3[%c0_5, %c0_6] : memref<8x512xf32, #tpu.memory_space<vmem>>, vector<8x512xf32>
    tpu.vector_store %arg3[%c0_5, %c0_6], %6 {strides = array<i32>} : memref<8x512xf32, #tpu.memory_space<vmem>>, vector<8x512xf32>,
    return
  }
}

</mosaic_0001>

<llo_original>
// kernel: unet_apply.6
$region0: #{unet_apply.6}
  #allocation0 [shape = 'u32[]', space=smem, size = 0x4, offset = 0x4, fixed_abs, tag = 'smem constant byte address 0x4 - core index']
  #allocation1 [shape = 'u32[144,128]{1,0:T(1,128)}', space=vmem, size = 0x12000, scoped, tag = 'internal scratch']
  %s0 = inlined_call_operand.hbm [shape: f32[8,512], index: 0, kind: input, shape index: {}]
  %s1 = inlined_call_operand.hbm [shape: bf16[8,72], index: 1, kind: input, shape index: {}]
  %s2 = inlined_call_operand.hbm [shape: f32[8,1], index: 2, kind: input, shape index: {}]
  %s3 = inlined_call_operand.hbm [shape: f32[8,1], index: 3, kind: input, shape index: {}]
  %s4 = inlined_call_operand.hbm [shape: f32[8,1], index: 4, kind: input, shape index: {}]
  %s5 = inlined_call_operand.hbm [shape: bf16[8,72], index: 5, kind: input, shape index: {}]
  %s6 = inlined_call_operand.hbm [shape: f32[8,1], index: 6, kind: input, shape index: {}]
  %s7 = inlined_call_operand.hbm [shape: f32[8,1], index: 7, kind: input, shape index: {}]
  %s8 = inlined_call_operand.hbm [shape: f32[8,1], index: 8, kind: input, shape index: {}]
  %s9 = inlined_call_operand.hbm [shape: f32[8,512], index: 9, kind: output, shape index: {}]
  %s10 = sld [smem:[#allocation0]]
  $region82: #{unet_apply.6} parent=0
    _
  %s12 = ssub.s32 1, %s10
  %s13 = scalar_select 0, %s12, %s10
  $region1: #{unet_apply.6} parent=0
    #allocation2 [shape = 'u8[16384]{0}', space=vmem, size = 0x4000, scoped, tag = 'input window, operand 0, single buffered']
    #allocation3 [shape = 's32[1]{0}', space=sflag, size = 0x4, scoped, tag = 'scoped memory for unet_apply.6']
    #allocation4 [shape = 's32[1]{0}', space=sflag, size = 0x4, scoped, tag = 'scoped memory for unet_apply.6']
    #allocation5 [shape = 'u8[2048]{0}', space=vmem, size = 0x800, scoped, tag = 'input window, operand 1, single buffered']
    #allocation6 [shape = 's32[1]{0}', space=sflag, size = 0x4, scoped, tag = 'scoped memory for unet_apply.6']
    #allocation7 [shape = 'u8[4096]{0}', space=vmem, size = 0x1000, scoped, tag = 'input window, operand 2, single buffered']
    #allocation8 [shape = 'u8[4096]{0}', space=vmem, size = 0x1000, scoped, tag = 'input window, operand 3, single buffered']
    #allocation9 [shape = 's32[1]{0}', space=sflag, size = 0x4, scoped, tag = 'scoped memory for unet_apply.6']
    #allocation10 [shape = 'u8[4096]{0}', space=vmem, size = 0x1000, scoped, tag = 'input window, operand 4, single buffered']
    #allocation11 [shape = 'u8[2048]{0}', space=vmem, size = 0x800, scoped, tag = 'input window, operand 5, single buffered']
    #allocation12 [shape = 's32[1]{0}', space=sflag, size = 0x4, scoped, tag = 'scoped memory for unet_apply.6']
    #allocation13 [shape = 'u8[4096]{0}', space=vmem, size = 0x1000, scoped, tag = 'input window, operand 6, single buffered']
    #allocation14 [shape = 'u8[4096]{0}', space=vmem, size = 0x1000, scoped, tag = 'input window, operand 7, single buffered']
    #allocation15 [shape = 's32[1]{0}', space=sflag, size = 0x4, scoped, tag = 'scoped memory for unet_apply.6']
    #allocation16 [shape = 'u8[4096]{0}', space=vmem, size = 0x1000, scoped, tag = 'input window, operand 8, single buffered']
    #allocation17 [shape = 'u8[16384]{0}', space=vmem, size = 0x4000, scoped, tag = 'output window, operand 0, single buffered']
    %14 = vsyncpa [#allocation3], 0
    %15 = vsyncpa [#allocation6], 0
    %16 = vsyncpa [#allocation9], 0
    %17 = vsyncpa [#allocation12], 0
    %18 = vsyncpa [#allocation15], 0
    %19 = vsyncpa [#allocation4], 0
    // Predicated region
    $region2: #{unet_apply.6} parent=1 // pred_check
      _
    $region3: #{unet_apply.6} parent=1 // pred_check_branch
      %21 = sbr.rel (0) target = $region5
    $region4: #{unet_apply.6} parent=1 // pred_region
      %s23 = ssub.s32 512, 512
      %24 = vsyncadd [#allocation3], %s23
      %s26 = sshll.u32 [#allocation2], 4
      %s27 = int_to_ptr.vmem [resolvable:$true] %s26
      %29 = dma.hbm_to_vmem [thread:$0]  %s0, 512, %s27, [#allocation3]
    $region5: #{unet_apply.6} parent=1 // pred_fallthru
      _
    // Predicated region
    $region6: #{unet_apply.6} parent=1 // pred_check
      _
    $region7: #{unet_apply.6} parent=1 // pred_check_branch
      %31 = sbr.rel (0) target = $region9
    $region8: #{unet_apply.6} parent=1 // pred_region
      %s33 = ssub.s32 64, 64
      %34 = vsyncadd [#allocation6], %s33
      %s36 = sshll.u32 [#allocation5], 4
      %s37 = int_to_ptr.vmem [resolvable:$true] %s36
      %39 = dma.hbm_to_vmem [thread:$0]  %s1, 64, %s37, [#allocation6]
    $region9: #{unet_apply.6} parent=1 // pred_fallthru
      _
    // Predicated region
    $region10: #{unet_apply.6} parent=1 // pred_check
      _
    $region11: #{unet_apply.6} parent=1 // pred_check_branch
      %41 = sbr.rel (0) target = $region13
    $region12: #{unet_apply.6} parent=1 // pred_region
      %s43 = ssub.s32 128, 128
      %44 = vsyncadd [#allocation6], %s43
      %s46 = sshll.u32 [#allocation7], 4
      %s47 = int_to_ptr.vmem [resolvable:$true] %s46
      %49 = dma.hbm_to_vmem [thread:$0]  %s2, 128, %s47, [#allocation6]
    $region13: #{unet_apply.6} parent=1 // pred_fallthru
      _
    // Predicated region
    $region14: #{unet_apply.6} parent=1 // pred_check
      _
    $region15: #{unet_apply.6} parent=1 // pred_check_branch
      %51 = sbr.rel (0) target = $region17
    $region16: #{unet_apply.6} parent=1 // pred_region
      %s53 = ssub.s32 128, 128
      %54 = vsyncadd [#allocation9], %s53
      %s56 = sshll.u32 [#allocation8], 4
      %s57 = int_to_ptr.vmem [resolvable:$true] %s56
      %59 = dma.hbm_to_vmem [thread:$0]  %s3, 128, %s57, [#allocation9]
    $region17: #{unet_apply.6} parent=1 // pred_fallthru
      _
    // Predicated region
    $region18: #{unet_apply.6} parent=1 // pred_check
      _
    $region19: #{unet_apply.6} parent=1 // pred_check_branch
      %61 = sbr.rel (0) target = $region21
    $region20: #{unet_apply.6} parent=1 // pred_region
      %s63 = ssub.s32 128, 128
      %64 = vsyncadd [#allocation9], %s63
      %s66 = sshll.u32 [#allocation10], 4
      %s67 = int_to_ptr.vmem [resolvable:$true] %s66
      %69 = dma.hbm_to_vmem [thread:$0]  %s4, 128, %s67, [#allocation9]
    $region21: #{unet_apply.6} parent=1 // pred_fallthru
      _
    // Predicated region
    $region22: #{unet_apply.6} parent=1 // pred_check
      _
    $region23: #{unet_apply.6} parent=1 // pred_check_branch
      %71 = sbr.rel (0) target = $region25
    $region24: #{unet_apply.6} parent=1 // pred_region
      %s73 = ssub.s32 64, 64
      %74 = vsyncadd [#allocation12], %s73
      %s76 = sshll.u32 [#allocation11], 4
      %s77 = int_to_ptr.vmem [resolvable:$true] %s76
      %79 = dma.hbm_to_vmem [thread:$0]  %s5, 64, %s77, [#allocation12]
    $region25: #{unet_apply.6} parent=1 // pred_fallthru
      _
    // Predicated region
    $region26: #{unet_apply.6} parent=1 // pred_check
      _
    $region27: #{unet_apply.6} parent=1 // pred_check_branch
      %81 = sbr.rel (0) target = $region29
    $region28: #{unet_apply.6} parent=1 // pred_region
      %s83 = ssub.s32 128, 128
      %84 = vsyncadd [#allocation12], %s83
      %s86 = sshll.u32 [#allocation13], 4
      %s87 = int_to_ptr.vmem [resolvable:$true] %s86
      %89 = dma.hbm_to_vmem [thread:$0]  %s6, 128, %s87, [#allocation12]
    $region29: #{unet_apply.6} parent=1 // pred_fallthru
      _
    // Predicated region
    $region30: #{unet_apply.6} parent=1 // pred_check
      _
    $region31: #{unet_apply.6} parent=1 // pred_check_branch
      %91 = sbr.rel (0) target = $region33
    $region32: #{unet_apply.6} parent=1 // pred_region
      %s93 = ssub.s32 128, 128
      %94 = vsyncadd [#allocation15], %s93
      %s96 = sshll.u32 [#allocation14], 4
      %s97 = int_to_ptr.vmem [resolvable:$true] %s96
      %99 = dma.hbm_to_vmem [thread:$0]  %s7, 128, %s97, [#allocation15]
    $region33: #{unet_apply.6} parent=1 // pred_fallthru
      _
    // Predicated region
    $region34: #{unet_apply.6} parent=1 // pred_check
      _
    $region35: #{unet_apply.6} parent=1 // pred_check_branch
      %101 = sbr.rel (0) target = $region37
    $region36: #{unet_apply.6} parent=1 // pred_region
      %s103 = ssub.s32 128, 128
      %104 = vsyncadd [#allocation15], %s103
      %s106 = sshll.u32 [#allocation16], 4
      %s107 = int_to_ptr.vmem [resolvable:$true] %s106
      %109 = dma.hbm_to_vmem [thread:$0]  %s8, 128, %s107, [#allocation15]
    $region37: #{unet_apply.6} parent=1 // pred_fallthru
      _
    // Predicated region
    $region38: #{unet_apply.6} parent=1 // pred_check
      _
    $region39: #{unet_apply.6} parent=1 // pred_check_branch
      %111 = sbr.rel (0) target = $region41
    $region40: #{unet_apply.6} parent=1 // pred_region
      %112 = dma.done [#allocation3], 512
    $region41: #{unet_apply.6} parent=1 // pred_fallthru
      _
    // Predicated region
    $region42: #{unet_apply.6} parent=1 // pred_check
      _
    $region43: #{unet_apply.6} parent=1 // pred_check_branch
      %114 = sbr.rel (0) target = $region45
    $region44: #{unet_apply.6} parent=1 // pred_region
      %115 = dma.done [#allocation6], 64
    $region45: #{unet_apply.6} parent=1 // pred_fallthru
      _
    // Predicated region
    $region46: #{unet_apply.6} parent=1 // pred_check
      _
    $region47: #{unet_apply.6} parent=1 // pred_check_branch
      %117 = sbr.rel (0) target = $region49
    $region48: #{unet_apply.6} parent=1 // pred_region
      %118 = dma.done [#allocation6], 128
    $region49: #{unet_apply.6} parent=1 // pred_fallthru
      _
    // Predicated region
    $region50: #{unet_apply.6} parent=1 // pred_check
      _
    $region51: #{unet_apply.6} parent=1 // pred_check_branch
      %120 = sbr.rel (0) target = $region53
    $region52: #{unet_apply.6} parent=1 // pred_region
      %121 = dma.done [#allocation9], 128
    $region53: #{unet_apply.6} parent=1 // pred_fallthru
      _
    // Predicated region
    $region54: #{unet_apply.6} parent=1 // pred_check
      _
    $region55: #{unet_apply.6} parent=1 // pred_check_branch
      %123 = sbr.rel (0) target = $region57
    $region56: #{unet_apply.6} parent=1 // pred_region
      %124 = dma.done [#allocation9], 128
    $region57: #{unet_apply.6} parent=1 // pred_fallthru
      _
    // Predicated region
    $region58: #{unet_apply.6} parent=1 // pred_check
      _
    $region59: #{unet_apply.6} parent=1 // pred_check_branch
      %126 = sbr.rel (0) target = $region61
    $region60: #{unet_apply.6} parent=1 // pred_region
      %127 = dma.done [#allocation12], 64
    $region61: #{unet_apply.6} parent=1 // pred_fallthru
      _
    // Predicated region
    $region62: #{unet_apply.6} parent=1 // pred_check
      _
    $region63: #{unet_apply.6} parent=1 // pred_check_branch
      %129 = sbr.rel (0) target = $region65
    $region64: #{unet_apply.6} parent=1 // pred_region
      %130 = dma.done [#allocation12], 128
    $region65: #{unet_apply.6} parent=1 // pred_fallthru
      _
    // Predicated region
    $region66: #{unet_apply.6} parent=1 // pred_check
      _
    $region67: #{unet_apply.6} parent=1 // pred_check_branch
      %132 = sbr.rel (0) target = $region69
    $region68: #{unet_apply.6} parent=1 // pred_region
      %133 = dma.done [#allocation15], 128
    $region69: #{unet_apply.6} parent=1 // pred_fallthru
      _
    // Predicated region
    $region70: #{unet_apply.6} parent=1 // pred_check
      _
    $region71: #{unet_apply.6} parent=1 // pred_check_branch
      %135 = sbr.rel (0) target = $region73
    $region72: #{unet_apply.6} parent=1 // pred_region
      %136 = dma.done [#allocation15], 128
    $region73: #{unet_apply.6} parent=1 // pred_fallthru
      _
    %v138 = vld [vmem:[#allocation2] sm:$0xff]
    %v139 = vld [vmem:[#allocation2 + $0x8] sm:$0xff]
    %v140 = vld [vmem:[#allocation2 + $0x10] sm:$0xff]
    %v141 = vld [vmem:[#allocation2 + $0x18] sm:$0xff]
    %v142 = vld [vmem:[#allocation5] sm:$0xf]
    %v143 = vld [vmem:[#allocation7] sm:$0xff]
    %v144 = vld [vmem:[#allocation8] sm:$0xff]
    %v145 = vld [vmem:[#allocation10] sm:$0xff]
    %v146 = vlaneseq
    %v147 = vand.u32 %v146, 127
    %v148 = vadd.s32 %v147, 128
    %v149 = vadd.s32 %v147, 256
    %v150 = vadd.s32 %v147, 384
    %v151 = vand.u32 %v147, 15
    %v152 = vand.u32 %v148, 15
    %v153 = vand.u32 %v149, 15
    %v154 = vand.u32 %v150, 15
    %v155 = vshra.s32 %v147, 4
    %v156 = vshra.s32 %v148, 4
    %v157 = vshra.s32 %v149, 4
    %v158 = vshra.s32 %v150, 4
    %v159 = vand.u32 %v155, 15
    %v160 = vand.u32 %v156, 15
    %v161 = vand.u32 %v157, 15
    %v162 = vand.u32 %v158, 15
    %163 = vrot.lane.b32.xlu0 %v138, 17
    %v164 = vpop.permute.xlu0 %163
    %165 = vrot.lane.b32.xlu0 %v139, 17
    %v166 = vpop.permute.xlu0 %165
    %167 = vrot.lane.b32.xlu0 %v140, 17
    %v168 = vpop.permute.xlu0 %167
    %169 = vrot.lane.b32.xlu0 %v141, 17
    %v170 = vpop.permute.xlu0 %169
    %vm171 = vcmp.lt.s32.totalorder %v147, 17
    %v172 = vsel %vm171, %v168, %v170
    %v173 = vsel %vm171, %v166, %v168
    %v174 = vsel %vm171, %v164, %v166
    %v175 = vsel %vm171, %v170, %v164
    %vm176 = vcmp.ge.s32.totalorder %v159, 1
    %vm177 = vcmp.ge.s32.totalorder %v160, 1
    %vm178 = vcmp.ge.s32.totalorder %v161, 1
    %vm179 = vcmp.ge.s32.totalorder %v162, 1
    %vm180 = vcmp.ge.s32.totalorder %v151, 1
    %vm181 = vcmp.ge.s32.totalorder %v152, 1
    %vm182 = vcmp.ge.s32.totalorder %v153, 1
    %vm183 = vcmp.ge.s32.totalorder %v154, 1
    %vm184 = vmand %vm176, %vm180
    %vm185 = vmand %vm177, %vm181
    %vm186 = vmand %vm178, %vm182
    %vm187 = vmand %vm179, %vm183
    %v188 = vsel %vm184, %v175, 0.0
    %v189 = vsel %vm185, %v174, 0.0
    %v190 = vsel %vm186, %v173, 0.0
    %v191 = vsel %vm187, %v172, 0.0
    %192 = vrot.lane.b32.xlu0 %v138, 16
    %v193 = vpop.permute.xlu0 %192
    %194 = vrot.lane.b32.xlu0 %v139, 16
    %v195 = vpop.permute.xlu0 %194
    %196 = vrot.lane.b32.xlu0 %v140, 16
    %v197 = vpop.permute.xlu0 %196
    %198 = vrot.lane.b32.xlu0 %v141, 16
    %v199 = vpop.permute.xlu0 %198
    %vm200 = vcmp.lt.s32.totalorder %v147, 16
    %v201 = vsel %vm200, %v197, %v199
    %v202 = vsel %vm200, %v195, %v197
    %v203 = vsel %vm200, %v193, %v195
    %v204 = vsel %vm200, %v199, %v193
    %v205 = vsel %vm176, %v204, 0.0
    %v206 = vsel %vm177, %v203, 0.0
    %v207 = vsel %vm178, %v202, 0.0
    %v208 = vsel %vm179, %v201, 0.0
    %209 = vrot.lane.b32.xlu0 %v138, 15
    %v210 = vpop.permute.xlu0 %209
    %211 = vrot.lane.b32.xlu0 %v139, 15
    %v212 = vpop.permute.xlu0 %211
    %213 = vrot.lane.b32.xlu0 %v140, 15
    %v214 = vpop.permute.xlu0 %213
    %215 = vrot.lane.b32.xlu0 %v141, 15
    %v216 = vpop.permute.xlu0 %215
    %vm217 = vcmp.lt.s32.totalorder %v147, 15
    %v218 = vsel %vm217, %v214, %v216
    %v219 = vsel %vm217, %v212, %v214
    %v220 = vsel %vm217, %v210, %v212
    %v221 = vsel %vm217, %v216, %v210
    %vm222 = vcmp.lt.s32.totalorder %v151, 15
    %vm223 = vcmp.lt.s32.totalorder %v152, 15
    %vm224 = vcmp.lt.s32.totalorder %v153, 15
    %vm225 = vcmp.lt.s32.totalorder %v154, 15
    %vm226 = vmand %vm176, %vm222
    %vm227 = vmand %vm177, %vm223
    %vm228 = vmand %vm178, %vm224
    %vm229 = vmand %vm179, %vm225
    %v230 = vsel %vm226, %v221, 0.0
    %v231 = vsel %vm227, %v220, 0.0
    %v232 = vsel %vm228, %v219, 0.0
    %v233 = vsel %vm229, %v218, 0.0
    %234 = vrot.lane.b32.xlu0 %v138, 1
    %v235 = vpop.permute.xlu0 %234
    %236 = vrot.lane.b32.xlu0 %v139, 1
    %v237 = vpop.permute.xlu0 %236
    %238 = vrot.lane.b32.xlu0 %v140, 1
    %v239 = vpop.permute.xlu0 %238
    %240 = vrot.lane.b32.xlu0 %v141, 1
    %v241 = vpop.permute.xlu0 %240
    %vm242 = vcmp.lt.s32.totalorder %v147, 1
    %v243 = vsel %vm242, %v239, %v241
    %v244 = vsel %vm242, %v237, %v239
    %v245 = vsel %vm242, %v235, %v237
    %v246 = vsel %vm242, %v241, %v235
    %v247 = vsel %vm180, %v246, 0.0
    %v248 = vsel %vm181, %v245, 0.0
    %v249 = vsel %vm182, %v244, 0.0
    %v250 = vsel %vm183, %v243, 0.0
    %251 = vrot.lane.b32.xlu0 %v138, 127
    %v252 = vpop.permute.xlu0 %251
    %253 = vrot.lane.b32.xlu0 %v139, 127
    %v254 = vpop.permute.xlu0 %253
    %255 = vrot.lane.b32.xlu0 %v140, 127
    %v256 = vpop.permute.xlu0 %255
    %257 = vrot.lane.b32.xlu0 %v141, 127
    %v258 = vpop.permute.xlu0 %257
    %vm259 = vcmp.lt.s32.totalorder %v147, 127
    %v260 = vsel %vm259, %v256, %v258
    %v261 = vsel %vm259, %v254, %v256
    %v262 = vsel %vm259, %v252, %v254
    %v263 = vsel %vm259, %v258, %v252
    %v264 = vsel %vm222, %v262, 0.0
    %v265 = vsel %vm223, %v261, 0.0
    %v266 = vsel %vm224, %v260, 0.0
    %v267 = vsel %vm225, %v263, 0.0
    %268 = vrot.lane.b32.xlu0 %v138, 113
    %v269 = vpop.permute.xlu0 %268
    %270 = vrot.lane.b32.xlu0 %v139, 113
    %v271 = vpop.permute.xlu0 %270
    %272 = vrot.lane.b32.xlu0 %v140, 113
    %v273 = vpop.permute.xlu0 %272
    %274 = vrot.lane.b32.xlu0 %v141, 113
    %v275 = vpop.permute.xlu0 %274
    %vm276 = vcmp.lt.s32.totalorder %v147, 113
    %v277 = vsel %vm276, %v273, %v275
    %v278 = vsel %vm276, %v271, %v273
    %v279 = vsel %vm276, %v269, %v271
    %v280 = vsel %vm276, %v275, %v269
    %vm281 = vcmp.lt.s32.totalorder %v159, 15
    %vm282 = vcmp.lt.s32.totalorder %v160, 15
    %vm283 = vcmp.lt.s32.totalorder %v161, 15
    %vm284 = vcmp.lt.s32.totalorder %v162, 15
    %vm285 = vmand %vm281, %vm180
    %vm286 = vmand %vm282, %vm181
    %vm287 = vmand %vm283, %vm182
    %vm288 = vmand %vm284, %vm183
    %v289 = vsel %vm285, %v279, 0.0
    %v290 = vsel %vm286, %v278, 0.0
    %v291 = vsel %vm287, %v277, 0.0
    %v292 = vsel %vm288, %v280, 0.0
    %293 = vrot.lane.b32.xlu0 %v138, 112
    %v294 = vpop.permute.xlu0 %293
    %295 = vrot.lane.b32.xlu0 %v139, 112
    %v296 = vpop.permute.xlu0 %295
    %297 = vrot.lane.b32.xlu0 %v140, 112
    %v298 = vpop.permute.xlu0 %297
    %299 = vrot.lane.b32.xlu0 %v141, 112
    %v300 = vpop.permute.xlu0 %299
    %vm301 = vcmp.lt.s32.totalorder %v147, 112
    %v302 = vsel %vm301, %v298, %v300
    %v303 = vsel %vm301, %v296, %v298
    %v304 = vsel %vm301, %v294, %v296
    %v305 = vsel %vm301, %v300, %v294
    %v306 = vsel %vm281, %v304, 0.0
    %v307 = vsel %vm282, %v303, 0.0
    %v308 = vsel %vm283, %v302, 0.0
    %v309 = vsel %vm284, %v305, 0.0
    %310 = vrot.lane.b32.xlu0 %v138, 111
    %v311 = vpop.permute.xlu0 %310
    %312 = vrot.lane.b32.xlu0 %v139, 111
    %v313 = vpop.permute.xlu0 %312
    %314 = vrot.lane.b32.xlu0 %v140, 111
    %v315 = vpop.permute.xlu0 %314
    %316 = vrot.lane.b32.xlu0 %v141, 111
    %v317 = vpop.permute.xlu0 %316
    %vm318 = vcmp.lt.s32.totalorder %v147, 111
    %v319 = vsel %vm318, %v315, %v317
    %v320 = vsel %vm318, %v313, %v315
    %v321 = vsel %vm318, %v311, %v313
    %v322 = vsel %vm318, %v317, %v311
    %vm323 = vmand %vm281, %vm222
    %vm324 = vmand %vm282, %vm223
    %vm325 = vmand %vm283, %vm224
    %vm326 = vmand %vm284, %vm225
    %v327 = vsel %vm323, %v321, 0.0
    %v328 = vsel %vm324, %v320, 0.0
    %v329 = vsel %vm325, %v319, 0.0
    %v330 = vsel %vm326, %v322, 0.0
    %v331 = vpack.c.bf16 %v205, %v188
    %v332 = vpack.c.bf16 %v206, %v189
    %v333 = vpack.c.bf16 %v207, %v190
    %v334 = vpack.c.bf16 %v208, %v191
    %v335 = vpack.c.bf16 %v247, %v230
    %v336 = vpack.c.bf16 %v248, %v231
    %v337 = vpack.c.bf16 %v249, %v232
    %v338 = vpack.c.bf16 %v250, %v233
    %v339 = vpack.c.bf16 %v264, %v138
    %v340 = vpack.c.bf16 %v265, %v139
    %v341 = vpack.c.bf16 %v266, %v140
    %v342 = vpack.c.bf16 %v267, %v141
    %v343 = vpack.c.bf16 %v306, %v289
    %v344 = vpack.c.bf16 %v307, %v290
    %v345 = vpack.c.bf16 %v308, %v291
    %v346 = vpack.c.bf16 %v309, %v292
    %v347 = vpack.c.bf16 %v327, %v327
    %v348 = vpack.c.bf16 %v328, %v328
    %v349 = vpack.c.bf16 %v329, %v329
    %v350 = vpack.c.bf16 %v330, %v330
    %352 = vset.pattern.permute.xlu0 0
    %353 = vperm.xlu0 %352, %v143
    %v354 = vpop.permute.xlu0 %353
    %vm356 = vcmask 588800
    %v358 = vsel %vm356, %v142, 0
    %vm360 = vcmask 1043456
    %v362 = vsel %vm360, %v347, 0
    %v365 = vsel %vm360, %v348, 0
    %v368 = vsel %vm360, %v349, 0
    %v371 = vsel %vm360, %v350, 0
    %373 = vmatprep.subr.bf16.mxu0 %v332
    %374 = vmatpush1.bf16.msra.mxu0 %v331
    %375 = vmatprep.subr.bf16.mxu0 %v336
    %376 = vmatpush1.bf16.msra.mxu0 %v335
    %377 = vmatprep.subr.bf16.mxu0 %v340
    %378 = vmatpush1.bf16.msra.mxu0 %v339
    %379 = vmatprep.subr.bf16.mxu0 %v344
    %380 = vmatpush1.bf16.msra.mxu0 %v343
    %381 = vmatprep.subr.bf16.mxu0 %v365
    %382 = vmatpush1.bf16.msra.mxu0 %v362
    %383 = vmatprep.subr.bf16.mxu0 0
    %384 = vmatpush1.bf16.msra.mxu0 0
    %385 = vmatprep.subr.bf16.mxu0 0
    %386 = vmatpush1.bf16.msra.mxu0 0
    %387 = vmatprep.subr.bf16.mxu0 0
    %388 = vmatpush1.bf16.msra.mxu0 0
    %389 = vmatprep.subr.bf16.mxu0 0
    %390 = vmatpush1.bf16.msra.mxu0 0
    %391 = vmatprep.subr.bf16.mxu0 0
    %392 = vmatpush1.bf16.msra.mxu0 0
    %393 = vmatprep.subr.bf16.mxu0 0
    %394 = vmatpush1.bf16.msra.mxu0 0
    %395 = vmatprep.subr.bf16.mxu0 0
    %396 = vmatpush1.bf16.msra.mxu0 0
    %397 = vmatprep.subr.bf16.mxu0 0
    %398 = vmatpush1.bf16.msra.mxu0 0
    %399 = vmatprep.subr.bf16.mxu0 0
    %400 = vmatpush1.bf16.msra.mxu0 0
    %401 = vmatprep.subr.bf16.mxu0 0
    %402 = vmatpush1.bf16.msra.mxu0 0
    %403 = vmatprep.subr.bf16.mxu0 0
    %404 = vmatpush1.bf16.msra.mxu0 0
    %405 = vmatprep.mubr.bf16.mxu0 0
    %406 = vmatmul.mubr.bf16.gmra.mrb[0].mxu0 %v358
    %v407 = vpop.f32.mrb[0].mxu0
    %v408 = vadd.f32 %v354, %v407
    %v409 = vpop.f32.mrb[0].mxu0
    %v410 = vadd.f32 %v354, %v409
    %v411 = vpop.f32.mrb[0].mxu0
    %v412 = vpop.f32.mrb[0].mxu0
    %413 = vdwg.mxu0
    %414 = vmatprep.subr.bf16.mxu0 %v334
    %415 = vmatpush1.bf16.msra.mxu0 %v333
    %416 = vmatprep.subr.bf16.mxu0 %v338
    %417 = vmatpush1.bf16.msra.mxu0 %v337
    %418 = vmatprep.subr.bf16.mxu0 %v342
    %419 = vmatpush1.bf16.msra.mxu0 %v341
    %420 = vmatprep.subr.bf16.mxu0 %v346
    %421 = vmatpush1.bf16.msra.mxu0 %v345
    %422 = vmatprep.subr.bf16.mxu0 %v371
    %423 = vmatpush1.bf16.msra.mxu0 %v368
    %424 = vmatprep.subr.bf16.mxu0 0
    %425 = vmatpush1.bf16.msra.mxu0 0
    %426 = vmatprep.subr.bf16.mxu0 0
    %427 = vmatpush1.bf16.msra.mxu0 0
    %428 = vmatprep.subr.bf16.mxu0 0
    %429 = vmatpush1.bf16.msra.mxu0 0
    %430 = vmatprep.subr.bf16.mxu0 0
    %431 = vmatpush1.bf16.msra.mxu0 0
    %432 = vmatprep.subr.bf16.mxu0 0
    %433 = vmatpush1.bf16.msra.mxu0 0
    %434 = vmatprep.subr.bf16.mxu0 0
    %435 = vmatpush1.bf16.msra.mxu0 0
    %436 = vmatprep.subr.bf16.mxu0 0
    %437 = vmatpush1.bf16.msra.mxu0 0
    %438 = vmatprep.subr.bf16.mxu0 0
    %439 = vmatpush1.bf16.msra.mxu0 0
    %440 = vmatprep.subr.bf16.mxu0 0
    %441 = vmatpush1.bf16.msra.mxu0 0
    %442 = vmatprep.subr.bf16.mxu0 0
    %443 = vmatpush1.bf16.msra.mxu0 0
    %444 = vmatprep.subr.bf16.mxu0 0
    %445 = vmatpush1.bf16.msra.mxu0 0
    %446 = vmatprep.mubr.bf16.mxu0 0
    %447 = vmatmul.mubr.bf16.gmra.mrb[0].mxu0 %v358
    %v448 = vpop.f32.mrb[0].mxu0
    %v449 = vadd.f32 %v354, %v448
    %v450 = vpop.f32.mrb[0].mxu0
    %v451 = vadd.f32 %v354, %v450
    %v452 = vpop.f32.mrb[0].mxu0
    %v453 = vpop.f32.mrb[0].mxu0
    %454 = vdwg.mxu0
    %v455 = vadd.f32 %v408, %v410
    %v456 = vadd.f32 %v455, %v449
    %v457 = vadd.f32 %v456, %v451
    %458 = vadd.xlane.f32.xlu0 %v457
    %v459 = vpop.xlane.xlu0 %458
    %v460 = vmul.f32 %v459, 0.001953125
    %v461 = vsub.f32 %v408, %v460
    %v462 = vsub.f32 %v410, %v460
    %v463 = vsub.f32 %v449, %v460
    %v464 = vsub.f32 %v451, %v460
    %v465 = vmul.f32 %v461, %v461
    %v466 = vmul.f32 %v462, %v462
    %v467 = vmul.f32 %v463, %v463
    %v468 = vmul.f32 %v464, %v464
    %v469 = vadd.f32 %v465, %v466
    %v470 = vadd.f32 %v469, %v467
    %v471 = vadd.f32 %v470, %v468
    %472 = vadd.xlane.f32.xlu0 %v471
    %v473 = vpop.xlane.xlu0 %472
    %v474 = vmul.f32 %v473, 0.001953125
    %v475 = vadd.f32 %v474, 1e-05
    %v476 = vrsqrt.pop %v475
    %v477 = vmul.f32 %v144, %v476
    %479 = vset.pattern.permute.xlu0 0
    %480 = vperm.xlu0 %479, %v477
    %v481 = vpop.permute.xlu0 %480
    %v483 = vmul.f32 %v461, %v481
    %v484 = vmul.f32 %v462, %v481
    %v485 = vmul.f32 %v463, %v481
    %v486 = vmul.f32 %v464, %v481
    %488 = vset.pattern.permute.xlu0 0
    %489 = vperm.xlu0 %488, %v145
    %v490 = vpop.permute.xlu0 %489
    %v492 = vadd.f32 %v483, %v490
    %v493 = vadd.f32 %v484, %v490
    %v494 = vadd.f32 %v485, %v490
    %v495 = vadd.f32 %v486, %v490
    %v496 = vmax.f32 %v492, 0.0
    %v497 = vmax.f32 %v493, 0.0
    %v498 = vmax.f32 %v494, 0.0
    %v499 = vmax.f32 %v495, 0.0
    %v500 = vld [vmem:[#allocation11] sm:$0xf]
    %v501 = vld [vmem:[#allocation13] sm:$0xff]
    %v502 = vld [vmem:[#allocation14] sm:$0xff]
    %v503 = vld [vmem:[#allocation16] sm:$0xff]
    %504 = vrot.lane.b32.xlu0 %v496, 17
    %v505 = vpop.permute.xlu0 %504
    %506 = vrot.lane.b32.xlu0 %v497, 17
    %v507 = vpop.permute.xlu0 %506
    %508 = vrot.lane.b32.xlu0 %v498, 17
    %v509 = vpop.permute.xlu0 %508
    %510 = vrot.lane.b32.xlu0 %v499, 17
    %v511 = vpop.permute.xlu0 %510
    %v512 = vsel %vm171, %v509, %v511
    %v513 = vsel %vm171, %v507, %v509
    %v514 = vsel %vm171, %v505, %v507
    %v515 = vsel %vm171, %v511, %v505
    %v516 = vsel %vm184, %v515, 0.0
    %v517 = vsel %vm185, %v514, 0.0
    %v518 = vsel %vm186, %v513, 0.0
    %v519 = vsel %vm187, %v512, 0.0
    %520 = vrot.lane.b32.xlu0 %v496, 16
    %v521 = vpop.permute.xlu0 %520
    %522 = vrot.lane.b32.xlu0 %v497, 16
    %v523 = vpop.permute.xlu0 %522
    %524 = vrot.lane.b32.xlu0 %v498, 16
    %v525 = vpop.permute.xlu0 %524
    %526 = vrot.lane.b32.xlu0 %v499, 16
    %v527 = vpop.permute.xlu0 %526
    %v528 = vsel %vm200, %v525, %v527
    %v529 = vsel %vm200, %v523, %v525
    %v530 = vsel %vm200, %v521, %v523
    %v531 = vsel %vm200, %v527, %v521
    %v532 = vsel %vm176, %v531, 0.0
    %v533 = vsel %vm177, %v530, 0.0
    %v534 = vsel %vm178, %v529, 0.0
    %v535 = vsel %vm179, %v528, 0.0
    %536 = vrot.lane.b32.xlu0 %v496, 15
    %v537 = vpop.permute.xlu0 %536
    %538 = vrot.lane.b32.xlu0 %v497, 15
    %v539 = vpop.permute.xlu0 %538
    %540 = vrot.lane.b32.xlu0 %v498, 15
    %v541 = vpop.permute.xlu0 %540
    %542 = vrot.lane.b32.xlu0 %v499, 15
    %v543 = vpop.permute.xlu0 %542
    %v544 = vsel %vm217, %v541, %v543
    %v545 = vsel %vm217, %v539, %v541
    %v546 = vsel %vm217, %v537, %v539
    %v547 = vsel %vm217, %v543, %v537
    %v548 = vsel %vm226, %v547, 0.0
    %v549 = vsel %vm227, %v546, 0.0
    %v550 = vsel %vm228, %v545, 0.0
    %v551 = vsel %vm229, %v544, 0.0
    %552 = vrot.lane.b32.xlu0 %v496, 1
    %v553 = vpop.permute.xlu0 %552
    %554 = vrot.lane.b32.xlu0 %v497, 1
    %v555 = vpop.permute.xlu0 %554
    %556 = vrot.lane.b32.xlu0 %v498, 1
    %v557 = vpop.permute.xlu0 %556
    %558 = vrot.lane.b32.xlu0 %v499, 1
    %v559 = vpop.permute.xlu0 %558
    %v560 = vsel %vm242, %v557, %v559
    %v561 = vsel %vm242, %v555, %v557
    %v562 = vsel %vm242, %v553, %v555
    %v563 = vsel %vm242, %v559, %v553
    %v564 = vsel %vm180, %v563, 0.0
    %v565 = vsel %vm181, %v562, 0.0
    %v566 = vsel %vm182, %v561, 0.0
    %v567 = vsel %vm183, %v560, 0.0
    %568 = vrot.lane.b32.xlu0 %v496, 127
    %v569 = vpop.permute.xlu0 %568
    %570 = vrot.lane.b32.xlu0 %v497, 127
    %v571 = vpop.permute.xlu0 %570
    %572 = vrot.lane.b32.xlu0 %v498, 127
    %v573 = vpop.permute.xlu0 %572
    %574 = vrot.lane.b32.xlu0 %v499, 127
    %v575 = vpop.permute.xlu0 %574
    %v576 = vsel %vm259, %v573, %v575
    %v577 = vsel %vm259, %v571, %v573
    %v578 = vsel %vm259, %v569, %v571
    %v579 = vsel %vm259, %v575, %v569
    %v580 = vsel %vm222, %v578, 0.0
    %v581 = vsel %vm223, %v577, 0.0
    %v582 = vsel %vm224, %v576, 0.0
    %v583 = vsel %vm225, %v579, 0.0
    %584 = vrot.lane.b32.xlu0 %v496, 113
    %v585 = vpop.permute.xlu0 %584
    %586 = vrot.lane.b32.xlu0 %v497, 113
    %v587 = vpop.permute.xlu0 %586
    %588 = vrot.lane.b32.xlu0 %v498, 113
    %v589 = vpop.permute.xlu0 %588
    %590 = vrot.lane.b32.xlu0 %v499, 113
    %v591 = vpop.permute.xlu0 %590
    %v592 = vsel %vm276, %v589, %v591
    %v593 = vsel %vm276, %v587, %v589
    %v594 = vsel %vm276, %v585, %v587
    %v595 = vsel %vm276, %v591, %v585
    %v596 = vsel %vm285, %v594, 0.0
    %v597 = vsel %vm286, %v593, 0.0
    %v598 = vsel %vm287, %v592, 0.0
    %v599 = vsel %vm288, %v595, 0.0
    %600 = vrot.lane.b32.xlu0 %v496, 112
    %v601 = vpop.permute.xlu0 %600
    %602 = vrot.lane.b32.xlu0 %v497, 112
    %v603 = vpop.permute.xlu0 %602
    %604 = vrot.lane.b32.xlu0 %v498, 112
    %v605 = vpop.permute.xlu0 %604
    %606 = vrot.lane.b32.xlu0 %v499, 112
    %v607 = vpop.permute.xlu0 %606
    %v608 = vsel %vm301, %v605, %v607
    %v609 = vsel %vm301, %v603, %v605
    %v610 = vsel %vm301, %v601, %v603
    %v611 = vsel %vm301, %v607, %v601
    %v612 = vsel %vm281, %v610, 0.0
    %v613 = vsel %vm282, %v609, 0.0
    %v614 = vsel %vm283, %v608, 0.0
    %v615 = vsel %vm284, %v611, 0.0
    %616 = vrot.lane.b32.xlu0 %v496, 111
    %v617 = vpop.permute.xlu0 %616
    %618 = vrot.lane.b32.xlu0 %v497, 111
    %v619 = vpop.permute.xlu0 %618
    %620 = vrot.lane.b32.xlu0 %v498, 111
    %v621 = vpop.permute.xlu0 %620
    %622 = vrot.lane.b32.xlu0 %v499, 111
    %v623 = vpop.permute.xlu0 %622
    %v624 = vsel %vm318, %v621, %v623
    %v625 = vsel %vm318, %v619, %v621
    %v626 = vsel %vm318, %v617, %v619
    %v627 = vsel %vm318, %v623, %v617
    %v628 = vsel %vm323, %v626, 0.0
    %v629 = vsel %vm324, %v625, 0.0
    %v630 = vsel %vm325, %v624, 0.0
    %v631 = vsel %vm326, %v627, 0.0
    %v632 = vpack.c.bf16 %v532, %v516
    %v633 = vpack.c.bf16 %v533, %v517
    %v634 = vpack.c.bf16 %v534, %v518
    %v635 = vpack.c.bf16 %v535, %v519
    %v636 = vpack.c.bf16 %v564, %v548
    %v637 = vpack.c.bf16 %v565, %v549
    %v638 = vpack.c.bf16 %v566, %v550
    %v639 = vpack.c.bf16 %v567, %v551
    %v640 = vpack.c.bf16 %v580, %v496
    %v641 = vpack.c.bf16 %v581, %v497
    %v642 = vpack.c.bf16 %v582, %v498
    %v643 = vpack.c.bf16 %v583, %v499
    %v644 = vpack.c.bf16 %v612, %v596
    %v645 = vpack.c.bf16 %v613, %v597
    %v646 = vpack.c.bf16 %v614, %v598
    %v647 = vpack.c.bf16 %v615, %v599
    %v648 = vpack.c.bf16 %v628, %v628
    %v649 = vpack.c.bf16 %v629, %v629
    %v650 = vpack.c.bf16 %v630, %v630
    %v651 = vpack.c.bf16 %v631, %v631
    %653 = vset.pattern.permute.xlu0 0
    %654 = vperm.xlu0 %653, %v501
    %v655 = vpop.permute.xlu0 %654
    %v658 = vsel %vm356, %v500, 0
    %v661 = vsel %vm360, %v648, 0
    %v664 = vsel %vm360, %v649, 0
    %v667 = vsel %vm360, %v650, 0
    %v670 = vsel %vm360, %v651, 0
    %672 = vmatprep.subr.bf16.mxu0 %v633
    %673 = vmatpush1.bf16.msra.mxu0 %v632
    %674 = vmatprep.subr.bf16.mxu0 %v637
    %675 = vmatpush1.bf16.msra.mxu0 %v636
    %676 = vmatprep.subr.bf16.mxu0 %v641
    %677 = vmatpush1.bf16.msra.mxu0 %v640
    %678 = vmatprep.subr.bf16.mxu0 %v645
    %679 = vmatpush1.bf16.msra.mxu0 %v644
    %680 = vmatprep.subr.bf16.mxu0 %v664
    %681 = vmatpush1.bf16.msra.mxu0 %v661
    %682 = vmatprep.subr.bf16.mxu0 0
    %683 = vmatpush1.bf16.msra.mxu0 0
    %684 = vmatprep.subr.bf16.mxu0 0
    %685 = vmatpush1.bf16.msra.mxu0 0
    %686 = vmatprep.subr.bf16.mxu0 0
    %687 = vmatpush1.bf16.msra.mxu0 0
    %688 = vmatprep.subr.bf16.mxu0 0
    %689 = vmatpush1.bf16.msra.mxu0 0
    %690 = vmatprep.subr.bf16.mxu0 0
    %691 = vmatpush1.bf16.msra.mxu0 0
    %692 = vmatprep.subr.bf16.mxu0 0
    %693 = vmatpush1.bf16.msra.mxu0 0
    %694 = vmatprep.subr.bf16.mxu0 0
    %695 = vmatpush1.bf16.msra.mxu0 0
    %696 = vmatprep.subr.bf16.mxu0 0
    %697 = vmatpush1.bf16.msra.mxu0 0
    %698 = vmatprep.subr.bf16.mxu0 0
    %699 = vmatpush1.bf16.msra.mxu0 0
    %700 = vmatprep.subr.bf16.mxu0 0
    %701 = vmatpush1.bf16.msra.mxu0 0
    %702 = vmatprep.subr.bf16.mxu0 0
    %703 = vmatpush1.bf16.msra.mxu0 0
    %704 = vmatprep.mubr.bf16.mxu0 0
    %705 = vmatmul.mubr.bf16.gmra.mrb[0].mxu0 %v658
    %v706 = vpop.f32.mrb[0].mxu0
    %v707 = vadd.f32 %v655, %v706
    %v708 = vpop.f32.mrb[0].mxu0
    %v709 = vadd.f32 %v655, %v708
    %v710 = vpop.f32.mrb[0].mxu0
    %v711 = vpop.f32.mrb[0].mxu0
    %712 = vdwg.mxu0
    %713 = vmatprep.subr.bf16.mxu0 %v635
    %714 = vmatpush1.bf16.msra.mxu0 %v634
    %715 = vmatprep.subr.bf16.mxu0 %v639
    %716 = vmatpush1.bf16.msra.mxu0 %v638
    %717 = vmatprep.subr.bf16.mxu0 %v643
    %718 = vmatpush1.bf16.msra.mxu0 %v642
    %719 = vmatprep.subr.bf16.mxu0 %v647
    %720 = vmatpush1.bf16.msra.mxu0 %v646
    %721 = vmatprep.subr.bf16.mxu0 %v670
    %722 = vmatpush1.bf16.msra.mxu0 %v667
    %723 = vmatprep.subr.bf16.mxu0 0
    %724 = vmatpush1.bf16.msra.mxu0 0
    %725 = vmatprep.subr.bf16.mxu0 0
    %726 = vmatpush1.bf16.msra.mxu0 0
    %727 = vmatprep.subr.bf16.mxu0 0
    %728 = vmatpush1.bf16.msra.mxu0 0
    %729 = vmatprep.subr.bf16.mxu0 0
    %730 = vmatpush1.bf16.msra.mxu0 0
    %731 = vmatprep.subr.bf16.mxu0 0
    %732 = vmatpush1.bf16.msra.mxu0 0
    %733 = vmatprep.subr.bf16.mxu0 0
    %734 = vmatpush1.bf16.msra.mxu0 0
    %735 = vmatprep.subr.bf16.mxu0 0
    %736 = vmatpush1.bf16.msra.mxu0 0
    %737 = vmatprep.subr.bf16.mxu0 0
    %738 = vmatpush1.bf16.msra.mxu0 0
    %739 = vmatprep.subr.bf16.mxu0 0
    %740 = vmatpush1.bf16.msra.mxu0 0
    %741 = vmatprep.subr.bf16.mxu0 0
    %742 = vmatpush1.bf16.msra.mxu0 0
    %743 = vmatprep.subr.bf16.mxu0 0
    %744 = vmatpush1.bf16.msra.mxu0 0
    %745 = vmatprep.mubr.bf16.mxu0 0
    %746 = vmatmul.mubr.bf16.gmra.mrb[0].mxu0 %v658
    %v747 = vpop.f32.mrb[0].mxu0
    %v748 = vadd.f32 %v655, %v747
    %v749 = vpop.f32.mrb[0].mxu0
    %v750 = vadd.f32 %v655, %v749
    %v751 = vpop.f32.mrb[0].mxu0
    %v752 = vpop.f32.mrb[0].mxu0
    %753 = vdwg.mxu0
    %v754 = vadd.f32 %v707, %v709
    %v755 = vadd.f32 %v754, %v748
    %v756 = vadd.f32 %v755, %v750
    %757 = vadd.xlane.f32.xlu0 %v756
    %v758 = vpop.xlane.xlu0 %757
    %v759 = vmul.f32 %v758, 0.001953125
    %v760 = vsub.f32 %v707, %v759
    %v761 = vsub.f32 %v709, %v759
    %v762 = vsub.f32 %v748, %v759
    %v763 = vsub.f32 %v750, %v759
    %v764 = vmul.f32 %v760, %v760
    %v765 = vmul.f32 %v761, %v761
    %v766 = vmul.f32 %v762, %v762
    %v767 = vmul.f32 %v763, %v763
    %v768 = vadd.f32 %v764, %v765
    %v769 = vadd.f32 %v768, %v766
    %v770 = vadd.f32 %v769, %v767
    %771 = vadd.xlane.f32.xlu0 %v770
    %v772 = vpop.xlane.xlu0 %771
    %v773 = vmul.f32 %v772, 0.001953125
    %v774 = vadd.f32 %v773, 1e-05
    %v775 = vrsqrt.pop %v774
    %v776 = vmul.f32 %v502, %v775
    %778 = vset.pattern.permute.xlu0 0
    %779 = vperm.xlu0 %778, %v776
    %v780 = vpop.permute.xlu0 %779
    %v782 = vmul.f32 %v760, %v780
    %v783 = vmul.f32 %v761, %v780
    %v784 = vmul.f32 %v762, %v780
    %v785 = vmul.f32 %v763, %v780
    %787 = vset.pattern.permute.xlu0 0
    %788 = vperm.xlu0 %787, %v503
    %v789 = vpop.permute.xlu0 %788
    %v791 = vadd.f32 %v782, %v789
    %v792 = vadd.f32 %v783, %v789
    %v793 = vadd.f32 %v784, %v789
    %v794 = vadd.f32 %v785, %v789
    %v795 = vmax.f32 %v791, 0.0
    %v796 = vmax.f32 %v792, 0.0
    %v797 = vmax.f32 %v793, 0.0
    %v798 = vmax.f32 %v794, 0.0
    %799 = vst [vmem:[#allocation17] sm:$0xff] %v795
    %800 = vst [vmem:[#allocation17 + $0x8] sm:$0xff] %v796
    %801 = vst [vmem:[#allocation17 + $0x10] sm:$0xff] %v797
    %802 = vst [vmem:[#allocation17 + $0x18] sm:$0xff] %v798
    // Predicated region
    $region74: #{unet_apply.6} parent=1 // pred_check
      _
    $region75: #{unet_apply.6} parent=1 // pred_check_branch
      %804 = sbr.rel (0) target = $region77
    $region76: #{unet_apply.6} parent=1 // pred_region
      %s806 = ssub.s32 512, 512
      %807 = vsyncadd [#allocation4], %s806
      %s809 = sshll.u32 [#allocation17], 4
      %s810 = int_to_ptr.vmem [resolvable:$true] %s809
      %812 = dma.vmem_to_hbm [thread:$0]  %s810, 512, %s9, [#allocation4]
    $region77: #{unet_apply.6} parent=1 // pred_fallthru
      _
    // Predicated region
    $region78: #{unet_apply.6} parent=1 // pred_check
      _
    $region79: #{unet_apply.6} parent=1 // pred_check_branch
      %814 = sbr.rel (0) target = $region81
    $region80: #{unet_apply.6} parent=1 // pred_region
      %815 = dma.done [#allocation4], 512
    $region81: #{unet_apply.6} parent=1 // pred_fallthru
      _
    %816 = vsyncpa [#allocation3], 1
    %817 = vsyncpa [#allocation6], 1
    %818 = vsyncpa [#allocation9], 1
    %819 = vsyncpa [#allocation12], 1
    %820 = vsyncpa [#allocation15], 1
    %821 = vsyncpa [#allocation4], 1

// kernel: unet_apply.7
$region0: #{unet_apply.7}
  #allocation0 [shape = 'u32[]', space=smem, size = 0x4, offset = 0x4, fixed_abs, tag = 'smem constant byte address 0x4 - core index']
  #allocation1 [shape = 'u32[144,128]{1,0:T(1,128)}', space=vmem, size = 0x12000, scoped, tag = 'internal scratch']
  %s0 = inlined_call_operand.hbm [shape: f32[8,128], index: 0, kind: input, shape index: {}]
  %s1 = inlined_call_operand.hbm [shape: f32[8,128], index: 1, kind: input, shape index: {}]
  %s2 = inlined_call_operand.hbm [shape: f32[8,128], index: 2, kind: input, shape index: {}]
  %s3 = inlined_call_operand.hbm [shape: f32[8,128], index: 3, kind: input, shape index: {}]
  %s4 = inlined_call_operand.hbm [shape: bf16[16,72], index: 4, kind: input, shape index: {}]
  %s5 = inlined_call_operand.hbm [shape: f32[16,1], index: 5, kind: input, shape index: {}]
  %s6 = inlined_call_operand.hbm [shape: f32[16,1], index: 6, kind: input, shape index: {}]
  %s7 = inlined_call_operand.hbm [shape: f32[16,1], index: 7, kind: input, shape index: {}]
  %s8 = inlined_call_operand.hbm [shape: bf16[16,144], index: 8, kind: input, shape index: {}]
  %s9 = inlined_call_operand.hbm [shape: f32[16,1], index: 9, kind: input, shape index: {}]
  %s10 = inlined_call_operand.hbm [shape: f32[16,1], index: 10, kind: input, shape index: {}]
  %s11 = inlined_call_operand.hbm [shape: f32[16,1], index: 11, kind: input, shape index: {}]
  %s12 = inlined_call_operand.hbm [shape: f32[16,128], index: 12, kind: output, shape index: {}]
  %s13 = sld [smem:[#allocation0]]
  $region106: #{unet_apply.7} parent=0
    _
  %s15 = ssub.s32 1, %s13
  %s16 = scalar_select 0, %s15, %s13
  $region1: #{unet_apply.7} parent=0
    #allocation2 [shape = 'u8[4096]{0}', space=vmem, size = 0x1000, scoped, tag = 'input window, operand 0, single buffered']
    #allocation3 [shape = 's32[1]{0}', space=sflag, size = 0x4, scoped, tag = 'scoped memory for unet_apply.7']
    #allocation4 [shape = 's32[1]{0}', space=sflag, size = 0x4, scoped, tag = 'scoped memory for unet_apply.7']
    #allocation5 [shape = 'u8[4096]{0}', space=vmem, size = 0x1000, scoped, tag = 'input window, operand 1, single buffered']
    #allocation6 [shape = 's32[1]{0}', space=sflag, size = 0x4, scoped, tag = 'scoped memory for unet_apply.7']
    #allocation7 [shape = 'u8[4096]{0}', space=vmem, size = 0x1000, scoped, tag = 'input window, operand 2, single buffered']
    #allocation8 [shape = 'u8[4096]{0}', space=vmem, size = 0x1000, scoped, tag = 'input window, operand 3, single buffered']
    #allocation9 [shape = 's32[1]{0}', space=sflag, size = 0x4, scoped, tag = 'scoped memory for unet_apply.7']
    #allocation10 [shape = 'u8[4096]{0}', space=vmem, size = 0x1000, scoped, tag = 'input window, operand 4, single buffered']
    #allocation11 [shape = 'u8[8192]{0}', space=vmem, size = 0x2000, scoped, tag = 'input window, operand 5, single buffered']
    #allocation12 [shape = 's32[1]{0}', space=sflag, size = 0x4, scoped, tag = 'scoped memory for unet_apply.7']
    #allocation13 [shape = 'u8[8192]{0}', space=vmem, size = 0x2000, scoped, tag = 'input window, operand 6, single buffered']
    #allocation14 [shape = 'u8[8192]{0}', space=vmem, size = 0x2000, scoped, tag = 'input window, operand 7, single buffered']
    #allocation15 [shape = 's32[1]{0}', space=sflag, size = 0x4, scoped, tag = 'scoped memory for unet_apply.7']
    #allocation16 [shape = 'u8[8192]{0}', space=vmem, size = 0x2000, scoped, tag = 'input window, operand 8, single buffered']
    #allocation17 [shape = 'u8[8192]{0}', space=vmem, size = 0x2000, scoped, tag = 'input window, operand 9, single buffered']
    #allocation18 [shape = 's32[1]{0}', space=sflag, size = 0x4, scoped, tag = 'scoped memory for unet_apply.7']
    #allocation19 [shape = 'u8[8192]{0}', space=vmem, size = 0x2000, scoped, tag = 'input window, operand 10, single buffered']
    #allocation20 [shape = 'u8[8192]{0}', space=vmem, size = 0x2000, scoped, tag = 'input window, operand 11, single buffered']
    #allocation21 [shape = 's32[1]{0}', space=sflag, size = 0x4, scoped, tag = 'scoped memory for unet_apply.7']
    #allocation22 [shape = 'u8[8192]{0}', space=vmem, size = 0x2000, scoped, tag = 'output window, operand 0, single buffered']
    %17 = vsyncpa [#allocation3], 0
    %18 = vsyncpa [#allocation6], 0
    %19 = vsyncpa [#allocation9], 0
    %20 = vsyncpa [#allocation12], 0
    %21 = vsyncpa [#allocation15], 0
    %22 = vsyncpa [#allocation18], 0
    %23 = vsyncpa [#allocation21], 0
    %24 = vsyncpa [#allocation4], 0
    // Predicated region
    $region2: #{unet_apply.7} parent=1 // pred_check
      _
    $region3: #{unet_apply.7} parent=1 // pred_check_branch
      %26 = sbr.rel (0) target = $region5
    $region4: #{unet_apply.7} parent=1 // pred_region
      %s28 = ssub.s32 128, 128
      %29 = vsyncadd [#allocation3], %s28
      %s31 = sshll.u32 [#allocation2], 4
      %s32 = int_to_ptr.vmem [resolvable:$true] %s31
      %34 = dma.hbm_to_vmem [thread:$0]  %s0, 128, %s32, [#allocation3]
    $region5: #{unet_apply.7} parent=1 // pred_fallthru
      _
    // Predicated region
    $region6: #{unet_apply.7} parent=1 // pred_check
      _
    $region7: #{unet_apply.7} parent=1 // pred_check_branch
      %36 = sbr.rel (0) target = $region9
    $region8: #{unet_apply.7} parent=1 // pred_region
      %s38 = ssub.s32 128, 128
      %39 = vsyncadd [#allocation6], %s38
      %s41 = sshll.u32 [#allocation5], 4
      %s42 = int_to_ptr.vmem [resolvable:$true] %s41
      %44 = dma.hbm_to_vmem [thread:$0]  %s1, 128, %s42, [#allocation6]
    $region9: #{unet_apply.7} parent=1 // pred_fallthru
      _
    // Predicated region
    $region10: #{unet_apply.7} parent=1 // pred_check
      _
    $region11: #{unet_apply.7} parent=1 // pred_check_branch
      %46 = sbr.rel (0) target = $region13
    $region12: #{unet_apply.7} parent=1 // pred_region
      %s48 = ssub.s32 128, 128
      %49 = vsyncadd [#allocation6], %s48
      %s51 = sshll.u32 [#allocation7], 4
      %s52 = int_to_ptr.vmem [resolvable:$true] %s51
      %54 = dma.hbm_to_vmem [thread:$0]  %s2, 128, %s52, [#allocation6]
    $region13: #{unet_apply.7} parent=1 // pred_fallthru
      _
    // Predicated region
    $region14: #{unet_apply.7} parent=1 // pred_check
      _
    $region15: #{unet_apply.7} parent=1 // pred_check_branch
      %56 = sbr.rel (0) target = $region17
    $region16: #{unet_apply.7} parent=1 // pred_region
      %s58 = ssub.s32 128, 128
      %59 = vsyncadd [#allocation9], %s58
      %s61 = sshll.u32 [#allocation8], 4
      %s62 = int_to_ptr.vmem [resolvable:$true] %s61
      %64 = dma.hbm_to_vmem [thread:$0]  %s3, 128, %s62, [#allocation9]
    $region17: #{unet_apply.7} parent=1 // pred_fallthru
      _
    // Predicated region
    $region18: #{unet_apply.7} parent=1 // pred_check
      _
    $region19: #{unet_apply.7} parent=1 // pred_check_branch
      %66 = sbr.rel (0) target = $region21
    $region20: #{unet_apply.7} parent=1 // pred_region
      %s68 = ssub.s32 128, 128
      %69 = vsyncadd [#allocation9], %s68
      %s70 = sshll.u32 [#allocation10], 4
      %s71 = int_to_ptr.vmem [resolvable:$true] %s70
      %76 = dma.hbm_to_vmem [thread:$0]  %s4, 128, %s71, [#allocation9], 64, 64, 4
    $region21: #{unet_apply.7} parent=1 // pred_fallthru
      _
    // Predicated region
    $region22: #{unet_apply.7} parent=1 // pred_check
      _
    $region23: #{unet_apply.7} parent=1 // pred_check_branch
      %78 = sbr.rel (0) target = $region25
    $region24: #{unet_apply.7} parent=1 // pred_region
      %s80 = ssub.s32 256, 256
      %81 = vsyncadd [#allocation12], %s80
      %s82 = sshll.u32 [#allocation11], 4
      %s83 = int_to_ptr.vmem [resolvable:$true] %s82
      %88 = dma.hbm_to_vmem [thread:$0]  %s5, 256, %s83, [#allocation12], 128, 128, 8
    $region25: #{unet_apply.7} parent=1 // pred_fallthru
      _
    // Predicated region
    $region26: #{unet_apply.7} parent=1 // pred_check
      _
    $region27: #{unet_apply.7} parent=1 // pred_check_branch
      %90 = sbr.rel (0) target = $region29
    $region28: #{unet_apply.7} parent=1 // pred_region
      %s92 = ssub.s32 256, 256
      %93 = vsyncadd [#allocation12], %s92
      %s94 = sshll.u32 [#allocation13], 4
      %s95 = int_to_ptr.vmem [resolvable:$true] %s94
      %100 = dma.hbm_to_vmem [thread:$0]  %s6, 256, %s95, [#allocation12], 128, 128, 8
    $region29: #{unet_apply.7} parent=1 // pred_fallthru
      _
    // Predicated region
    $region30: #{unet_apply.7} parent=1 // pred_check
      _
    $region31: #{unet_apply.7} parent=1 // pred_check_branch
      %102 = sbr.rel (0) target = $region33
    $region32: #{unet_apply.7} parent=1 // pred_region
      %s104 = ssub.s32 256, 256
      %105 = vsyncadd [#allocation15], %s104
      %s106 = sshll.u32 [#allocation14], 4
      %s107 = int_to_ptr.vmem [resolvable:$true] %s106
      %112 = dma.hbm_to_vmem [thread:$0]  %s7, 256, %s107, [#allocation15], 128, 128, 8
    $region33: #{unet_apply.7} parent=1 // pred_fallthru
      _
    // Predicated region
    $region34: #{unet_apply.7} parent=1 // pred_check
      _
    $region35: #{unet_apply.7} parent=1 // pred_check_branch
      %114 = sbr.rel (0) target = $region37
    $region36: #{unet_apply.7} parent=1 // pred_region
      %s116 = ssub.s32 256, 256
      %117 = vsyncadd [#allocation15], %s116
      %s118 = sshll.u32 [#allocation16], 4
      %s119 = int_to_ptr.vmem [resolvable:$true] %s118
      %124 = dma.hbm_to_vmem [thread:$0]  %s8, 256, %s119, [#allocation15], 128, 128, 8
    $region37: #{unet_apply.7} parent=1 // pred_fallthru
      _
    // Predicated region
    $region38: #{unet_apply.7} parent=1 // pred_check
      _
    $region39: #{unet_apply.7} parent=1 // pred_check_branch
      %126 = sbr.rel (0) target = $region41
    $region40: #{unet_apply.7} parent=1 // pred_region
      %s128 = ssub.s32 256, 256
      %129 = vsyncadd [#allocation18], %s128
      %s130 = sshll.u32 [#allocation17], 4
      %s131 = int_to_ptr.vmem [resolvable:$true] %s130
      %136 = dma.hbm_to_vmem [thread:$0]  %s9, 256, %s131, [#allocation18], 128, 128, 8
    $region41: #{unet_apply.7} parent=1 // pred_fallthru
      _
    // Predicated region
    $region42: #{unet_apply.7} parent=1 // pred_check
      _
    $region43: #{unet_apply.7} parent=1 // pred_check_branch
      %138 = sbr.rel (0) target = $region45
    $region44: #{unet_apply.7} parent=1 // pred_region
      %s140 = ssub.s32 256, 256
      %141 = vsyncadd [#allocation18], %s140
      %s142 = sshll.u32 [#allocation19], 4
      %s143 = int_to_ptr.vmem [resolvable:$true] %s142
      %148 = dma.hbm_to_vmem [thread:$0]  %s10, 256, %s143, [#allocation18], 128, 128, 8
    $region45: #{unet_apply.7} parent=1 // pred_fallthru
      _
    // Predicated region
    $region46: #{unet_apply.7} parent=1 // pred_check
      _
    $region47: #{unet_apply.7} parent=1 // pred_check_branch
      %150 = sbr.rel (0) target = $region49
    $region48: #{unet_apply.7} parent=1 // pred_region
      %s152 = ssub.s32 256, 256
      %153 = vsyncadd [#allocation21], %s152
      %s154 = sshll.u32 [#allocation20], 4
      %s155 = int_to_ptr.vmem [resolvable:$true] %s154
      %160 = dma.hbm_to_vmem [thread:$0]  %s11, 256, %s155, [#allocation21], 128, 128, 8
    $region49: #{unet_apply.7} parent=1 // pred_fallthru
      _
    // Predicated region
    $region50: #{unet_apply.7} parent=1 // pred_check
      _
    $region51: #{unet_apply.7} parent=1 // pred_check_branch
      %162 = sbr.rel (0) target = $region53
    $region52: #{unet_apply.7} parent=1 // pred_region
      %163 = dma.done [#allocation3], 128
    $region53: #{unet_apply.7} parent=1 // pred_fallthru
      _
    // Predicated region
    $region54: #{unet_apply.7} parent=1 // pred_check
      _
    $region55: #{unet_apply.7} parent=1 // pred_check_branch
      %165 = sbr.rel (0) target = $region57
    $region56: #{unet_apply.7} parent=1 // pred_region
      %166 = dma.done [#allocation6], 128
    $region57: #{unet_apply.7} parent=1 // pred_fallthru
      _
    // Predicated region
    $region58: #{unet_apply.7} parent=1 // pred_check
      _
    $region59: #{unet_apply.7} parent=1 // pred_check_branch
      %168 = sbr.rel (0) target = $region61
    $region60: #{unet_apply.7} parent=1 // pred_region
      %169 = dma.done [#allocation6], 128
    $region61: #{unet_apply.7} parent=1 // pred_fallthru
      _
    // Predicated region
    $region62: #{unet_apply.7} parent=1 // pred_check
      _
    $region63: #{unet_apply.7} parent=1 // pred_check_branch
      %171 = sbr.rel (0) target = $region65
    $region64: #{unet_apply.7} parent=1 // pred_region
      %172 = dma.done [#allocation9], 128
    $region65: #{unet_apply.7} parent=1 // pred_fallthru
      _
    // Predicated region
    $region66: #{unet_apply.7} parent=1 // pred_check
      _
    $region67: #{unet_apply.7} parent=1 // pred_check_branch
      %174 = sbr.rel (0) target = $region69
    $region68: #{unet_apply.7} parent=1 // pred_region
      %175 = dma.done [#allocation9], 128
    $region69: #{unet_apply.7} parent=1 // pred_fallthru
      _
    // Predicated region
    $region70: #{unet_apply.7} parent=1 // pred_check
      _
    $region71: #{unet_apply.7} parent=1 // pred_check_branch
      %177 = sbr.rel (0) target = $region73
    $region72: #{unet_apply.7} parent=1 // pred_region
      %178 = dma.done [#allocation12], 256
    $region73: #{unet_apply.7} parent=1 // pred_fallthru
      _
    // Predicated region
    $region74: #{unet_apply.7} parent=1 // pred_check
      _
    $region75: #{unet_apply.7} parent=1 // pred_check_branch
      %180 = sbr.rel (0) target = $region77
    $region76: #{unet_apply.7} parent=1 // pred_region
      %181 = dma.done [#allocation12], 256
    $region77: #{unet_apply.7} parent=1 // pred_fallthru
      _
    // Predicated region
    $region78: #{unet_apply.7} parent=1 // pred_check
      _
    $region79: #{unet_apply.7} parent=1 // pred_check_branch
      %183 = sbr.rel (0) target = $region81
    $region80: #{unet_apply.7} parent=1 // pred_region
      %184 = dma.done [#allocation15], 256
    $region81: #{unet_apply.7} parent=1 // pred_fallthru
      _
    // Predicated region
    $region82: #{unet_apply.7} parent=1 // pred_check
      _
    $region83: #{unet_apply.7} parent=1 // pred_check_branch
      %186 = sbr.rel (0) target = $region85
    $region84: #{unet_apply.7} parent=1 // pred_region
      %187 = dma.done [#allocation15], 256
    $region85: #{unet_apply.7} parent=1 // pred_fallthru
      _
    // Predicated region
    $region86: #{unet_apply.7} parent=1 // pred_check
      _
    $region87: #{unet_apply.7} parent=1 // pred_check_branch
      %189 = sbr.rel (0) target = $region89
    $region88: #{unet_apply.7} parent=1 // pred_region
      %190 = dma.done [#allocation18], 256
    $region89: #{unet_apply.7} parent=1 // pred_fallthru
      _
    // Predicated region
    $region90: #{unet_apply.7} parent=1 // pred_check
      _
    $region91: #{unet_apply.7} parent=1 // pred_check_branch
      %192 = sbr.rel (0) target = $region93
    $region92: #{unet_apply.7} parent=1 // pred_region
      %193 = dma.done [#allocation18], 256
    $region93: #{unet_apply.7} parent=1 // pred_fallthru
      _
    // Predicated region
    $region94: #{unet_apply.7} parent=1 // pred_check
      _
    $region95: #{unet_apply.7} parent=1 // pred_check_branch
      %195 = sbr.rel (0) target = $region97
    $region96: #{unet_apply.7} parent=1 // pred_region
      %196 = dma.done [#allocation21], 256
    $region97: #{unet_apply.7} parent=1 // pred_fallthru
      _
    %v198 = vld [vmem:[#allocation2] sm:$0xff]
    %v199 = vld [vmem:[#allocation5] sm:$0xff]
    %v200 = vmax.f32 %v198, %v199
    %v201 = vld [vmem:[#allocation7] sm:$0xff]
    %v202 = vld [vmem:[#allocation8] sm:$0xff]
    %v203 = vmax.f32 %v201, %v202
    %v204 = vmax.f32 %v200, %v203
    %v205 = vld [vmem:[#allocation10] sm:$0xf]
    %v206 = vld [vmem:[#allocation10 + $0x4] sm:$0xf]
    %v207 = vld [vmem:[#allocation11] sm:$0xff]
    %v208 = vld [vmem:[#allocation11 + $0x8] sm:$0xff]
    %v209 = vld [vmem:[#allocation13] sm:$0xff]
    %v210 = vld [vmem:[#allocation13 + $0x8] sm:$0xff]
    %v211 = vld [vmem:[#allocation14] sm:$0xff]
    %v212 = vld [vmem:[#allocation14 + $0x8] sm:$0xff]
    %v213 = vlaneseq
    %v214 = vand.u32 %v213, 127
    %v215 = vand.u32 %v214, 7
    %v216 = vshra.s32 %v214, 3
    %v217 = vand.u32 %v216, 7
    %218 = vrot.lane.b32.xlu0 %v204, 9
    %v219 = vpop.permute.xlu0 %218
    %vm220 = vcmp.ge.s32.totalorder %v217, 1
    %vm221 = vcmp.ge.s32.totalorder %v215, 1
    %vm222 = vmand %vm220, %vm221
    %v223 = vsel %vm222, %v219, 0.0
    %224 = vrot.lane.b32.xlu0 %v204, 8
    %v225 = vpop.permute.xlu0 %224
    %v226 = vsel %vm220, %v225, 0.0
    %227 = vrot.lane.b32.xlu0 %v204, 7
    %v228 = vpop.permute.xlu0 %227
    %vm229 = vcmp.lt.s32.totalorder %v215, 7
    %vm230 = vmand %vm220, %vm229
    %v231 = vsel %vm230, %v228, 0.0
    %232 = vrot.lane.b32.xlu0 %v204, 1
    %v233 = vpop.permute.xlu0 %232
    %v234 = vsel %vm221, %v233, 0.0
    %235 = vrot.lane.b32.xlu0 %v204, 127
    %v236 = vpop.permute.xlu0 %235
    %v237 = vsel %vm229, %v236, 0.0
    %238 = vrot.lane.b32.xlu0 %v204, 121
    %v239 = vpop.permute.xlu0 %238
    %vm240 = vcmp.lt.s32.totalorder %v217, 7
    %vm241 = vmand %vm240, %vm221
    %v242 = vsel %vm241, %v239, 0.0
    %243 = vrot.lane.b32.xlu0 %v204, 120
    %v244 = vpop.permute.xlu0 %243
    %v245 = vsel %vm240, %v244, 0.0
    %246 = vrot.lane.b32.xlu0 %v204, 119
    %v247 = vpop.permute.xlu0 %246
    %vm248 = vmand %vm240, %vm229
    %v249 = vsel %vm248, %v247, 0.0
    %v250 = vpack.c.bf16 %v226, %v223
    %v251 = vpack.c.bf16 %v234, %v231
    %v252 = vpack.c.bf16 %v237, %v204
    %v253 = vpack.c.bf16 %v245, %v242
    %v254 = vpack.c.bf16 %v249, %v249
    %256 = vset.pattern.permute.xlu0 0
    %257 = vperm.xlu0 %256, %v207
    %v258 = vpop.permute.xlu0 %257
    %261 = vset.pattern.permute.xlu0 0
    %262 = vperm.xlu0 %261, %v208
    %v263 = vpop.permute.xlu0 %262
    %v267 = vunpack.c.l.b16 %v205
    %v268 = vunpack.c.l.b16 %v206
    %v269 = vpack.c.b16 %v268, %v267
    %vm270 = vcmask 588800
    %v272 = vsel %vm270, %v269, 0
    %vm274 = vcmask 1043456
    %v276 = vsel %vm274, %v254, 0
    %278 = vmatprep.subr.bf16.mxu0 0
    %279 = vmatpush1.bf16.msra.mxu0 %v250
    %280 = vmatprep.subr.bf16.mxu0 0
    %281 = vmatpush1.bf16.msra.mxu0 %v251
    %282 = vmatprep.subr.bf16.mxu0 0
    %283 = vmatpush1.bf16.msra.mxu0 %v252
    %284 = vmatprep.subr.bf16.mxu0 0
    %285 = vmatpush1.bf16.msra.mxu0 %v253
    %286 = vmatprep.subr.bf16.mxu0 0
    %287 = vmatpush1.bf16.msra.mxu0 %v276
    %288 = vmatprep.subr.bf16.mxu0 0
    %289 = vmatpush1.bf16.msra.mxu0 0
    %290 = vmatprep.subr.bf16.mxu0 0
    %291 = vmatpush1.bf16.msra.mxu0 0
    %292 = vmatprep.subr.bf16.mxu0 0
    %293 = vmatpush1.bf16.msra.mxu0 0
    %294 = vmatprep.subr.bf16.mxu0 0
    %295 = vmatpush1.bf16.msra.mxu0 0
    %296 = vmatprep.subr.bf16.mxu0 0
    %297 = vmatpush1.bf16.msra.mxu0 0
    %298 = vmatprep.subr.bf16.mxu0 0
    %299 = vmatpush1.bf16.msra.mxu0 0
    %300 = vmatprep.subr.bf16.mxu0 0
    %301 = vmatpush1.bf16.msra.mxu0 0
    %302 = vmatprep.subr.bf16.mxu0 0
    %303 = vmatpush1.bf16.msra.mxu0 0
    %304 = vmatprep.subr.bf16.mxu0 0
    %305 = vmatpush1.bf16.msra.mxu0 0
    %306 = vmatprep.subr.bf16.mxu0 0
    %307 = vmatpush1.bf16.msra.mxu0 0
    %308 = vmatprep.subr.bf16.mxu0 0
    %309 = vmatpush1.bf16.msra.mxu0 0
    %310 = vmatprep.mubr.bf16.mxu0 0
    %311 = vmatmul.mubr.bf16.gmra.mrb[0].mxu0 %v272
    %v312 = vpop.f32.mrb[0].mxu0
    %v313 = vadd.f32 %v258, %v312
    %v314 = vpop.f32.mrb[0].mxu0
    %v315 = vpop.f32.mrb[0].mxu0
    %v316 = vadd.f32 %v263, %v315
    %v317 = vpop.f32.mrb[0].mxu0
    %318 = vdwg.mxu0
    %319 = vadd.xlane.f32.xlu0 %v313
    %v320 = vpop.xlane.xlu0 %319
    %321 = vadd.xlane.f32.xlu0 %v316
    %v322 = vpop.xlane.xlu0 %321
    %v323 = vmul.f32 %v320, 0.0078125
    %v324 = vmul.f32 %v322, 0.0078125
    %v325 = vsub.f32 %v313, %v323
    %v326 = vsub.f32 %v316, %v324
    %v327 = vmul.f32 %v325, %v325
    %v328 = vmul.f32 %v326, %v326
    %329 = vadd.xlane.f32.xlu0 %v327
    %v330 = vpop.xlane.xlu0 %329
    %331 = vadd.xlane.f32.xlu0 %v328
    %v332 = vpop.xlane.xlu0 %331
    %v333 = vmul.f32 %v330, 0.0078125
    %v334 = vmul.f32 %v332, 0.0078125
    %v335 = vadd.f32 %v333, 1e-05
    %v336 = vadd.f32 %v334, 1e-05
    %v337 = vrsqrt.pop %v335
    %v338 = vrsqrt.pop %v336
    %v339 = vmul.f32 %v209, %v337
    %v340 = vmul.f32 %v210, %v338
    %342 = vset.pattern.permute.xlu0 0
    %343 = vperm.xlu0 %342, %v339
    %v344 = vpop.permute.xlu0 %343
    %347 = vset.pattern.permute.xlu0 0
    %348 = vperm.xlu0 %347, %v340
    %v349 = vpop.permute.xlu0 %348
    %v351 = vmul.f32 %v325, %v344
    %v352 = vmul.f32 %v326, %v349
    %354 = vset.pattern.permute.xlu0 0
    %355 = vperm.xlu0 %354, %v211
    %v356 = vpop.permute.xlu0 %355
    %359 = vset.pattern.permute.xlu0 0
    %360 = vperm.xlu0 %359, %v212
    %v361 = vpop.permute.xlu0 %360
    %v363 = vadd.f32 %v351, %v356
    %v364 = vadd.f32 %v352, %v361
    %v365 = vmax.f32 %v363, 0.0
    %v366 = vmax.f32 %v364, 0.0
    %v367 = vld [vmem:[#allocation16] sm:$0xff]
    %v368 = vld [vmem:[#allocation16 + $0x8] sm:$0xff]
    %v369 = vld [vmem:[#allocation17] sm:$0xff]
    %v370 = vld [vmem:[#allocation17 + $0x8] sm:$0xff]
    %v371 = vld [vmem:[#allocation19] sm:$0xff]
    %v372 = vld [vmem:[#allocation19 + $0x8] sm:$0xff]
    %v373 = vld [vmem:[#allocation20] sm:$0xff]
    %v374 = vld [vmem:[#allocation20 + $0x8] sm:$0xff]
    %375 = vrot.lane.b32.xlu0 %v365, 9
    %v376 = vpop.permute.xlu0 %375
    %377 = vrot.lane.b32.xlu0 %v366, 9
    %v378 = vpop.permute.xlu0 %377
    %v379 = vsel %vm222, %v376, 0.0
    %v380 = vsel %vm222, %v378, 0.0
    %381 = vrot.lane.b32.xlu0 %v365, 8
    %v382 = vpop.permute.xlu0 %381
    %383 = vrot.lane.b32.xlu0 %v366, 8
    %v384 = vpop.permute.xlu0 %383
    %v385 = vsel %vm220, %v382, 0.0
    %v386 = vsel %vm220, %v384, 0.0
    %387 = vrot.lane.b32.xlu0 %v365, 7
    %v388 = vpop.permute.xlu0 %387
    %389 = vrot.lane.b32.xlu0 %v366, 7
    %v390 = vpop.permute.xlu0 %389
    %v391 = vsel %vm230, %v388, 0.0
    %v392 = vsel %vm230, %v390, 0.0
    %393 = vrot.lane.b32.xlu0 %v365, 1
    %v394 = vpop.permute.xlu0 %393
    %395 = vrot.lane.b32.xlu0 %v366, 1
    %v396 = vpop.permute.xlu0 %395
    %v397 = vsel %vm221, %v394, 0.0
    %v398 = vsel %vm221, %v396, 0.0
    %399 = vrot.lane.b32.xlu0 %v365, 127
    %v400 = vpop.permute.xlu0 %399
    %401 = vrot.lane.b32.xlu0 %v366, 127
    %v402 = vpop.permute.xlu0 %401
    %v403 = vsel %vm229, %v400, 0.0
    %v404 = vsel %vm229, %v402, 0.0
    %405 = vrot.lane.b32.xlu0 %v365, 121
    %v406 = vpop.permute.xlu0 %405
    %407 = vrot.lane.b32.xlu0 %v366, 121
    %v408 = vpop.permute.xlu0 %407
    %v409 = vsel %vm241, %v406, 0.0
    %v410 = vsel %vm241, %v408, 0.0
    %411 = vrot.lane.b32.xlu0 %v365, 120
    %v412 = vpop.permute.xlu0 %411
    %413 = vrot.lane.b32.xlu0 %v366, 120
    %v414 = vpop.permute.xlu0 %413
    %v415 = vsel %vm240, %v412, 0.0
    %v416 = vsel %vm240, %v414, 0.0
    %417 = vrot.lane.b32.xlu0 %v365, 119
    %v418 = vpop.permute.xlu0 %417
    %419 = vrot.lane.b32.xlu0 %v366, 119
    %v420 = vpop.permute.xlu0 %419
    %v421 = vsel %vm248, %v418, 0.0
    %v422 = vsel %vm248, %v420, 0.0
    %v423 = vpack.c.bf16 %v380, %v379
    %v424 = vpack.c.bf16 %v386, %v385
    %v425 = vpack.c.bf16 %v392, %v391
    %v426 = vpack.c.bf16 %v398, %v397
    %v427 = vpack.c.bf16 %v366, %v365
    %v428 = vpack.c.bf16 %v404, %v403
    %v429 = vpack.c.bf16 %v410, %v409
    %v430 = vpack.c.bf16 %v416, %v415
    %v431 = vpack.c.bf16 %v422, %v421
    %433 = vset.pattern.permute.xlu0 0
    %434 = vperm.xlu0 %433, %v369
    %v435 = vpop.permute.xlu0 %434
    %438 = vset.pattern.permute.xlu0 0
    %439 = vperm.xlu0 %438, %v370
    %v440 = vpop.permute.xlu0 %439
    %v444 = vunpack.c.l.b16 %v367
    %v445 = vunpack.c.h.b16 %v367
    %v446 = vunpack.c.l.b16 %v368
    %v447 = vunpack.c.h.b16 %v368
    %v448 = vpack.c.b16 %v446, %v444
    %v449 = vpack.c.b16 %v447, %v445
    %vm451 = vcmask 130048
    %v453 = vsel %vm451, %v449, 0
    %455 = vmatprep.subr.bf16.mxu0 0
    %456 = vmatpush1.bf16.msra.mxu0 %v423
    %457 = vmatprep.subr.bf16.mxu0 0
    %458 = vmatpush1.bf16.msra.mxu0 %v424
    %459 = vmatprep.subr.bf16.mxu0 0
    %460 = vmatpush1.bf16.msra.mxu0 %v425
    %461 = vmatprep.subr.bf16.mxu0 0
    %462 = vmatpush1.bf16.msra.mxu0 %v426
    %463 = vmatprep.subr.bf16.mxu0 0
    %464 = vmatpush1.bf16.msra.mxu0 %v427
    %465 = vmatprep.subr.bf16.mxu0 0
    %466 = vmatpush1.bf16.msra.mxu0 %v428
    %467 = vmatprep.subr.bf16.mxu0 0
    %468 = vmatpush1.bf16.msra.mxu0 %v429
    %469 = vmatprep.subr.bf16.mxu0 0
    %470 = vmatpush1.bf16.msra.mxu0 %v430
    %471 = vmatprep.subr.bf16.mxu0 0
    %472 = vmatpush1.bf16.msra.mxu0 %v431
    %473 = vmatprep.subr.bf16.mxu0 0
    %474 = vmatpush1.bf16.msra.mxu0 0
    %475 = vmatprep.subr.bf16.mxu0 0
    %476 = vmatpush1.bf16.msra.mxu0 0
    %477 = vmatprep.subr.bf16.mxu0 0
    %478 = vmatpush1.bf16.msra.mxu0 0
    %479 = vmatprep.subr.bf16.mxu0 0
    %480 = vmatpush1.bf16.msra.mxu0 0
    %481 = vmatprep.subr.bf16.mxu0 0
    %482 = vmatpush1.bf16.msra.mxu0 0
    %483 = vmatprep.subr.bf16.mxu0 0
    %484 = vmatpush1.bf16.msra.mxu0 0
    %485 = vmatprep.subr.bf16.mxu0 0
    %486 = vmatpush1.bf16.msra.mxu0 0
    %487 = vmatprep.mubr.bf16.mxu0 %v453
    %488 = vmatmul.mubr.bf16.gmra.mrb[0].mxu0 %v448
    %v489 = vpop.f32.mrb[0].mxu0
    %v490 = vadd.f32 %v435, %v489
    %v491 = vpop.f32.mrb[0].mxu0
    %v492 = vpop.f32.mrb[0].mxu0
    %v493 = vadd.f32 %v440, %v492
    %v494 = vpop.f32.mrb[0].mxu0
    %495 = vdwg.mxu0
    %496 = vadd.xlane.f32.xlu0 %v490
    %v497 = vpop.xlane.xlu0 %496
    %498 = vadd.xlane.f32.xlu0 %v493
    %v499 = vpop.xlane.xlu0 %498
    %v500 = vmul.f32 %v497, 0.0078125
    %v501 = vmul.f32 %v499, 0.0078125
    %v502 = vsub.f32 %v490, %v500
    %v503 = vsub.f32 %v493, %v501
    %v504 = vmul.f32 %v502, %v502
    %v505 = vmul.f32 %v503, %v503
    %506 = vadd.xlane.f32.xlu0 %v504
    %v507 = vpop.xlane.xlu0 %506
    %508 = vadd.xlane.f32.xlu0 %v505
    %v509 = vpop.xlane.xlu0 %508
    %v510 = vmul.f32 %v507, 0.0078125
    %v511 = vmul.f32 %v509, 0.0078125
    %v512 = vadd.f32 %v510, 1e-05
    %v513 = vadd.f32 %v511, 1e-05
    %v514 = vrsqrt.pop %v512
    %v515 = vrsqrt.pop %v513
    %v516 = vmul.f32 %v371, %v514
    %v517 = vmul.f32 %v372, %v515
    %519 = vset.pattern.permute.xlu0 0
    %520 = vperm.xlu0 %519, %v516
    %v521 = vpop.permute.xlu0 %520
    %524 = vset.pattern.permute.xlu0 0
    %525 = vperm.xlu0 %524, %v517
    %v526 = vpop.permute.xlu0 %525
    %v528 = vmul.f32 %v502, %v521
    %v529 = vmul.f32 %v503, %v526
    %531 = vset.pattern.permute.xlu0 0
    %532 = vperm.xlu0 %531, %v373
    %v533 = vpop.permute.xlu0 %532
    %536 = vset.pattern.permute.xlu0 0
    %537 = vperm.xlu0 %536, %v374
    %v538 = vpop.permute.xlu0 %537
    %v540 = vadd.f32 %v528, %v533
    %v541 = vadd.f32 %v529, %v538
    %v542 = vmax.f32 %v540, 0.0
    %v543 = vmax.f32 %v541, 0.0
    %544 = vst [vmem:[#allocation22] sm:$0xff] %v542
    %545 = vst [vmem:[#allocation22 + $0x8] sm:$0xff] %v543
    // Predicated region
    $region98: #{unet_apply.7} parent=1 // pred_check
      _
    $region99: #{unet_apply.7} parent=1 // pred_check_branch
      %547 = sbr.rel (0) target = $region101
    $region100: #{unet_apply.7} parent=1 // pred_region
      %s549 = ssub.s32 256, 256
      %550 = vsyncadd [#allocation4], %s549
      %s551 = sshll.u32 [#allocation22], 4
      %s552 = int_to_ptr.vmem [resolvable:$true] %s551
      %557 = dma.vmem_to_hbm [thread:$0]  %s552, 256, %s12, [#allocation4], 128, 128, 8
    $region101: #{unet_apply.7} parent=1 // pred_fallthru
      _
    // Predicated region
    $region102: #{unet_apply.7} parent=1 // pred_check
      _
    $region103: #{unet_apply.7} parent=1 // pred_check_branch
      %559 = sbr.rel (0) target = $region105
    $region104: #{unet_apply.7} parent=1 // pred_region
      %560 = dma.done [#allocation4], 256
    $region105: #{unet_apply.7} parent=1 // pred_fallthru
      _
    %561 = vsyncpa [#allocation3], 1
    %562 = vsyncpa [#allocation6], 1
    %563 = vsyncpa [#allocation9], 1
    %564 = vsyncpa [#allocation12], 1
    %565 = vsyncpa [#allocation15], 1
    %566 = vsyncpa [#allocation18], 1
    %567 = vsyncpa [#allocation21], 1
    %568 = vsyncpa [#allocation4], 1

// kernel: unet_apply.8
$region0: #{unet_apply.8}
  #allocation0 [shape = 'u32[]', space=smem, size = 0x4, offset = 0x4, fixed_abs, tag = 'smem constant byte address 0x4 - core index']
  #allocation1 [shape = 'u32[144,128]{1,0:T(1,128)}', space=vmem, size = 0x12000, scoped, tag = 'internal scratch']
  %s0 = inlined_call_operand.hbm [shape: f32[16,32], index: 0, kind: input, shape index: {}]
  %s1 = inlined_call_operand.hbm [shape: f32[16,32], index: 1, kind: input, shape index: {}]
  %s2 = inlined_call_operand.hbm [shape: f32[16,32], index: 2, kind: input, shape index: {}]
  %s3 = inlined_call_operand.hbm [shape: f32[16,32], index: 3, kind: input, shape index: {}]
  %s4 = inlined_call_operand.hbm [shape: bf16[16,144], index: 4, kind: input, shape index: {}]
  %s5 = inlined_call_operand.hbm [shape: f32[16,1], index: 5, kind: input, shape index: {}]
  %s6 = inlined_call_operand.hbm [shape: f32[16,1], index: 6, kind: input, shape index: {}]
  %s7 = inlined_call_operand.hbm [shape: f32[16,1], index: 7, kind: input, shape index: {}]
  %s8 = inlined_call_operand.hbm [shape: bf16[16,144], index: 8, kind: input, shape index: {}]
  %s9 = inlined_call_operand.hbm [shape: f32[16,1], index: 9, kind: input, shape index: {}]
  %s10 = inlined_call_operand.hbm [shape: f32[16,1], index: 10, kind: input, shape index: {}]
  %s11 = inlined_call_operand.hbm [shape: f32[16,1], index: 11, kind: input, shape index: {}]
  %s12 = inlined_call_operand.hbm [shape: f32[16,32], index: 12, kind: output, shape index: {}]
  %s13 = sld [smem:[#allocation0]]
  $region106: #{unet_apply.8} parent=0
    _
  %s15 = ssub.s32 1, %s13
  %s16 = scalar_select 0, %s15, %s13
  $region1: #{unet_apply.8} parent=0
    #allocation2 [shape = 'u8[8192]{0}', space=vmem, size = 0x2000, scoped, tag = 'input window, operand 0, single buffered']
    #allocation3 [shape = 's32[1]{0}', space=sflag, size = 0x4, scoped, tag = 'scoped memory for unet_apply.8']
    #allocation4 [shape = 's32[1]{0}', space=sflag, size = 0x4, scoped, tag = 'scoped memory for unet_apply.8']
    #allocation5 [shape = 'u8[8192]{0}', space=vmem, size = 0x2000, scoped, tag = 'input window, operand 1, single buffered']
    #allocation6 [shape = 's32[1]{0}', space=sflag, size = 0x4, scoped, tag = 'scoped memory for unet_apply.8']
    #allocation7 [shape = 'u8[8192]{0}', space=vmem, size = 0x2000, scoped, tag = 'input window, operand 2, single buffered']
    #allocation8 [shape = 'u8[8192]{0}', space=vmem, size = 0x2000, scoped, tag = 'input window, operand 3, single buffered']
    #allocation9 [shape = 's32[1]{0}', space=sflag, size = 0x4, scoped, tag = 'scoped memory for unet_apply.8']
    #allocation10 [shape = 'u8[8192]{0}', space=vmem, size = 0x2000, scoped, tag = 'input window, operand 4, single buffered']
    #allocation11 [shape = 'u8[8192]{0}', space=vmem, size = 0x2000, scoped, tag = 'input window, operand 5, single buffered']
    #allocation12 [shape = 's32[1]{0}', space=sflag, size = 0x4, scoped, tag = 'scoped memory for unet_apply.8']
    #allocation13 [shape = 'u8[8192]{0}', space=vmem, size = 0x2000, scoped, tag = 'input window, operand 6, single buffered']
    #allocation14 [shape = 'u8[8192]{0}', space=vmem, size = 0x2000, scoped, tag = 'input window, operand 7, single buffered']
    #allocation15 [shape = 's32[1]{0}', space=sflag, size = 0x4, scoped, tag = 'scoped memory for unet_apply.8']
    #allocation16 [shape = 'u8[8192]{0}', space=vmem, size = 0x2000, scoped, tag = 'input window, operand 8, single buffered']
    #allocation17 [shape = 'u8[8192]{0}', space=vmem, size = 0x2000, scoped, tag = 'input window, operand 9, single buffered']
    #allocation18 [shape = 's32[1]{0}', space=sflag, size = 0x4, scoped, tag = 'scoped memory for unet_apply.8']
    #allocation19 [shape = 'u8[8192]{0}', space=vmem, size = 0x2000, scoped, tag = 'input window, operand 10, single buffered']
    #allocation20 [shape = 'u8[8192]{0}', space=vmem, size = 0x2000, scoped, tag = 'input window, operand 11, single buffered']
    #allocation21 [shape = 's32[1]{0}', space=sflag, size = 0x4, scoped, tag = 'scoped memory for unet_apply.8']
    #allocation22 [shape = 'u8[8192]{0}', space=vmem, size = 0x2000, scoped, tag = 'output window, operand 0, single buffered']
    %17 = vsyncpa [#allocation3], 0
    %18 = vsyncpa [#allocation6], 0
    %19 = vsyncpa [#allocation9], 0
    %20 = vsyncpa [#allocation12], 0
    %21 = vsyncpa [#allocation15], 0
    %22 = vsyncpa [#allocation18], 0
    %23 = vsyncpa [#allocation21], 0
    %24 = vsyncpa [#allocation4], 0
    // Predicated region
    $region2: #{unet_apply.8} parent=1 // pred_check
      _
    $region3: #{unet_apply.8} parent=1 // pred_check_branch
      %26 = sbr.rel (0) target = $region5
    $region4: #{unet_apply.8} parent=1 // pred_region
      %s28 = ssub.s32 256, 256
      %29 = vsyncadd [#allocation3], %s28
      %s30 = sshll.u32 [#allocation2], 4
      %s31 = int_to_ptr.vmem [resolvable:$true] %s30
      %36 = dma.hbm_to_vmem [thread:$0]  %s0, 256, %s31, [#allocation3], 128, 128, 8
    $region5: #{unet_apply.8} parent=1 // pred_fallthru
      _
    // Predicated region
    $region6: #{unet_apply.8} parent=1 // pred_check
      _
    $region7: #{unet_apply.8} parent=1 // pred_check_branch
      %38 = sbr.rel (0) target = $region9
    $region8: #{unet_apply.8} parent=1 // pred_region
      %s40 = ssub.s32 256, 256
      %41 = vsyncadd [#allocation6], %s40
      %s42 = sshll.u32 [#allocation5], 4
      %s43 = int_to_ptr.vmem [resolvable:$true] %s42
      %48 = dma.hbm_to_vmem [thread:$0]  %s1, 256, %s43, [#allocation6], 128, 128, 8
    $region9: #{unet_apply.8} parent=1 // pred_fallthru
      _
    // Predicated region
    $region10: #{unet_apply.8} parent=1 // pred_check
      _
    $region11: #{unet_apply.8} parent=1 // pred_check_branch
      %50 = sbr.rel (0) target = $region13
    $region12: #{unet_apply.8} parent=1 // pred_region
      %s52 = ssub.s32 256, 256
      %53 = vsyncadd [#allocation6], %s52
      %s54 = sshll.u32 [#allocation7], 4
      %s55 = int_to_ptr.vmem [resolvable:$true] %s54
      %60 = dma.hbm_to_vmem [thread:$0]  %s2, 256, %s55, [#allocation6], 128, 128, 8
    $region13: #{unet_apply.8} parent=1 // pred_fallthru
      _
    // Predicated region
    $region14: #{unet_apply.8} parent=1 // pred_check
      _
    $region15: #{unet_apply.8} parent=1 // pred_check_branch
      %62 = sbr.rel (0) target = $region17
    $region16: #{unet_apply.8} parent=1 // pred_region
      %s64 = ssub.s32 256, 256
      %65 = vsyncadd [#allocation9], %s64
      %s66 = sshll.u32 [#allocation8], 4
      %s67 = int_to_ptr.vmem [resolvable:$true] %s66
      %72 = dma.hbm_to_vmem [thread:$0]  %s3, 256, %s67, [#allocation9], 128, 128, 8
    $region17: #{unet_apply.8} parent=1 // pred_fallthru
      _
    // Predicated region
    $region18: #{unet_apply.8} parent=1 // pred_check
      _
    $region19: #{unet_apply.8} parent=1 // pred_check_branch
      %74 = sbr.rel (0) target = $region21
    $region20: #{unet_apply.8} parent=1 // pred_region
      %s76 = ssub.s32 256, 256
      %77 = vsyncadd [#allocation9], %s76
      %s78 = sshll.u32 [#allocation10], 4
      %s79 = int_to_ptr.vmem [resolvable:$true] %s78
      %84 = dma.hbm_to_vmem [thread:$0]  %s4, 256, %s79, [#allocation9], 128, 128, 8
    $region21: #{unet_apply.8} parent=1 // pred_fallthru
      _
    // Predicated region
    $region22: #{unet_apply.8} parent=1 // pred_check
      _
    $region23: #{unet_apply.8} parent=1 // pred_check_branch
      %86 = sbr.rel (0) target = $region25
    $region24: #{unet_apply.8} parent=1 // pred_region
      %s88 = ssub.s32 256, 256
      %89 = vsyncadd [#allocation12], %s88
      %s90 = sshll.u32 [#allocation11], 4
      %s91 = int_to_ptr.vmem [resolvable:$true] %s90
      %96 = dma.hbm_to_vmem [thread:$0]  %s5, 256, %s91, [#allocation12], 128, 128, 8
    $region25: #{unet_apply.8} parent=1 // pred_fallthru
      _
    // Predicated region
    $region26: #{unet_apply.8} parent=1 // pred_check
      _
    $region27: #{unet_apply.8} parent=1 // pred_check_branch
      %98 = sbr.rel (0) target = $region29
    $region28: #{unet_apply.8} parent=1 // pred_region
      %s100 = ssub.s32 256, 256
      %101 = vsyncadd [#allocation12], %s100
      %s102 = sshll.u32 [#allocation13], 4
      %s103 = int_to_ptr.vmem [resolvable:$true] %s102
      %108 = dma.hbm_to_vmem [thread:$0]  %s6, 256, %s103, [#allocation12], 128, 128, 8
    $region29: #{unet_apply.8} parent=1 // pred_fallthru
      _
    // Predicated region
    $region30: #{unet_apply.8} parent=1 // pred_check
      _
    $region31: #{unet_apply.8} parent=1 // pred_check_branch
      %110 = sbr.rel (0) target = $region33
    $region32: #{unet_apply.8} parent=1 // pred_region
      %s112 = ssub.s32 256, 256
      %113 = vsyncadd [#allocation15], %s112
      %s114 = sshll.u32 [#allocation14], 4
      %s115 = int_to_ptr.vmem [resolvable:$true] %s114
      %120 = dma.hbm_to_vmem [thread:$0]  %s7, 256, %s115, [#allocation15], 128, 128, 8
    $region33: #{unet_apply.8} parent=1 // pred_fallthru
      _
    // Predicated region
    $region34: #{unet_apply.8} parent=1 // pred_check
      _
    $region35: #{unet_apply.8} parent=1 // pred_check_branch
      %122 = sbr.rel (0) target = $region37
    $region36: #{unet_apply.8} parent=1 // pred_region
      %s124 = ssub.s32 256, 256
      %125 = vsyncadd [#allocation15], %s124
      %s126 = sshll.u32 [#allocation16], 4
      %s127 = int_to_ptr.vmem [resolvable:$true] %s126
      %132 = dma.hbm_to_vmem [thread:$0]  %s8, 256, %s127, [#allocation15], 128, 128, 8
    $region37: #{unet_apply.8} parent=1 // pred_fallthru
      _
    // Predicated region
    $region38: #{unet_apply.8} parent=1 // pred_check
      _
    $region39: #{unet_apply.8} parent=1 // pred_check_branch
      %134 = sbr.rel (0) target = $region41
    $region40: #{unet_apply.8} parent=1 // pred_region
      %s136 = ssub.s32 256, 256
      %137 = vsyncadd [#allocation18], %s136
      %s138 = sshll.u32 [#allocation17], 4
      %s139 = int_to_ptr.vmem [resolvable:$true] %s138
      %144 = dma.hbm_to_vmem [thread:$0]  %s9, 256, %s139, [#allocation18], 128, 128, 8
    $region41: #{unet_apply.8} parent=1 // pred_fallthru
      _
    // Predicated region
    $region42: #{unet_apply.8} parent=1 // pred_check
      _
    $region43: #{unet_apply.8} parent=1 // pred_check_branch
      %146 = sbr.rel (0) target = $region45
    $region44: #{unet_apply.8} parent=1 // pred_region
      %s148 = ssub.s32 256, 256
      %149 = vsyncadd [#allocation18], %s148
      %s150 = sshll.u32 [#allocation19], 4
      %s151 = int_to_ptr.vmem [resolvable:$true] %s150
      %156 = dma.hbm_to_vmem [thread:$0]  %s10, 256, %s151, [#allocation18], 128, 128, 8
    $region45: #{unet_apply.8} parent=1 // pred_fallthru
      _
    // Predicated region
    $region46: #{unet_apply.8} parent=1 // pred_check
      _
    $region47: #{unet_apply.8} parent=1 // pred_check_branch
      %158 = sbr.rel (0) target = $region49
    $region48: #{unet_apply.8} parent=1 // pred_region
      %s160 = ssub.s32 256, 256
      %161 = vsyncadd [#allocation21], %s160
      %s162 = sshll.u32 [#allocation20], 4
      %s163 = int_to_ptr.vmem [resolvable:$true] %s162
      %168 = dma.hbm_to_vmem [thread:$0]  %s11, 256, %s163, [#allocation21], 128, 128, 8
    $region49: #{unet_apply.8} parent=1 // pred_fallthru
      _
    // Predicated region
    $region50: #{unet_apply.8} parent=1 // pred_check
      _
    $region51: #{unet_apply.8} parent=1 // pred_check_branch
      %170 = sbr.rel (0) target = $region53
    $region52: #{unet_apply.8} parent=1 // pred_region
      %171 = dma.done [#allocation3], 256
    $region53: #{unet_apply.8} parent=1 // pred_fallthru
      _
    // Predicated region
    $region54: #{unet_apply.8} parent=1 // pred_check
      _
    $region55: #{unet_apply.8} parent=1 // pred_check_branch
      %173 = sbr.rel (0) target = $region57
    $region56: #{unet_apply.8} parent=1 // pred_region
      %174 = dma.done [#allocation6], 256
    $region57: #{unet_apply.8} parent=1 // pred_fallthru
      _
    // Predicated region
    $region58: #{unet_apply.8} parent=1 // pred_check
      _
    $region59: #{unet_apply.8} parent=1 // pred_check_branch
      %176 = sbr.rel (0) target = $region61
    $region60: #{unet_apply.8} parent=1 // pred_region
      %177 = dma.done [#allocation6], 256
    $region61: #{unet_apply.8} parent=1 // pred_fallthru
      _
    // Predicated region
    $region62: #{unet_apply.8} parent=1 // pred_check
      _
    $region63: #{unet_apply.8} parent=1 // pred_check_branch
      %179 = sbr.rel (0) target = $region65
    $region64: #{unet_apply.8} parent=1 // pred_region
      %180 = dma.done [#allocation9], 256
    $region65: #{unet_apply.8} parent=1 // pred_fallthru
      _
    // Predicated region
    $region66: #{unet_apply.8} parent=1 // pred_check
      _
    $region67: #{unet_apply.8} parent=1 // pred_check_branch
      %182 = sbr.rel (0) target = $region69
    $region68: #{unet_apply.8} parent=1 // pred_region
      %183 = dma.done [#allocation9], 256
    $region69: #{unet_apply.8} parent=1 // pred_fallthru
      _
    // Predicated region
    $region70: #{unet_apply.8} parent=1 // pred_check
      _
    $region71: #{unet_apply.8} parent=1 // pred_check_branch
      %185 = sbr.rel (0) target = $region73
    $region72: #{unet_apply.8} parent=1 // pred_region
      %186 = dma.done [#allocation12], 256
    $region73: #{unet_apply.8} parent=1 // pred_fallthru
      _
    // Predicated region
    $region74: #{unet_apply.8} parent=1 // pred_check
      _
    $region75: #{unet_apply.8} parent=1 // pred_check_branch
      %188 = sbr.rel (0) target = $region77
    $region76: #{unet_apply.8} parent=1 // pred_region
      %189 = dma.done [#allocation12], 256
    $region77: #{unet_apply.8} parent=1 // pred_fallthru
      _
    // Predicated region
    $region78: #{unet_apply.8} parent=1 // pred_check
      _
    $region79: #{unet_apply.8} parent=1 // pred_check_branch
      %191 = sbr.rel (0) target = $region81
    $region80: #{unet_apply.8} parent=1 // pred_region
      %192 = dma.done [#allocation15], 256
    $region81: #{unet_apply.8} parent=1 // pred_fallthru
      _
    // Predicated region
    $region82: #{unet_apply.8} parent=1 // pred_check
      _
    $region83: #{unet_apply.8} parent=1 // pred_check_branch
      %194 = sbr.rel (0) target = $region85
    $region84: #{unet_apply.8} parent=1 // pred_region
      %195 = dma.done [#allocation15], 256
    $region85: #{unet_apply.8} parent=1 // pred_fallthru
      _
    // Predicated region
    $region86: #{unet_apply.8} parent=1 // pred_check
      _
    $region87: #{unet_apply.8} parent=1 // pred_check_branch
      %197 = sbr.rel (0) target = $region89
    $region88: #{unet_apply.8} parent=1 // pred_region
      %198 = dma.done [#allocation18], 256
    $region89: #{unet_apply.8} parent=1 // pred_fallthru
      _
    // Predicated region
    $region90: #{unet_apply.8} parent=1 // pred_check
      _
    $region91: #{unet_apply.8} parent=1 // pred_check_branch
      %200 = sbr.rel (0) target = $region93
    $region92: #{unet_apply.8} parent=1 // pred_region
      %201 = dma.done [#allocation18], 256
    $region93: #{unet_apply.8} parent=1 // pred_fallthru
      _
    // Predicated region
    $region94: #{unet_apply.8} parent=1 // pred_check
      _
    $region95: #{unet_apply.8} parent=1 // pred_check_branch
      %203 = sbr.rel (0) target = $region97
    $region96: #{unet_apply.8} parent=1 // pred_region
      %204 = dma.done [#allocation21], 256
    $region97: #{unet_apply.8} parent=1 // pred_fallthru
      _
    %v206 = vld [vmem:[#allocation2] sm:$0xff]
    %v207 = vld [vmem:[#allocation2 + $0x8] sm:$0xff]
    %v208 = vld [vmem:[#allocation5] sm:$0xff]
    %v209 = vld [vmem:[#allocation5 + $0x8] sm:$0xff]
    %v210 = vmax.f32 %v206, %v208
    %v211 = vmax.f32 %v207, %v209
    %v212 = vld [vmem:[#allocation7] sm:$0xff]
    %v213 = vld [vmem:[#allocation7 + $0x8] sm:$0xff]
    %v214 = vld [vmem:[#allocation8] sm:$0xff]
    %v215 = vld [vmem:[#allocation8 + $0x8] sm:$0xff]
    %v216 = vmax.f32 %v212, %v214
    %v217 = vmax.f32 %v213, %v215
    %v218 = vmax.f32 %v210, %v216
    %v219 = vmax.f32 %v211, %v217
    %v220 = vld [vmem:[#allocation10] sm:$0xff]
    %v221 = vld [vmem:[#allocation10 + $0x8] sm:$0xff]
    %v222 = vld [vmem:[#allocation11] sm:$0xff]
    %v223 = vld [vmem:[#allocation11 + $0x8] sm:$0xff]
    %v224 = vld [vmem:[#allocation13] sm:$0xff]
    %v225 = vld [vmem:[#allocation13 + $0x8] sm:$0xff]
    %v226 = vld [vmem:[#allocation14] sm:$0xff]
    %v227 = vld [vmem:[#allocation14 + $0x8] sm:$0xff]
    %v228 = vlaneseq
    %v229 = vand.u32 %v228, 127
    %v230 = vand.u32 %v229, 3
    %v231 = vshra.s32 %v229, 2
    %v232 = vand.u32 %v231, 3
    %vm233 = vcmask 1047808
    %234 = vrot.lane.b32.xlu0 %v218, 32
    %v235 = vpop.permute.xlu0 %234
    %v236 = vsel %vm233, %v235, %v218
    %237 = vrot.lane.b32.xlu0 %v219, 32
    %v238 = vpop.permute.xlu0 %237
    %v239 = vsel %vm233, %v238, %v219
    %240 = vrot.lane.b32.xlu0 %v236, 32
    %v241 = vpop.permute.xlu0 %240
    %242 = vrot.lane.b32.xlu0 %v239, 32
    %v243 = vpop.permute.xlu0 %242
    %v244 = vsel %vm233, %v241, %v218
    %v245 = vsel %vm233, %v243, %v219
    %vm246 = vcmp.ge.s32.totalorder %v232, 1
    %vm247 = vcmp.ge.s32.totalorder %v230, 1
    %vm248 = vmand %vm246, %vm247
    %251 = vrot.lane.b32.xlu0 %v244, 101
    %v252 = vpop.permute.xlu0 %251
    %253 = vrot.lane.b32.xlu0 %v245, 101
    %v254 = vpop.permute.xlu0 %253
    %v257 = vsel %vm248, %v252, 0.0
    %v258 = vsel %vm248, %v254, 0.0
    %259 = vrot.lane.b32.xlu0 %v244, 100
    %v260 = vpop.permute.xlu0 %259
    %261 = vrot.lane.b32.xlu0 %v245, 100
    %v262 = vpop.permute.xlu0 %261
    %v265 = vsel %vm246, %v260, 0.0
    %v266 = vsel %vm246, %v262, 0.0
    %vm267 = vcmp.lt.s32.totalorder %v230, 3
    %vm268 = vmand %vm246, %vm267
    %269 = vrot.lane.b32.xlu0 %v244, 99
    %v270 = vpop.permute.xlu0 %269
    %271 = vrot.lane.b32.xlu0 %v245, 99
    %v272 = vpop.permute.xlu0 %271
    %v275 = vsel %vm268, %v270, 0.0
    %v276 = vsel %vm268, %v272, 0.0
    %277 = vrot.lane.b32.xlu0 %v244, 97
    %v278 = vpop.permute.xlu0 %277
    %279 = vrot.lane.b32.xlu0 %v245, 97
    %v280 = vpop.permute.xlu0 %279
    %v283 = vsel %vm247, %v278, 0.0
    %v284 = vsel %vm247, %v280, 0.0
    %285 = vrot.lane.b32.xlu0 %v244, 127
    %v286 = vpop.permute.xlu0 %285
    %287 = vrot.lane.b32.xlu0 %v245, 127
    %v288 = vpop.permute.xlu0 %287
    %v291 = vsel %vm267, %v286, 0.0
    %v292 = vsel %vm267, %v288, 0.0
    %vm293 = vcmp.lt.s32.totalorder %v232, 3
    %vm294 = vmand %vm293, %vm247
    %295 = vrot.lane.b32.xlu0 %v244, 125
    %v296 = vpop.permute.xlu0 %295
    %297 = vrot.lane.b32.xlu0 %v245, 125
    %v298 = vpop.permute.xlu0 %297
    %v301 = vsel %vm294, %v296, 0.0
    %v302 = vsel %vm294, %v298, 0.0
    %303 = vrot.lane.b32.xlu0 %v244, 124
    %v304 = vpop.permute.xlu0 %303
    %305 = vrot.lane.b32.xlu0 %v245, 124
    %v306 = vpop.permute.xlu0 %305
    %v309 = vsel %vm293, %v304, 0.0
    %v310 = vsel %vm293, %v306, 0.0
    %vm311 = vmand %vm293, %vm267
    %312 = vrot.lane.b32.xlu0 %v244, 123
    %v313 = vpop.permute.xlu0 %312
    %314 = vrot.lane.b32.xlu0 %v245, 123
    %v315 = vpop.permute.xlu0 %314
    %v318 = vsel %vm311, %v313, 0.0
    %v319 = vsel %vm311, %v315, 0.0
    %v320 = vpack.c.bf16 %v258, %v257
    %v321 = vpack.c.bf16 %v266, %v265
    %v322 = vpack.c.bf16 %v276, %v275
    %v323 = vpack.c.bf16 %v284, %v283
    %v324 = vpack.c.bf16 %v219, %v218
    %v325 = vpack.c.bf16 %v292, %v291
    %v326 = vpack.c.bf16 %v302, %v301
    %v327 = vpack.c.bf16 %v310, %v309
    %v328 = vpack.c.bf16 %v319, %v318
    %330 = vset.pattern.permute.xlu0 0
    %331 = vperm.xlu0 %330, %v222
    %v332 = vpop.permute.xlu0 %331
    %335 = vset.pattern.permute.xlu0 0
    %336 = vperm.xlu0 %335, %v223
    %v337 = vpop.permute.xlu0 %336
    %v341 = vunpack.c.l.b16 %v220
    %v342 = vunpack.c.h.b16 %v220
    %v343 = vunpack.c.l.b16 %v221
    %v344 = vunpack.c.h.b16 %v221
    %v345 = vpack.c.b16 %v343, %v341
    %v346 = vpack.c.b16 %v344, %v342
    %vm348 = vcmask 130048
    %v350 = vsel %vm348, %v346, 0
    %352 = vmatprep.subr.bf16.mxu0 0
    %353 = vmatpush1.bf16.msra.mxu0 %v320
    %354 = vmatprep.subr.bf16.mxu0 0
    %355 = vmatpush1.bf16.msra.mxu0 %v321
    %356 = vmatprep.subr.bf16.mxu0 0
    %357 = vmatpush1.bf16.msra.mxu0 %v322
    %358 = vmatprep.subr.bf16.mxu0 0
    %359 = vmatpush1.bf16.msra.mxu0 %v323
    %360 = vmatprep.subr.bf16.mxu0 0
    %361 = vmatpush1.bf16.msra.mxu0 %v324
    %362 = vmatprep.subr.bf16.mxu0 0
    %363 = vmatpush1.bf16.msra.mxu0 %v325
    %364 = vmatprep.subr.bf16.mxu0 0
    %365 = vmatpush1.bf16.msra.mxu0 %v326
    %366 = vmatprep.subr.bf16.mxu0 0
    %367 = vmatpush1.bf16.msra.mxu0 %v327
    %368 = vmatprep.subr.bf16.mxu0 0
    %369 = vmatpush1.bf16.msra.mxu0 %v328
    %370 = vmatprep.subr.bf16.mxu0 0
    %371 = vmatpush1.bf16.msra.mxu0 0
    %372 = vmatprep.subr.bf16.mxu0 0
    %373 = vmatpush1.bf16.msra.mxu0 0
    %374 = vmatprep.subr.bf16.mxu0 0
    %375 = vmatpush1.bf16.msra.mxu0 0
    %376 = vmatprep.subr.bf16.mxu0 0
    %377 = vmatpush1.bf16.msra.mxu0 0
    %378 = vmatprep.subr.bf16.mxu0 0
    %379 = vmatpush1.bf16.msra.mxu0 0
    %380 = vmatprep.subr.bf16.mxu0 0
    %381 = vmatpush1.bf16.msra.mxu0 0
    %382 = vmatprep.subr.bf16.mxu0 0
    %383 = vmatpush1.bf16.msra.mxu0 0
    %384 = vmatprep.mubr.bf16.mxu0 %v350
    %385 = vmatmul.mubr.bf16.gmra.mrb[0].mxu0 %v345
    %v386 = vpop.f32.mrb[0].mxu0
    %v387 = vadd.f32 %v332, %v386
    %v388 = vpop.f32.mrb[0].mxu0
    %v389 = vpop.f32.mrb[0].mxu0
    %v390 = vadd.f32 %v337, %v389
    %v391 = vpop.f32.mrb[0].mxu0
    %392 = vdwg.mxu0
    %vm393 = vcmask 261120
    %v394 = vsel %vm393, %v387, 0.0
    %395 = vadd.xlane.f32.xlu0 %v394
    %v396 = vpop.xlane.xlu0 %395
    %v397 = vsel %vm393, %v390, 0.0
    %398 = vadd.xlane.f32.xlu0 %v397
    %v399 = vpop.xlane.xlu0 %398
    %v400 = vmul.f32 %v396, 0.03125
    %v401 = vmul.f32 %v399, 0.03125
    %v402 = vsub.f32 %v387, %v400
    %v403 = vsub.f32 %v390, %v401
    %v404 = vmul.f32 %v402, %v402
    %v405 = vmul.f32 %v403, %v403
    %v406 = vsel %vm393, %v404, 0.0
    %407 = vadd.xlane.f32.xlu0 %v406
    %v408 = vpop.xlane.xlu0 %407
    %v409 = vsel %vm393, %v405, 0.0
    %410 = vadd.xlane.f32.xlu0 %v409
    %v411 = vpop.xlane.xlu0 %410
    %v412 = vmul.f32 %v408, 0.03125
    %v413 = vmul.f32 %v411, 0.03125
    %v414 = vadd.f32 %v412, 1e-05
    %v415 = vadd.f32 %v413, 1e-05
    %v416 = vrsqrt.pop %v414
    %v417 = vrsqrt.pop %v415
    %v418 = vmul.f32 %v224, %v416
    %v419 = vmul.f32 %v225, %v417
    %421 = vset.pattern.permute.xlu0 0
    %422 = vperm.xlu0 %421, %v418
    %v423 = vpop.permute.xlu0 %422
    %426 = vset.pattern.permute.xlu0 0
    %427 = vperm.xlu0 %426, %v419
    %v428 = vpop.permute.xlu0 %427
    %v430 = vmul.f32 %v402, %v423
    %v431 = vmul.f32 %v403, %v428
    %433 = vset.pattern.permute.xlu0 0
    %434 = vperm.xlu0 %433, %v226
    %v435 = vpop.permute.xlu0 %434
    %438 = vset.pattern.permute.xlu0 0
    %439 = vperm.xlu0 %438, %v227
    %v440 = vpop.permute.xlu0 %439
    %v442 = vadd.f32 %v430, %v435
    %v443 = vadd.f32 %v431, %v440
    %v444 = vmax.f32 %v442, 0.0
    %v445 = vmax.f32 %v443, 0.0
    %v446 = vld [vmem:[#allocation16] sm:$0xff]
    %v447 = vld [vmem:[#allocation16 + $0x8] sm:$0xff]
    %v448 = vld [vmem:[#allocation17] sm:$0xff]
    %v449 = vld [vmem:[#allocation17 + $0x8] sm:$0xff]
    %v450 = vld [vmem:[#allocation19] sm:$0xff]
    %v451 = vld [vmem:[#allocation19 + $0x8] sm:$0xff]
    %v452 = vld [vmem:[#allocation20] sm:$0xff]
    %v453 = vld [vmem:[#allocation20 + $0x8] sm:$0xff]
    %454 = vrot.lane.b32.xlu0 %v444, 32
    %v455 = vpop.permute.xlu0 %454
    %v456 = vsel %vm233, %v455, %v444
    %457 = vrot.lane.b32.xlu0 %v445, 32
    %v458 = vpop.permute.xlu0 %457
    %v459 = vsel %vm233, %v458, %v445
    %460 = vrot.lane.b32.xlu0 %v456, 32
    %v461 = vpop.permute.xlu0 %460
    %462 = vrot.lane.b32.xlu0 %v459, 32
    %v463 = vpop.permute.xlu0 %462
    %v464 = vsel %vm233, %v461, %v444
    %v465 = vsel %vm233, %v463, %v445
    %468 = vrot.lane.b32.xlu0 %v464, 101
    %v469 = vpop.permute.xlu0 %468
    %470 = vrot.lane.b32.xlu0 %v465, 101
    %v471 = vpop.permute.xlu0 %470
    %v474 = vsel %vm248, %v469, 0.0
    %v475 = vsel %vm248, %v471, 0.0
    %476 = vrot.lane.b32.xlu0 %v464, 100
    %v477 = vpop.permute.xlu0 %476
    %478 = vrot.lane.b32.xlu0 %v465, 100
    %v479 = vpop.permute.xlu0 %478
    %v482 = vsel %vm246, %v477, 0.0
    %v483 = vsel %vm246, %v479, 0.0
    %484 = vrot.lane.b32.xlu0 %v464, 99
    %v485 = vpop.permute.xlu0 %484
    %486 = vrot.lane.b32.xlu0 %v465, 99
    %v487 = vpop.permute.xlu0 %486
    %v490 = vsel %vm268, %v485, 0.0
    %v491 = vsel %vm268, %v487, 0.0
    %492 = vrot.lane.b32.xlu0 %v464, 97
    %v493 = vpop.permute.xlu0 %492
    %494 = vrot.lane.b32.xlu0 %v465, 97
    %v495 = vpop.permute.xlu0 %494
    %v498 = vsel %vm247, %v493, 0.0
    %v499 = vsel %vm247, %v495, 0.0
    %500 = vrot.lane.b32.xlu0 %v464, 127
    %v501 = vpop.permute.xlu0 %500
    %502 = vrot.lane.b32.xlu0 %v465, 127
    %v503 = vpop.permute.xlu0 %502
    %v506 = vsel %vm267, %v501, 0.0
    %v507 = vsel %vm267, %v503, 0.0
    %508 = vrot.lane.b32.xlu0 %v464, 125
    %v509 = vpop.permute.xlu0 %508
    %510 = vrot.lane.b32.xlu0 %v465, 125
    %v511 = vpop.permute.xlu0 %510
    %v514 = vsel %vm294, %v509, 0.0
    %v515 = vsel %vm294, %v511, 0.0
    %516 = vrot.lane.b32.xlu0 %v464, 124
    %v517 = vpop.permute.xlu0 %516
    %518 = vrot.lane.b32.xlu0 %v465, 124
    %v519 = vpop.permute.xlu0 %518
    %v522 = vsel %vm293, %v517, 0.0
    %v523 = vsel %vm293, %v519, 0.0
    %524 = vrot.lane.b32.xlu0 %v464, 123
    %v525 = vpop.permute.xlu0 %524
    %526 = vrot.lane.b32.xlu0 %v465, 123
    %v527 = vpop.permute.xlu0 %526
    %v530 = vsel %vm311, %v525, 0.0
    %v531 = vsel %vm311, %v527, 0.0
    %v532 = vpack.c.bf16 %v475, %v474
    %v533 = vpack.c.bf16 %v483, %v482
    %v534 = vpack.c.bf16 %v491, %v490
    %v535 = vpack.c.bf16 %v499, %v498
    %v536 = vpack.c.bf16 %v445, %v444
    %v537 = vpack.c.bf16 %v507, %v506
    %v538 = vpack.c.bf16 %v515, %v514
    %v539 = vpack.c.bf16 %v523, %v522
    %v540 = vpack.c.bf16 %v531, %v530
    %542 = vset.pattern.permute.xlu0 0
    %543 = vperm.xlu0 %542, %v448
    %v544 = vpop.permute.xlu0 %543
    %547 = vset.pattern.permute.xlu0 0
    %548 = vperm.xlu0 %547, %v449
    %v549 = vpop.permute.xlu0 %548
    %v553 = vunpack.c.l.b16 %v446
    %v554 = vunpack.c.h.b16 %v446
    %v555 = vunpack.c.l.b16 %v447
    %v556 = vunpack.c.h.b16 %v447
    %v557 = vpack.c.b16 %v555, %v553
    %v558 = vpack.c.b16 %v556, %v554
    %v561 = vsel %vm348, %v558, 0
    %563 = vmatprep.subr.bf16.mxu0 0
    %564 = vmatpush1.bf16.msra.mxu0 %v532
    %565 = vmatprep.subr.bf16.mxu0 0
    %566 = vmatpush1.bf16.msra.mxu0 %v533
    %567 = vmatprep.subr.bf16.mxu0 0
    %568 = vmatpush1.bf16.msra.mxu0 %v534
    %569 = vmatprep.subr.bf16.mxu0 0
    %570 = vmatpush1.bf16.msra.mxu0 %v535
    %571 = vmatprep.subr.bf16.mxu0 0
    %572 = vmatpush1.bf16.msra.mxu0 %v536
    %573 = vmatprep.subr.bf16.mxu0 0
    %574 = vmatpush1.bf16.msra.mxu0 %v537
    %575 = vmatprep.subr.bf16.mxu0 0
    %576 = vmatpush1.bf16.msra.mxu0 %v538
    %577 = vmatprep.subr.bf16.mxu0 0
    %578 = vmatpush1.bf16.msra.mxu0 %v539
    %579 = vmatprep.subr.bf16.mxu0 0
    %580 = vmatpush1.bf16.msra.mxu0 %v540
    %581 = vmatprep.subr.bf16.mxu0 0
    %582 = vmatpush1.bf16.msra.mxu0 0
    %583 = vmatprep.subr.bf16.mxu0 0
    %584 = vmatpush1.bf16.msra.mxu0 0
    %585 = vmatprep.subr.bf16.mxu0 0
    %586 = vmatpush1.bf16.msra.mxu0 0
    %587 = vmatprep.subr.bf16.mxu0 0
    %588 = vmatpush1.bf16.msra.mxu0 0
    %589 = vmatprep.subr.bf16.mxu0 0
    %590 = vmatpush1.bf16.msra.mxu0 0
    %591 = vmatprep.subr.bf16.mxu0 0
    %592 = vmatpush1.bf16.msra.mxu0 0
    %593 = vmatprep.subr.bf16.mxu0 0
    %594 = vmatpush1.bf16.msra.mxu0 0
    %595 = vmatprep.mubr.bf16.mxu0 %v561
    %596 = vmatmul.mubr.bf16.gmra.mrb[0].mxu0 %v557
    %v597 = vpop.f32.mrb[0].mxu0
    %v598 = vadd.f32 %v544, %v597
    %v599 = vpop.f32.mrb[0].mxu0
    %v600 = vpop.f32.mrb[0].mxu0
    %v601 = vadd.f32 %v549, %v600
    %v602 = vpop.f32.mrb[0].mxu0
    %603 = vdwg.mxu0
    %v604 = vsel %vm393, %v598, 0.0
    %605 = vadd.xlane.f32.xlu0 %v604
    %v606 = vpop.xlane.xlu0 %605
    %v607 = vsel %vm393, %v601, 0.0
    %608 = vadd.xlane.f32.xlu0 %v607
    %v609 = vpop.xlane.xlu0 %608
    %v610 = vmul.f32 %v606, 0.03125
    %v611 = vmul.f32 %v609, 0.03125
    %v612 = vsub.f32 %v598, %v610
    %v613 = vsub.f32 %v601, %v611
    %v614 = vmul.f32 %v612, %v612
    %v615 = vmul.f32 %v613, %v613
    %v616 = vsel %vm393, %v614, 0.0
    %617 = vadd.xlane.f32.xlu0 %v616
    %v618 = vpop.xlane.xlu0 %617
    %v619 = vsel %vm393, %v615, 0.0
    %620 = vadd.xlane.f32.xlu0 %v619
    %v621 = vpop.xlane.xlu0 %620
    %v622 = vmul.f32 %v618, 0.03125
    %v623 = vmul.f32 %v621, 0.03125
    %v624 = vadd.f32 %v622, 1e-05
    %v625 = vadd.f32 %v623, 1e-05
    %v626 = vrsqrt.pop %v624
    %v627 = vrsqrt.pop %v625
    %v628 = vmul.f32 %v450, %v626
    %v629 = vmul.f32 %v451, %v627
    %631 = vset.pattern.permute.xlu0 0
    %632 = vperm.xlu0 %631, %v628
    %v633 = vpop.permute.xlu0 %632
    %636 = vset.pattern.permute.xlu0 0
    %637 = vperm.xlu0 %636, %v629
    %v638 = vpop.permute.xlu0 %637
    %v640 = vmul.f32 %v612, %v633
    %v641 = vmul.f32 %v613, %v638
    %643 = vset.pattern.permute.xlu0 0
    %644 = vperm.xlu0 %643, %v452
    %v645 = vpop.permute.xlu0 %644
    %648 = vset.pattern.permute.xlu0 0
    %649 = vperm.xlu0 %648, %v453
    %v650 = vpop.permute.xlu0 %649
    %v652 = vadd.f32 %v640, %v645
    %v653 = vadd.f32 %v641, %v650
    %v654 = vmax.f32 %v652, 0.0
    %v655 = vmax.f32 %v653, 0.0
    %656 = vst.msk [vmem:[#allocation22] sm:$0xff] %vm393, %v654
    %657 = vst.msk [vmem:[#allocation22 + $0x8] sm:$0xff] %vm393, %v655
    // Predicated region
    $region98: #{unet_apply.8} parent=1 // pred_check
      _
    $region99: #{unet_apply.8} parent=1 // pred_check_branch
      %659 = sbr.rel (0) target = $region101
    $region100: #{unet_apply.8} parent=1 // pred_region
      %s661 = ssub.s32 256, 256
      %662 = vsyncadd [#allocation4], %s661
      %s663 = sshll.u32 [#allocation22], 4
      %s664 = int_to_ptr.vmem [resolvable:$true] %s663
      %669 = dma.vmem_to_hbm [thread:$0]  %s664, 256, %s12, [#allocation4], 128, 128, 8
    $region101: #{unet_apply.8} parent=1 // pred_fallthru
      _
    // Predicated region
    $region102: #{unet_apply.8} parent=1 // pred_check
      _
    $region103: #{unet_apply.8} parent=1 // pred_check_branch
      %671 = sbr.rel (0) target = $region105
    $region104: #{unet_apply.8} parent=1 // pred_region
      %672 = dma.done [#allocation4], 256
    $region105: #{unet_apply.8} parent=1 // pred_fallthru
      _
    %673 = vsyncpa [#allocation3], 1
    %674 = vsyncpa [#allocation6], 1
    %675 = vsyncpa [#allocation9], 1
    %676 = vsyncpa [#allocation12], 1
    %677 = vsyncpa [#allocation15], 1
    %678 = vsyncpa [#allocation18], 1
    %679 = vsyncpa [#allocation21], 1
    %680 = vsyncpa [#allocation4], 1

// kernel: unet_apply.9
$region0: #{unet_apply.9}
  #allocation0 [shape = 'u32[]', space=smem, size = 0x4, offset = 0x4, fixed_abs, tag = 'smem constant byte address 0x4 - core index']
  #allocation1 [shape = 'u32[144,128]{1,0:T(1,128)}', space=vmem, size = 0x12000, scoped, tag = 'internal scratch']
  %s0 = inlined_call_operand.hbm [shape: f32[16,128], index: 0, kind: input, shape index: {}]
  %s1 = inlined_call_operand.hbm [shape: f32[16,128], index: 1, kind: input, shape index: {}]
  %s2 = inlined_call_operand.hbm [shape: bf16[8,288], index: 2, kind: input, shape index: {}]
  %s3 = inlined_call_operand.hbm [shape: f32[8,1], index: 3, kind: input, shape index: {}]
  %s4 = inlined_call_operand.hbm [shape: f32[8,1], index: 4, kind: input, shape index: {}]
  %s5 = inlined_call_operand.hbm [shape: f32[8,1], index: 5, kind: input, shape index: {}]
  %s6 = inlined_call_operand.hbm [shape: bf16[8,72], index: 6, kind: input, shape index: {}]
  %s7 = inlined_call_operand.hbm [shape: f32[8,1], index: 7, kind: input, shape index: {}]
  %s8 = inlined_call_operand.hbm [shape: f32[8,1], index: 8, kind: input, shape index: {}]
  %s9 = inlined_call_operand.hbm [shape: f32[8,1], index: 9, kind: input, shape index: {}]
  %s10 = inlined_call_operand.hbm [shape: f32[8,128], index: 10, kind: output, shape index: {}]
  %s11 = sld [smem:[#allocation0]]
  $region90: #{unet_apply.9} parent=0
    _
  %s13 = ssub.s32 1, %s11
  %s14 = scalar_select 0, %s13, %s11
  $region1: #{unet_apply.9} parent=0
    #allocation2 [shape = 'u8[8192]{0}', space=vmem, size = 0x2000, scoped, tag = 'input window, operand 0, single buffered']
    #allocation3 [shape = 's32[1]{0}', space=sflag, size = 0x4, scoped, tag = 'scoped memory for unet_apply.9']
    #allocation4 [shape = 's32[1]{0}', space=sflag, size = 0x4, scoped, tag = 'scoped memory for unet_apply.9']
    #allocation5 [shape = 'u8[8192]{0}', space=vmem, size = 0x2000, scoped, tag = 'input window, operand 1, single buffered']
    #allocation6 [shape = 's32[1]{0}', space=sflag, size = 0x4, scoped, tag = 'scoped memory for unet_apply.9']
    #allocation7 [shape = 'u8[6144]{0}', space=vmem, size = 0x1800, scoped, tag = 'input window, operand 2, single buffered']
    #allocation8 [shape = 'u8[4096]{0}', space=vmem, size = 0x1000, scoped, tag = 'input window, operand 3, single buffered']
    #allocation9 [shape = 's32[1]{0}', space=sflag, size = 0x4, scoped, tag = 'scoped memory for unet_apply.9']
    #allocation10 [shape = 'u8[4096]{0}', space=vmem, size = 0x1000, scoped, tag = 'input window, operand 4, single buffered']
    #allocation11 [shape = 'u8[4096]{0}', space=vmem, size = 0x1000, scoped, tag = 'input window, operand 5, single buffered']
    #allocation12 [shape = 's32[1]{0}', space=sflag, size = 0x4, scoped, tag = 'scoped memory for unet_apply.9']
    #allocation13 [shape = 'u8[2048]{0}', space=vmem, size = 0x800, scoped, tag = 'input window, operand 6, single buffered']
    #allocation14 [shape = 'u8[4096]{0}', space=vmem, size = 0x1000, scoped, tag = 'input window, operand 7, single buffered']
    #allocation15 [shape = 's32[1]{0}', space=sflag, size = 0x4, scoped, tag = 'scoped memory for unet_apply.9']
    #allocation16 [shape = 'u8[4096]{0}', space=vmem, size = 0x1000, scoped, tag = 'input window, operand 8, single buffered']
    #allocation17 [shape = 'u8[4096]{0}', space=vmem, size = 0x1000, scoped, tag = 'input window, operand 9, single buffered']
    #allocation18 [shape = 's32[1]{0}', space=sflag, size = 0x4, scoped, tag = 'scoped memory for unet_apply.9']
    #allocation19 [shape = 'u8[4096]{0}', space=vmem, size = 0x1000, scoped, tag = 'output window, operand 0, single buffered']
    %15 = vsyncpa [#allocation3], 0
    %16 = vsyncpa [#allocation6], 0
    %17 = vsyncpa [#allocation9], 0
    %18 = vsyncpa [#allocation12], 0
    %19 = vsyncpa [#allocation15], 0
    %20 = vsyncpa [#allocation18], 0
    %21 = vsyncpa [#allocation4], 0
    // Predicated region
    $region2: #{unet_apply.9} parent=1 // pred_check
      _
    $region3: #{unet_apply.9} parent=1 // pred_check_branch
      %23 = sbr.rel (0) target = $region5
    $region4: #{unet_apply.9} parent=1 // pred_region
      %s25 = ssub.s32 256, 256
      %26 = vsyncadd [#allocation3], %s25
      %s27 = sshll.u32 [#allocation2], 4
      %s28 = int_to_ptr.vmem [resolvable:$true] %s27
      %33 = dma.hbm_to_vmem [thread:$0]  %s0, 256, %s28, [#allocation3], 128, 128, 8
    $region5: #{unet_apply.9} parent=1 // pred_fallthru
      _
    // Predicated region
    $region6: #{unet_apply.9} parent=1 // pred_check
      _
    $region7: #{unet_apply.9} parent=1 // pred_check_branch
      %35 = sbr.rel (0) target = $region9
    $region8: #{unet_apply.9} parent=1 // pred_region
      %s37 = ssub.s32 256, 256
      %38 = vsyncadd [#allocation6], %s37
      %s39 = sshll.u32 [#allocation5], 4
      %s40 = int_to_ptr.vmem [resolvable:$true] %s39
      %45 = dma.hbm_to_vmem [thread:$0]  %s1, 256, %s40, [#allocation6], 128, 128, 8
    $region9: #{unet_apply.9} parent=1 // pred_fallthru
      _
    // Predicated region
    $region10: #{unet_apply.9} parent=1 // pred_check
      _
    $region11: #{unet_apply.9} parent=1 // pred_check_branch
      %47 = sbr.rel (0) target = $region13
    $region12: #{unet_apply.9} parent=1 // pred_region
      %s49 = ssub.s32 192, 192
      %50 = vsyncadd [#allocation6], %s49
      %s52 = sshll.u32 [#allocation7], 4
      %s53 = int_to_ptr.vmem [resolvable:$true] %s52
      %55 = dma.hbm_to_vmem [thread:$0]  %s2, 192, %s53, [#allocation6]
    $region13: #{unet_apply.9} parent=1 // pred_fallthru
      _
    // Predicated region
    $region14: #{unet_apply.9} parent=1 // pred_check
      _
    $region15: #{unet_apply.9} parent=1 // pred_check_branch
      %57 = sbr.rel (0) target = $region17
    $region16: #{unet_apply.9} parent=1 // pred_region
      %s59 = ssub.s32 128, 128
      %60 = vsyncadd [#allocation9], %s59
      %s62 = sshll.u32 [#allocation8], 4
      %s63 = int_to_ptr.vmem [resolvable:$true] %s62
      %65 = dma.hbm_to_vmem [thread:$0]  %s3, 128, %s63, [#allocation9]
    $region17: #{unet_apply.9} parent=1 // pred_fallthru
      _
    // Predicated region
    $region18: #{unet_apply.9} parent=1 // pred_check
      _
    $region19: #{unet_apply.9} parent=1 // pred_check_branch
      %67 = sbr.rel (0) target = $region21
    $region20: #{unet_apply.9} parent=1 // pred_region
      %s69 = ssub.s32 128, 128
      %70 = vsyncadd [#allocation9], %s69
      %s72 = sshll.u32 [#allocation10], 4
      %s73 = int_to_ptr.vmem [resolvable:$true] %s72
      %75 = dma.hbm_to_vmem [thread:$0]  %s4, 128, %s73, [#allocation9]
    $region21: #{unet_apply.9} parent=1 // pred_fallthru
      _
    // Predicated region
    $region22: #{unet_apply.9} parent=1 // pred_check
      _
    $region23: #{unet_apply.9} parent=1 // pred_check_branch
      %77 = sbr.rel (0) target = $region25
    $region24: #{unet_apply.9} parent=1 // pred_region
      %s79 = ssub.s32 128, 128
      %80 = vsyncadd [#allocation12], %s79
      %s82 = sshll.u32 [#allocation11], 4
      %s83 = int_to_ptr.vmem [resolvable:$true] %s82
      %85 = dma.hbm_to_vmem [thread:$0]  %s5, 128, %s83, [#allocation12]
    $region25: #{unet_apply.9} parent=1 // pred_fallthru
      _
    // Predicated region
    $region26: #{unet_apply.9} parent=1 // pred_check
      _
    $region27: #{unet_apply.9} parent=1 // pred_check_branch
      %87 = sbr.rel (0) target = $region29
    $region28: #{unet_apply.9} parent=1 // pred_region
      %s89 = ssub.s32 64, 64
      %90 = vsyncadd [#allocation12], %s89
      %s92 = sshll.u32 [#allocation13], 4
      %s93 = int_to_ptr.vmem [resolvable:$true] %s92
      %95 = dma.hbm_to_vmem [thread:$0]  %s6, 64, %s93, [#allocation12]
    $region29: #{unet_apply.9} parent=1 // pred_fallthru
      _
    // Predicated region
    $region30: #{unet_apply.9} parent=1 // pred_check
      _
    $region31: #{unet_apply.9} parent=1 // pred_check_branch
      %97 = sbr.rel (0) target = $region33
    $region32: #{unet_apply.9} parent=1 // pred_region
      %s99 = ssub.s32 128, 128
      %100 = vsyncadd [#allocation15], %s99
      %s102 = sshll.u32 [#allocation14], 4
      %s103 = int_to_ptr.vmem [resolvable:$true] %s102
      %105 = dma.hbm_to_vmem [thread:$0]  %s7, 128, %s103, [#allocation15]
    $region33: #{unet_apply.9} parent=1 // pred_fallthru
      _
    // Predicated region
    $region34: #{unet_apply.9} parent=1 // pred_check
      _
    $region35: #{unet_apply.9} parent=1 // pred_check_branch
      %107 = sbr.rel (0) target = $region37
    $region36: #{unet_apply.9} parent=1 // pred_region
      %s109 = ssub.s32 128, 128
      %110 = vsyncadd [#allocation15], %s109
      %s112 = sshll.u32 [#allocation16], 4
      %s113 = int_to_ptr.vmem [resolvable:$true] %s112
      %115 = dma.hbm_to_vmem [thread:$0]  %s8, 128, %s113, [#allocation15]
    $region37: #{unet_apply.9} parent=1 // pred_fallthru
      _
    // Predicated region
    $region38: #{unet_apply.9} parent=1 // pred_check
      _
    $region39: #{unet_apply.9} parent=1 // pred_check_branch
      %117 = sbr.rel (0) target = $region41
    $region40: #{unet_apply.9} parent=1 // pred_region
      %s119 = ssub.s32 128, 128
      %120 = vsyncadd [#allocation18], %s119
      %s122 = sshll.u32 [#allocation17], 4
      %s123 = int_to_ptr.vmem [resolvable:$true] %s122
      %125 = dma.hbm_to_vmem [thread:$0]  %s9, 128, %s123, [#allocation18]
    $region41: #{unet_apply.9} parent=1 // pred_fallthru
      _
    // Predicated region
    $region42: #{unet_apply.9} parent=1 // pred_check
      _
    $region43: #{unet_apply.9} parent=1 // pred_check_branch
      %127 = sbr.rel (0) target = $region45
    $region44: #{unet_apply.9} parent=1 // pred_region
      %128 = dma.done [#allocation3], 256
    $region45: #{unet_apply.9} parent=1 // pred_fallthru
      _
    // Predicated region
    $region46: #{unet_apply.9} parent=1 // pred_check
      _
    $region47: #{unet_apply.9} parent=1 // pred_check_branch
      %130 = sbr.rel (0) target = $region49
    $region48: #{unet_apply.9} parent=1 // pred_region
      %131 = dma.done [#allocation6], 256
    $region49: #{unet_apply.9} parent=1 // pred_fallthru
      _
    // Predicated region
    $region50: #{unet_apply.9} parent=1 // pred_check
      _
    $region51: #{unet_apply.9} parent=1 // pred_check_branch
      %133 = sbr.rel (0) target = $region53
    $region52: #{unet_apply.9} parent=1 // pred_region
      %134 = dma.done [#allocation6], 192
    $region53: #{unet_apply.9} parent=1 // pred_fallthru
      _
    // Predicated region
    $region54: #{unet_apply.9} parent=1 // pred_check
      _
    $region55: #{unet_apply.9} parent=1 // pred_check_branch
      %136 = sbr.rel (0) target = $region57
    $region56: #{unet_apply.9} parent=1 // pred_region
      %137 = dma.done [#allocation9], 128
    $region57: #{unet_apply.9} parent=1 // pred_fallthru
      _
    // Predicated region
    $region58: #{unet_apply.9} parent=1 // pred_check
      _
    $region59: #{unet_apply.9} parent=1 // pred_check_branch
      %139 = sbr.rel (0) target = $region61
    $region60: #{unet_apply.9} parent=1 // pred_region
      %140 = dma.done [#allocation9], 128
    $region61: #{unet_apply.9} parent=1 // pred_fallthru
      _
    // Predicated region
    $region62: #{unet_apply.9} parent=1 // pred_check
      _
    $region63: #{unet_apply.9} parent=1 // pred_check_branch
      %142 = sbr.rel (0) target = $region65
    $region64: #{unet_apply.9} parent=1 // pred_region
      %143 = dma.done [#allocation12], 128
    $region65: #{unet_apply.9} parent=1 // pred_fallthru
      _
    // Predicated region
    $region66: #{unet_apply.9} parent=1 // pred_check
      _
    $region67: #{unet_apply.9} parent=1 // pred_check_branch
      %145 = sbr.rel (0) target = $region69
    $region68: #{unet_apply.9} parent=1 // pred_region
      %146 = dma.done [#allocation12], 64
    $region69: #{unet_apply.9} parent=1 // pred_fallthru
      _
    // Predicated region
    $region70: #{unet_apply.9} parent=1 // pred_check
      _
    $region71: #{unet_apply.9} parent=1 // pred_check_branch
      %148 = sbr.rel (0) target = $region73
    $region72: #{unet_apply.9} parent=1 // pred_region
      %149 = dma.done [#allocation15], 128
    $region73: #{unet_apply.9} parent=1 // pred_fallthru
      _
    // Predicated region
    $region74: #{unet_apply.9} parent=1 // pred_check
      _
    $region75: #{unet_apply.9} parent=1 // pred_check_branch
      %151 = sbr.rel (0) target = $region77
    $region76: #{unet_apply.9} parent=1 // pred_region
      %152 = dma.done [#allocation15], 128
    $region77: #{unet_apply.9} parent=1 // pred_fallthru
      _
    // Predicated region
    $region78: #{unet_apply.9} parent=1 // pred_check
      _
    $region79: #{unet_apply.9} parent=1 // pred_check_branch
      %154 = sbr.rel (0) target = $region81
    $region80: #{unet_apply.9} parent=1 // pred_region
      %155 = dma.done [#allocation18], 128
    $region81: #{unet_apply.9} parent=1 // pred_fallthru
      _
    %v157 = vld [vmem:[#allocation2] sm:$0xff]
    %v158 = vld [vmem:[#allocation2 + $0x8] sm:$0xff]
    %v159 = vld [vmem:[#allocation5] sm:$0xff]
    %v160 = vld [vmem:[#allocation5 + $0x8] sm:$0xff]
    %v161 = vld [vmem:[#allocation7] sm:$0xff]
    %v162 = vld [vmem:[#allocation7 + $0x8] sm:$0xf]
    %v163 = vld [vmem:[#allocation8] sm:$0xff]
    %v164 = vld [vmem:[#allocation10] sm:$0xff]
    %v165 = vld [vmem:[#allocation11] sm:$0xff]
    %v166 = vlaneseq
    %v167 = vand.u32 %v166, 127
    %v168 = vand.u32 %v167, 7
    %v169 = vshra.s32 %v167, 3
    %v170 = vand.u32 %v169, 7
    %171 = vrot.lane.b32.xlu0 %v157, 9
    %v172 = vpop.permute.xlu0 %171
    %173 = vrot.lane.b32.xlu0 %v158, 9
    %v174 = vpop.permute.xlu0 %173
    %175 = vrot.lane.b32.xlu0 %v159, 9
    %v176 = vpop.permute.xlu0 %175
    %177 = vrot.lane.b32.xlu0 %v160, 9
    %v178 = vpop.permute.xlu0 %177
    %vm179 = vcmp.ge.s32.totalorder %v170, 1
    %vm180 = vcmp.ge.s32.totalorder %v168, 1
    %vm181 = vmand %vm179, %vm180
    %v182 = vsel %vm181, %v172, 0.0
    %v183 = vsel %vm181, %v174, 0.0
    %v184 = vsel %vm181, %v176, 0.0
    %v185 = vsel %vm181, %v178, 0.0
    %186 = vrot.lane.b32.xlu0 %v157, 8
    %v187 = vpop.permute.xlu0 %186
    %188 = vrot.lane.b32.xlu0 %v158, 8
    %v189 = vpop.permute.xlu0 %188
    %190 = vrot.lane.b32.xlu0 %v159, 8
    %v191 = vpop.permute.xlu0 %190
    %192 = vrot.lane.b32.xlu0 %v160, 8
    %v193 = vpop.permute.xlu0 %192
    %v194 = vsel %vm179, %v187, 0.0
    %v195 = vsel %vm179, %v189, 0.0
    %v196 = vsel %vm179, %v191, 0.0
    %v197 = vsel %vm179, %v193, 0.0
    %198 = vrot.lane.b32.xlu0 %v157, 7
    %v199 = vpop.permute.xlu0 %198
    %200 = vrot.lane.b32.xlu0 %v158, 7
    %v201 = vpop.permute.xlu0 %200
    %202 = vrot.lane.b32.xlu0 %v159, 7
    %v203 = vpop.permute.xlu0 %202
    %204 = vrot.lane.b32.xlu0 %v160, 7
    %v205 = vpop.permute.xlu0 %204
    %vm206 = vcmp.lt.s32.totalorder %v168, 7
    %vm207 = vmand %vm179, %vm206
    %v208 = vsel %vm207, %v199, 0.0
    %v209 = vsel %vm207, %v201, 0.0
    %v210 = vsel %vm207, %v203, 0.0
    %v211 = vsel %vm207, %v205, 0.0
    %212 = vrot.lane.b32.xlu0 %v157, 1
    %v213 = vpop.permute.xlu0 %212
    %214 = vrot.lane.b32.xlu0 %v158, 1
    %v215 = vpop.permute.xlu0 %214
    %216 = vrot.lane.b32.xlu0 %v159, 1
    %v217 = vpop.permute.xlu0 %216
    %218 = vrot.lane.b32.xlu0 %v160, 1
    %v219 = vpop.permute.xlu0 %218
    %v220 = vsel %vm180, %v213, 0.0
    %v221 = vsel %vm180, %v215, 0.0
    %v222 = vsel %vm180, %v217, 0.0
    %v223 = vsel %vm180, %v219, 0.0
    %224 = vrot.lane.b32.xlu0 %v157, 127
    %v225 = vpop.permute.xlu0 %224
    %226 = vrot.lane.b32.xlu0 %v158, 127
    %v227 = vpop.permute.xlu0 %226
    %228 = vrot.lane.b32.xlu0 %v159, 127
    %v229 = vpop.permute.xlu0 %228
    %230 = vrot.lane.b32.xlu0 %v160, 127
    %v231 = vpop.permute.xlu0 %230
    %v232 = vsel %vm206, %v225, 0.0
    %v233 = vsel %vm206, %v227, 0.0
    %v234 = vsel %vm206, %v229, 0.0
    %v235 = vsel %vm206, %v231, 0.0
    %236 = vrot.lane.b32.xlu0 %v157, 121
    %v237 = vpop.permute.xlu0 %236
    %238 = vrot.lane.b32.xlu0 %v158, 121
    %v239 = vpop.permute.xlu0 %238
    %240 = vrot.lane.b32.xlu0 %v159, 121
    %v241 = vpop.permute.xlu0 %240
    %242 = vrot.lane.b32.xlu0 %v160, 121
    %v243 = vpop.permute.xlu0 %242
    %vm244 = vcmp.lt.s32.totalorder %v170, 7
    %vm245 = vmand %vm244, %vm180
    %v246 = vsel %vm245, %v237, 0.0
    %v247 = vsel %vm245, %v239, 0.0
    %v248 = vsel %vm245, %v241, 0.0
    %v249 = vsel %vm245, %v243, 0.0
    %250 = vrot.lane.b32.xlu0 %v157, 120
    %v251 = vpop.permute.xlu0 %250
    %252 = vrot.lane.b32.xlu0 %v158, 120
    %v253 = vpop.permute.xlu0 %252
    %254 = vrot.lane.b32.xlu0 %v159, 120
    %v255 = vpop.permute.xlu0 %254
    %256 = vrot.lane.b32.xlu0 %v160, 120
    %v257 = vpop.permute.xlu0 %256
    %v258 = vsel %vm244, %v251, 0.0
    %v259 = vsel %vm244, %v253, 0.0
    %v260 = vsel %vm244, %v255, 0.0
    %v261 = vsel %vm244, %v257, 0.0
    %262 = vrot.lane.b32.xlu0 %v157, 119
    %v263 = vpop.permute.xlu0 %262
    %264 = vrot.lane.b32.xlu0 %v158, 119
    %v265 = vpop.permute.xlu0 %264
    %266 = vrot.lane.b32.xlu0 %v159, 119
    %v267 = vpop.permute.xlu0 %266
    %268 = vrot.lane.b32.xlu0 %v160, 119
    %v269 = vpop.permute.xlu0 %268
    %vm270 = vmand %vm244, %vm206
    %v271 = vsel %vm270, %v263, 0.0
    %v272 = vsel %vm270, %v265, 0.0
    %v273 = vsel %vm270, %v267, 0.0
    %v274 = vsel %vm270, %v269, 0.0
    %v275 = vpack.c.bf16 %v183, %v182
    %v276 = vpack.c.bf16 %v185, %v184
    %v277 = vpack.c.bf16 %v195, %v194
    %v278 = vpack.c.bf16 %v197, %v196
    %v279 = vpack.c.bf16 %v209, %v208
    %v280 = vpack.c.bf16 %v211, %v210
    %v281 = vpack.c.bf16 %v221, %v220
    %v282 = vpack.c.bf16 %v223, %v222
    %v283 = vpack.c.bf16 %v158, %v157
    %v284 = vpack.c.bf16 %v160, %v159
    %v285 = vpack.c.bf16 %v233, %v232
    %v286 = vpack.c.bf16 %v235, %v234
    %v287 = vpack.c.bf16 %v247, %v246
    %v288 = vpack.c.bf16 %v249, %v248
    %v289 = vpack.c.bf16 %v259, %v258
    %v290 = vpack.c.bf16 %v261, %v260
    %v291 = vpack.c.bf16 %v272, %v271
    %v292 = vpack.c.bf16 %v274, %v273
    %294 = vset.pattern.permute.xlu0 0
    %295 = vperm.xlu0 %294, %v163
    %v296 = vpop.permute.xlu0 %295
    %v300 = vunpack.c.l.b16 %v161
    %v301 = vunpack.c.h.b16 %v161
    %v302 = vunpack.c.l.b16 %v162
    %v303 = vpack.c.b16 %v300, %v300
    %v304 = vpack.c.b16 %v301, %v301
    %v305 = vpack.c.b16 %v302, %v302
    %vm308 = vcmask 261120
    %v310 = vsel %vm308, %v305, 0
    %312 = vmatprep.subr.bf16.mxu0 0
    %313 = vmatpush1.bf16.msra.mxu0 %v275
    %314 = vmatprep.subr.bf16.mxu0 0
    %315 = vmatpush1.bf16.msra.mxu0 %v276
    %316 = vmatprep.subr.bf16.mxu0 0
    %317 = vmatpush1.bf16.msra.mxu0 %v277
    %318 = vmatprep.subr.bf16.mxu0 0
    %319 = vmatpush1.bf16.msra.mxu0 %v278
    %320 = vmatprep.subr.bf16.mxu0 0
    %321 = vmatpush1.bf16.msra.mxu0 %v279
    %322 = vmatprep.subr.bf16.mxu0 0
    %323 = vmatpush1.bf16.msra.mxu0 %v280
    %324 = vmatprep.subr.bf16.mxu0 0
    %325 = vmatpush1.bf16.msra.mxu0 %v281
    %326 = vmatprep.subr.bf16.mxu0 0
    %327 = vmatpush1.bf16.msra.mxu0 %v282
    %328 = vmatprep.subr.bf16.mxu0 0
    %329 = vmatpush1.bf16.msra.mxu0 %v283
    %330 = vmatprep.subr.bf16.mxu0 0
    %331 = vmatpush1.bf16.msra.mxu0 %v284
    %332 = vmatprep.subr.bf16.mxu0 0
    %333 = vmatpush1.bf16.msra.mxu0 %v285
    %334 = vmatprep.subr.bf16.mxu0 0
    %335 = vmatpush1.bf16.msra.mxu0 %v286
    %336 = vmatprep.subr.bf16.mxu0 0
    %337 = vmatpush1.bf16.msra.mxu0 %v287
    %338 = vmatprep.subr.bf16.mxu0 0
    %339 = vmatpush1.bf16.msra.mxu0 %v288
    %340 = vmatprep.subr.bf16.mxu0 0
    %341 = vmatpush1.bf16.msra.mxu0 %v289
    %342 = vmatprep.subr.bf16.mxu0 0
    %343 = vmatpush1.bf16.msra.mxu0 %v290
    %344 = vmatprep.mubr.bf16.mxu0 %v304
    %345 = vmatmul.mubr.bf16.gmra.mrb[0].mxu0 %v303
    %v346 = vpop.f32.mrb[0].mxu0
    %v347 = vadd.f32 %v296, %v346
    %v348 = vpop.f32.mrb[0].mxu0
    %v349 = vpop.f32.mrb[0].mxu0
    %v350 = vpop.f32.mrb[0].mxu0
    %351 = vdwg.mxu0
    %352 = vmatprep.subr.bf16.mxu0 0
    %353 = vmatpush1.bf16.msra.mxu0 %v291
    %354 = vmatprep.subr.bf16.mxu0 0
    %355 = vmatpush1.bf16.msra.mxu0 %v292
    %356 = vmatprep.subr.bf16.mxu0 0
    %357 = vmatpush1.bf16.msra.mxu0 0
    %358 = vmatprep.subr.bf16.mxu0 0
    %359 = vmatpush1.bf16.msra.mxu0 0
    %360 = vmatprep.subr.bf16.mxu0 0
    %361 = vmatpush1.bf16.msra.mxu0 0
    %362 = vmatprep.subr.bf16.mxu0 0
    %363 = vmatpush1.bf16.msra.mxu0 0
    %364 = vmatprep.subr.bf16.mxu0 0
    %365 = vmatpush1.bf16.msra.mxu0 0
    %366 = vmatprep.subr.bf16.mxu0 0
    %367 = vmatpush1.bf16.msra.mxu0 0
    %368 = vmatprep.subr.bf16.mxu0 0
    %369 = vmatpush1.bf16.msra.mxu0 0
    %370 = vmatprep.subr.bf16.mxu0 0
    %371 = vmatpush1.bf16.msra.mxu0 0
    %372 = vmatprep.subr.bf16.mxu0 0
    %373 = vmatpush1.bf16.msra.mxu0 0
    %374 = vmatprep.subr.bf16.mxu0 0
    %375 = vmatpush1.bf16.msra.mxu0 0
    %376 = vmatprep.subr.bf16.mxu0 0
    %377 = vmatpush1.bf16.msra.mxu0 0
    %378 = vmatprep.subr.bf16.mxu0 0
    %379 = vmatpush1.bf16.msra.mxu0 0
    %380 = vmatprep.subr.bf16.mxu0 0
    %381 = vmatpush1.bf16.msra.mxu0 0
    %382 = vmatprep.subr.bf16.mxu0 0
    %383 = vmatpush1.bf16.msra.mxu0 0
    %384 = vmatprep.mubr.bf16.mxu0 0
    %385 = vmatmul.mubr.bf16.gmra.mrb[0].mxu0 %v310
    %v386 = vpop.f32.mrb[0].mxu0
    %v387 = vadd.f32 %v347, %v386
    %v388 = vpop.f32.mrb[0].mxu0
    %v389 = vpop.f32.mrb[0].mxu0
    %v390 = vpop.f32.mrb[0].mxu0
    %391 = vdwg.mxu0
    %392 = vadd.xlane.f32.xlu0 %v387
    %v393 = vpop.xlane.xlu0 %392
    %v394 = vmul.f32 %v393, 0.0078125
    %v395 = vsub.f32 %v387, %v394
    %v396 = vmul.f32 %v395, %v395
    %397 = vadd.xlane.f32.xlu0 %v396
    %v398 = vpop.xlane.xlu0 %397
    %v399 = vmul.f32 %v398, 0.0078125
    %v400 = vadd.f32 %v399, 1e-05
    %v401 = vrsqrt.pop %v400
    %v402 = vmul.f32 %v164, %v401
    %404 = vset.pattern.permute.xlu0 0
    %405 = vperm.xlu0 %404, %v402
    %v406 = vpop.permute.xlu0 %405
    %v408 = vmul.f32 %v395, %v406
    %410 = vset.pattern.permute.xlu0 0
    %411 = vperm.xlu0 %410, %v165
    %v412 = vpop.permute.xlu0 %411
    %v414 = vadd.f32 %v408, %v412
    %v415 = vmax.f32 %v414, 0.0
    %v416 = vld [vmem:[#allocation13] sm:$0xf]
    %v417 = vld [vmem:[#allocation14] sm:$0xff]
    %v418 = vld [vmem:[#allocation16] sm:$0xff]
    %v419 = vld [vmem:[#allocation17] sm:$0xff]
    %420 = vrot.lane.b32.xlu0 %v415, 9
    %v421 = vpop.permute.xlu0 %420
    %v422 = vsel %vm181, %v421, 0.0
    %423 = vrot.lane.b32.xlu0 %v415, 8
    %v424 = vpop.permute.xlu0 %423
    %v425 = vsel %vm179, %v424, 0.0
    %426 = vrot.lane.b32.xlu0 %v415, 7
    %v427 = vpop.permute.xlu0 %426
    %v428 = vsel %vm207, %v427, 0.0
    %429 = vrot.lane.b32.xlu0 %v415, 1
    %v430 = vpop.permute.xlu0 %429
    %v431 = vsel %vm180, %v430, 0.0
    %432 = vrot.lane.b32.xlu0 %v415, 127
    %v433 = vpop.permute.xlu0 %432
    %v434 = vsel %vm206, %v433, 0.0
    %435 = vrot.lane.b32.xlu0 %v415, 121
    %v436 = vpop.permute.xlu0 %435
    %v437 = vsel %vm245, %v436, 0.0
    %438 = vrot.lane.b32.xlu0 %v415, 120
    %v439 = vpop.permute.xlu0 %438
    %v440 = vsel %vm244, %v439, 0.0
    %441 = vrot.lane.b32.xlu0 %v415, 119
    %v442 = vpop.permute.xlu0 %441
    %v443 = vsel %vm270, %v442, 0.0
    %v444 = vpack.c.bf16 %v425, %v422
    %v445 = vpack.c.bf16 %v431, %v428
    %v446 = vpack.c.bf16 %v434, %v415
    %v447 = vpack.c.bf16 %v440, %v437
    %v448 = vpack.c.bf16 %v443, %v443
    %450 = vset.pattern.permute.xlu0 0
    %451 = vperm.xlu0 %450, %v417
    %v452 = vpop.permute.xlu0 %451
    %vm454 = vcmask 588800
    %v456 = vsel %vm454, %v416, 0
    %vm458 = vcmask 1043456
    %v460 = vsel %vm458, %v448, 0
    %462 = vmatprep.subr.bf16.mxu0 0
    %463 = vmatpush1.bf16.msra.mxu0 %v444
    %464 = vmatprep.subr.bf16.mxu0 0
    %465 = vmatpush1.bf16.msra.mxu0 %v445
    %466 = vmatprep.subr.bf16.mxu0 0
    %467 = vmatpush1.bf16.msra.mxu0 %v446
    %468 = vmatprep.subr.bf16.mxu0 0
    %469 = vmatpush1.bf16.msra.mxu0 %v447
    %470 = vmatprep.subr.bf16.mxu0 0
    %471 = vmatpush1.bf16.msra.mxu0 %v460
    %472 = vmatprep.subr.bf16.mxu0 0
    %473 = vmatpush1.bf16.msra.mxu0 0
    %474 = vmatprep.subr.bf16.mxu0 0
    %475 = vmatpush1.bf16.msra.mxu0 0
    %476 = vmatprep.subr.bf16.mxu0 0
    %477 = vmatpush1.bf16.msra.mxu0 0
    %478 = vmatprep.subr.bf16.mxu0 0
    %479 = vmatpush1.bf16.msra.mxu0 0
    %480 = vmatprep.subr.bf16.mxu0 0
    %481 = vmatpush1.bf16.msra.mxu0 0
    %482 = vmatprep.subr.bf16.mxu0 0
    %483 = vmatpush1.bf16.msra.mxu0 0
    %484 = vmatprep.subr.bf16.mxu0 0
    %485 = vmatpush1.bf16.msra.mxu0 0
    %486 = vmatprep.subr.bf16.mxu0 0
    %487 = vmatpush1.bf16.msra.mxu0 0
    %488 = vmatprep.subr.bf16.mxu0 0
    %489 = vmatpush1.bf16.msra.mxu0 0
    %490 = vmatprep.subr.bf16.mxu0 0
    %491 = vmatpush1.bf16.msra.mxu0 0
    %492 = vmatprep.subr.bf16.mxu0 0
    %493 = vmatpush1.bf16.msra.mxu0 0
    %494 = vmatprep.mubr.bf16.mxu0 0
    %495 = vmatmul.mubr.bf16.gmra.mrb[0].mxu0 %v456
    %v496 = vpop.f32.mrb[0].mxu0
    %v497 = vadd.f32 %v452, %v496
    %v498 = vpop.f32.mrb[0].mxu0
    %v499 = vpop.f32.mrb[0].mxu0
    %v500 = vpop.f32.mrb[0].mxu0
    %501 = vdwg.mxu0
    %502 = vadd.xlane.f32.xlu0 %v497
    %v503 = vpop.xlane.xlu0 %502
    %v504 = vmul.f32 %v503, 0.0078125
    %v505 = vsub.f32 %v497, %v504
    %v506 = vmul.f32 %v505, %v505
    %507 = vadd.xlane.f32.xlu0 %v506
    %v508 = vpop.xlane.xlu0 %507
    %v509 = vmul.f32 %v508, 0.0078125
    %v510 = vadd.f32 %v509, 1e-05
    %v511 = vrsqrt.pop %v510
    %v512 = vmul.f32 %v418, %v511
    %514 = vset.pattern.permute.xlu0 0
    %515 = vperm.xlu0 %514, %v512
    %v516 = vpop.permute.xlu0 %515
    %v518 = vmul.f32 %v505, %v516
    %520 = vset.pattern.permute.xlu0 0
    %521 = vperm.xlu0 %520, %v419
    %v522 = vpop.permute.xlu0 %521
    %v524 = vadd.f32 %v518, %v522
    %v525 = vmax.f32 %v524, 0.0
    %526 = vst [vmem:[#allocation19] sm:$0xff] %v525
    // Predicated region
    $region82: #{unet_apply.9} parent=1 // pred_check
      _
    $region83: #{unet_apply.9} parent=1 // pred_check_branch
      %528 = sbr.rel (0) target = $region85
    $region84: #{unet_apply.9} parent=1 // pred_region
      %s530 = ssub.s32 128, 128
      %531 = vsyncadd [#allocation4], %s530
      %s533 = sshll.u32 [#allocation19], 4
      %s534 = int_to_ptr.vmem [resolvable:$true] %s533
      %536 = dma.vmem_to_hbm [thread:$0]  %s534, 128, %s10, [#allocation4]
    $region85: #{unet_apply.9} parent=1 // pred_fallthru
      _
    // Predicated region
    $region86: #{unet_apply.9} parent=1 // pred_check
      _
    $region87: #{unet_apply.9} parent=1 // pred_check_branch
      %538 = sbr.rel (0) target = $region89
    $region88: #{unet_apply.9} parent=1 // pred_region
      %539 = dma.done [#allocation4], 128
    $region89: #{unet_apply.9} parent=1 // pred_fallthru
      _
    %540 = vsyncpa [#allocation3], 1
    %541 = vsyncpa [#allocation6], 1
    %542 = vsyncpa [#allocation9], 1
    %543 = vsyncpa [#allocation12], 1
    %544 = vsyncpa [#allocation15], 1
    %545 = vsyncpa [#allocation18], 1
    %546 = vsyncpa [#allocation4], 1

// kernel: unet_apply.11
$region0: #{unet_apply.11}
  #allocation0 [shape = 'u32[]', space=smem, size = 0x4, offset = 0x4, fixed_abs, tag = 'smem constant byte address 0x4 - core index']
  #allocation1 [shape = 'u32[144,128]{1,0:T(1,128)}', space=vmem, size = 0x12000, scoped, tag = 'internal scratch']
  %s0 = inlined_call_operand.hbm [shape: f32[8,512], index: 0, kind: input, shape index: {}]
  %s1 = inlined_call_operand.hbm [shape: bf16[8,8], index: 1, kind: input, shape index: {}]
  %s2 = inlined_call_operand.hbm [shape: f32[8,1], index: 2, kind: input, shape index: {}]
  %s3 = inlined_call_operand.hbm [shape: f32[8,512], index: 3, kind: output, shape index: {}]
  %s4 = sld [smem:[#allocation0]]
  $region34: #{unet_apply.11} parent=0
    _
  %s6 = ssub.s32 1, %s4
  %s7 = scalar_select 0, %s6, %s4
  $region1: #{unet_apply.11} parent=0
    #allocation2 [shape = 'u8[16384]{0}', space=vmem, size = 0x4000, scoped, tag = 'input window, operand 0, single buffered']
    #allocation3 [shape = 's32[1]{0}', space=sflag, size = 0x4, scoped, tag = 'scoped memory for unet_apply.11']
    #allocation4 [shape = 's32[1]{0}', space=sflag, size = 0x4, scoped, tag = 'scoped memory for unet_apply.11']
    #allocation5 [shape = 'u8[2048]{0}', space=vmem, size = 0x800, scoped, tag = 'input window, operand 1, single buffered']
    #allocation6 [shape = 's32[1]{0}', space=sflag, size = 0x4, scoped, tag = 'scoped memory for unet_apply.11']
    #allocation7 [shape = 'u8[4096]{0}', space=vmem, size = 0x1000, scoped, tag = 'input window, operand 2, single buffered']
    #allocation8 [shape = 'u8[16384]{0}', space=vmem, size = 0x4000, scoped, tag = 'output window, operand 0, single buffered']
    %8 = vsyncpa [#allocation3], 0
    %9 = vsyncpa [#allocation6], 0
    %10 = vsyncpa [#allocation4], 0
    // Predicated region
    $region2: #{unet_apply.11} parent=1 // pred_check
      _
    $region3: #{unet_apply.11} parent=1 // pred_check_branch
      %12 = sbr.rel (0) target = $region5
    $region4: #{unet_apply.11} parent=1 // pred_region
      %s14 = ssub.s32 512, 512
      %15 = vsyncadd [#allocation3], %s14
      %s17 = sshll.u32 [#allocation2], 4
      %s18 = int_to_ptr.vmem [resolvable:$true] %s17
      %20 = dma.hbm_to_vmem [thread:$0]  %s0, 512, %s18, [#allocation3]
    $region5: #{unet_apply.11} parent=1 // pred_fallthru
      _
    // Predicated region
    $region6: #{unet_apply.11} parent=1 // pred_check
      _
    $region7: #{unet_apply.11} parent=1 // pred_check_branch
      %22 = sbr.rel (0) target = $region9
    $region8: #{unet_apply.11} parent=1 // pred_region
      %s24 = ssub.s32 64, 64
      %25 = vsyncadd [#allocation6], %s24
      %s27 = sshll.u32 [#allocation5], 4
      %s28 = int_to_ptr.vmem [resolvable:$true] %s27
      %30 = dma.hbm_to_vmem [thread:$0]  %s1, 64, %s28, [#allocation6]
    $region9: #{unet_apply.11} parent=1 // pred_fallthru
      _
    // Predicated region
    $region10: #{unet_apply.11} parent=1 // pred_check
      _
    $region11: #{unet_apply.11} parent=1 // pred_check_branch
      %32 = sbr.rel (0) target = $region13
    $region12: #{unet_apply.11} parent=1 // pred_region
      %s34 = ssub.s32 128, 128
      %35 = vsyncadd [#allocation6], %s34
      %s37 = sshll.u32 [#allocation7], 4
      %s38 = int_to_ptr.vmem [resolvable:$true] %s37
      %40 = dma.hbm_to_vmem [thread:$0]  %s2, 128, %s38, [#allocation6]
    $region13: #{unet_apply.11} parent=1 // pred_fallthru
      _
    // Predicated region
    $region14: #{unet_apply.11} parent=1 // pred_check
      _
    $region15: #{unet_apply.11} parent=1 // pred_check_branch
      %42 = sbr.rel (0) target = $region17
    $region16: #{unet_apply.11} parent=1 // pred_region
      %43 = dma.done [#allocation3], 512
    $region17: #{unet_apply.11} parent=1 // pred_fallthru
      _
    // Predicated region
    $region18: #{unet_apply.11} parent=1 // pred_check
      _
    $region19: #{unet_apply.11} parent=1 // pred_check_branch
      %45 = sbr.rel (0) target = $region21
    $region20: #{unet_apply.11} parent=1 // pred_region
      %46 = dma.done [#allocation6], 64
    $region21: #{unet_apply.11} parent=1 // pred_fallthru
      _
    // Predicated region
    $region22: #{unet_apply.11} parent=1 // pred_check
      _
    $region23: #{unet_apply.11} parent=1 // pred_check_branch
      %48 = sbr.rel (0) target = $region25
    $region24: #{unet_apply.11} parent=1 // pred_region
      %49 = dma.done [#allocation6], 128
    $region25: #{unet_apply.11} parent=1 // pred_fallthru
      _
    %v51 = vld [vmem:[#allocation5] sm:$0xf]
    %v52 = vld [vmem:[#allocation2] sm:$0xff]
    %v53 = vld [vmem:[#allocation2 + $0x8] sm:$0xff]
    %v54 = vld [vmem:[#allocation2 + $0x10] sm:$0xff]
    %v55 = vld [vmem:[#allocation2 + $0x18] sm:$0xff]
    %v56 = vpack.c.bf16 %v52, %v52
    %v57 = vpack.c.bf16 %v53, %v53
    %v58 = vpack.c.bf16 %v54, %v54
    %v59 = vpack.c.bf16 %v55, %v55
    %v60 = vld [vmem:[#allocation7] sm:$0xff]
    %62 = vset.pattern.permute.xlu0 0
    %63 = vperm.xlu0 %62, %v60
    %v64 = vpop.permute.xlu0 %63
    %vm66 = vcmask 64512
    %v68 = vsel %vm66, %v51, 0
    %vm70 = vcmask 1043456
    %v72 = vsel %vm70, %v56, 0
    %v75 = vsel %vm70, %v57, 0
    %v78 = vsel %vm70, %v58, 0
    %v81 = vsel %vm70, %v59, 0
    %83 = vmatprep.subr.bf16.mxu0 %v75
    %84 = vmatpush1.bf16.msra.mxu0 %v72
    %85 = vmatprep.subr.bf16.mxu0 0
    %86 = vmatpush1.bf16.msra.mxu0 0
    %87 = vmatprep.subr.bf16.mxu0 0
    %88 = vmatpush1.bf16.msra.mxu0 0
    %89 = vmatprep.subr.bf16.mxu0 0
    %90 = vmatpush1.bf16.msra.mxu0 0
    %91 = vmatprep.subr.bf16.mxu0 0
    %92 = vmatpush1.bf16.msra.mxu0 0
    %93 = vmatprep.subr.bf16.mxu0 0
    %94 = vmatpush1.bf16.msra.mxu0 0
    %95 = vmatprep.subr.bf16.mxu0 0
    %96 = vmatpush1.bf16.msra.mxu0 0
    %97 = vmatprep.subr.bf16.mxu0 0
    %98 = vmatpush1.bf16.msra.mxu0 0
    %99 = vmatprep.subr.bf16.mxu0 0
    %100 = vmatpush1.bf16.msra.mxu0 0
    %101 = vmatprep.subr.bf16.mxu0 0
    %102 = vmatpush1.bf16.msra.mxu0 0
    %103 = vmatprep.subr.bf16.mxu0 0
    %104 = vmatpush1.bf16.msra.mxu0 0
    %105 = vmatprep.subr.bf16.mxu0 0
    %106 = vmatpush1.bf16.msra.mxu0 0
    %107 = vmatprep.subr.bf16.mxu0 0
    %108 = vmatpush1.bf16.msra.mxu0 0
    %109 = vmatprep.subr.bf16.mxu0 0
    %110 = vmatpush1.bf16.msra.mxu0 0
    %111 = vmatprep.subr.bf16.mxu0 0
    %112 = vmatpush1.bf16.msra.mxu0 0
    %113 = vmatprep.subr.bf16.mxu0 0
    %114 = vmatpush1.bf16.msra.mxu0 0
    %115 = vmatprep.mubr.bf16.mxu0 0
    %116 = vmatmul.mubr.bf16.gmra.mrb[0].mxu0 %v68
    %v117 = vpop.f32.mrb[0].mxu0
    %v118 = vadd.f32 %v64, %v117
    %v119 = vpop.f32.mrb[0].mxu0
    %v120 = vadd.f32 %v64, %v119
    %v121 = vpop.f32.mrb[0].mxu0
    %v122 = vpop.f32.mrb[0].mxu0
    %123 = vdwg.mxu0
    %124 = vmatprep.subr.bf16.mxu0 %v81
    %125 = vmatpush1.bf16.msra.mxu0 %v78
    %126 = vmatprep.subr.bf16.mxu0 0
    %127 = vmatpush1.bf16.msra.mxu0 0
    %128 = vmatprep.subr.bf16.mxu0 0
    %129 = vmatpush1.bf16.msra.mxu0 0
    %130 = vmatprep.subr.bf16.mxu0 0
    %131 = vmatpush1.bf16.msra.mxu0 0
    %132 = vmatprep.subr.bf16.mxu0 0
    %133 = vmatpush1.bf16.msra.mxu0 0
    %134 = vmatprep.subr.bf16.mxu0 0
    %135 = vmatpush1.bf16.msra.mxu0 0
    %136 = vmatprep.subr.bf16.mxu0 0
    %137 = vmatpush1.bf16.msra.mxu0 0
    %138 = vmatprep.subr.bf16.mxu0 0
    %139 = vmatpush1.bf16.msra.mxu0 0
    %140 = vmatprep.subr.bf16.mxu0 0
    %141 = vmatpush1.bf16.msra.mxu0 0
    %142 = vmatprep.subr.bf16.mxu0 0
    %143 = vmatpush1.bf16.msra.mxu0 0
    %144 = vmatprep.subr.bf16.mxu0 0
    %145 = vmatpush1.bf16.msra.mxu0 0
    %146 = vmatprep.subr.bf16.mxu0 0
    %147 = vmatpush1.bf16.msra.mxu0 0
    %148 = vmatprep.subr.bf16.mxu0 0
    %149 = vmatpush1.bf16.msra.mxu0 0
    %150 = vmatprep.subr.bf16.mxu0 0
    %151 = vmatpush1.bf16.msra.mxu0 0
    %152 = vmatprep.subr.bf16.mxu0 0
    %153 = vmatpush1.bf16.msra.mxu0 0
    %154 = vmatprep.subr.bf16.mxu0 0
    %155 = vmatpush1.bf16.msra.mxu0 0
    %156 = vmatprep.mubr.bf16.mxu0 0
    %157 = vmatmul.mubr.bf16.gmra.mrb[0].mxu0 %v68
    %v158 = vpop.f32.mrb[0].mxu0
    %v159 = vadd.f32 %v64, %v158
    %v160 = vpop.f32.mrb[0].mxu0
    %v161 = vadd.f32 %v64, %v160
    %v162 = vpop.f32.mrb[0].mxu0
    %v163 = vpop.f32.mrb[0].mxu0
    %164 = vdwg.mxu0
    %165 = vst [vmem:[#allocation8] sm:$0xff] %v118
    %166 = vst [vmem:[#allocation8 + $0x8] sm:$0xff] %v120
    %167 = vst [vmem:[#allocation8 + $0x10] sm:$0xff] %v159
    %168 = vst [vmem:[#allocation8 + $0x18] sm:$0xff] %v161
    // Predicated region
    $region26: #{unet_apply.11} parent=1 // pred_check
      _
    $region27: #{unet_apply.11} parent=1 // pred_check_branch
      %170 = sbr.rel (0) target = $region29
    $region28: #{unet_apply.11} parent=1 // pred_region
      %s172 = ssub.s32 512, 512
      %173 = vsyncadd [#allocation4], %s172
      %s175 = sshll.u32 [#allocation8], 4
      %s176 = int_to_ptr.vmem [resolvable:$true] %s175
      %178 = dma.vmem_to_hbm [thread:$0]  %s176, 512, %s3, [#allocation4]
    $region29: #{unet_apply.11} parent=1 // pred_fallthru
      _
    // Predicated region
    $region30: #{unet_apply.11} parent=1 // pred_check
      _
    $region31: #{unet_apply.11} parent=1 // pred_check_branch
      %180 = sbr.rel (0) target = $region33
    $region32: #{unet_apply.11} parent=1 // pred_region
      %181 = dma.done [#allocation4], 512
    $region33: #{unet_apply.11} parent=1 // pred_fallthru
      _
    %182 = vsyncpa [#allocation3], 1
    %183 = vsyncpa [#allocation6], 1
    %184 = vsyncpa [#allocation4], 1

// kernel: unet_apply.10
$region0: #{unet_apply.10}
  #allocation0 [shape = 'u32[]', space=smem, size = 0x4, offset = 0x4, fixed_abs, tag = 'smem constant byte address 0x4 - core index']
  #allocation1 [shape = 'u32[144,128]{1,0:T(1,128)}', space=vmem, size = 0x12000, scoped, tag = 'internal scratch']
  %s0 = inlined_call_operand.hbm [shape: f32[8,512], index: 0, kind: input, shape index: {}]
  %s1 = inlined_call_operand.hbm [shape: f32[8,512], index: 1, kind: input, shape index: {}]
  %s2 = inlined_call_operand.hbm [shape: bf16[8,144], index: 2, kind: input, shape index: {}]
  %s3 = inlined_call_operand.hbm [shape: f32[8,1], index: 3, kind: input, shape index: {}]
  %s4 = inlined_call_operand.hbm [shape: f32[8,1], index: 4, kind: input, shape index: {}]
  %s5 = inlined_call_operand.hbm [shape: f32[8,1], index: 5, kind: input, shape index: {}]
  %s6 = inlined_call_operand.hbm [shape: bf16[8,72], index: 6, kind: input, shape index: {}]
  %s7 = inlined_call_operand.hbm [shape: f32[8,1], index: 7, kind: input, shape index: {}]
  %s8 = inlined_call_operand.hbm [shape: f32[8,1], index: 8, kind: input, shape index: {}]
  %s9 = inlined_call_operand.hbm [shape: f32[8,1], index: 9, kind: input, shape index: {}]
  %s10 = inlined_call_operand.hbm [shape: f32[8,512], index: 10, kind: output, shape index: {}]
  %s11 = sld [smem:[#allocation0]]
  $region90: #{unet_apply.10} parent=0
    _
  %s13 = ssub.s32 1, %s11
  %s14 = scalar_select 0, %s13, %s11
  $region1: #{unet_apply.10} parent=0
    #allocation2 [shape = 'u8[16384]{0}', space=vmem, size = 0x4000, scoped, tag = 'input window, operand 0, single buffered']
    #allocation3 [shape = 's32[1]{0}', space=sflag, size = 0x4, scoped, tag = 'scoped memory for unet_apply.10']
    #allocation4 [shape = 's32[1]{0}', space=sflag, size = 0x4, scoped, tag = 'scoped memory for unet_apply.10']
    #allocation5 [shape = 'u8[16384]{0}', space=vmem, size = 0x4000, scoped, tag = 'input window, operand 1, single buffered']
    #allocation6 [shape = 's32[1]{0}', space=sflag, size = 0x4, scoped, tag = 'scoped memory for unet_apply.10']
    #allocation7 [shape = 'u8[4096]{0}', space=vmem, size = 0x1000, scoped, tag = 'input window, operand 2, single buffered']
    #allocation8 [shape = 'u8[4096]{0}', space=vmem, size = 0x1000, scoped, tag = 'input window, operand 3, single buffered']
    #allocation9 [shape = 's32[1]{0}', space=sflag, size = 0x4, scoped, tag = 'scoped memory for unet_apply.10']
    #allocation10 [shape = 'u8[4096]{0}', space=vmem, size = 0x1000, scoped, tag = 'input window, operand 4, single buffered']
    #allocation11 [shape = 'u8[4096]{0}', space=vmem, size = 0x1000, scoped, tag = 'input window, operand 5, single buffered']
    #allocation12 [shape = 's32[1]{0}', space=sflag, size = 0x4, scoped, tag = 'scoped memory for unet_apply.10']
    #allocation13 [shape = 'u8[2048]{0}', space=vmem, size = 0x800, scoped, tag = 'input window, operand 6, single buffered']
    #allocation14 [shape = 'u8[4096]{0}', space=vmem, size = 0x1000, scoped, tag = 'input window, operand 7, single buffered']
    #allocation15 [shape = 's32[1]{0}', space=sflag, size = 0x4, scoped, tag = 'scoped memory for unet_apply.10']
    #allocation16 [shape = 'u8[4096]{0}', space=vmem, size = 0x1000, scoped, tag = 'input window, operand 8, single buffered']
    #allocation17 [shape = 'u8[4096]{0}', space=vmem, size = 0x1000, scoped, tag = 'input window, operand 9, single buffered']
    #allocation18 [shape = 's32[1]{0}', space=sflag, size = 0x4, scoped, tag = 'scoped memory for unet_apply.10']
    #allocation19 [shape = 'u8[16384]{0}', space=vmem, size = 0x4000, scoped, tag = 'output window, operand 0, single buffered']
    %15 = vsyncpa [#allocation3], 0
    %16 = vsyncpa [#allocation6], 0
    %17 = vsyncpa [#allocation9], 0
    %18 = vsyncpa [#allocation12], 0
    %19 = vsyncpa [#allocation15], 0
    %20 = vsyncpa [#allocation18], 0
    %21 = vsyncpa [#allocation4], 0
    // Predicated region
    $region2: #{unet_apply.10} parent=1 // pred_check
      _
    $region3: #{unet_apply.10} parent=1 // pred_check_branch
      %23 = sbr.rel (0) target = $region5
    $region4: #{unet_apply.10} parent=1 // pred_region
      %s25 = ssub.s32 512, 512
      %26 = vsyncadd [#allocation3], %s25
      %s28 = sshll.u32 [#allocation2], 4
      %s29 = int_to_ptr.vmem [resolvable:$true] %s28
      %31 = dma.hbm_to_vmem [thread:$0]  %s0, 512, %s29, [#allocation3]
    $region5: #{unet_apply.10} parent=1 // pred_fallthru
      _
    // Predicated region
    $region6: #{unet_apply.10} parent=1 // pred_check
      _
    $region7: #{unet_apply.10} parent=1 // pred_check_branch
      %33 = sbr.rel (0) target = $region9
    $region8: #{unet_apply.10} parent=1 // pred_region
      %s35 = ssub.s32 512, 512
      %36 = vsyncadd [#allocation6], %s35
      %s38 = sshll.u32 [#allocation5], 4
      %s39 = int_to_ptr.vmem [resolvable:$true] %s38
      %41 = dma.hbm_to_vmem [thread:$0]  %s1, 512, %s39, [#allocation6]
    $region9: #{unet_apply.10} parent=1 // pred_fallthru
      _
    // Predicated region
    $region10: #{unet_apply.10} parent=1 // pred_check
      _
    $region11: #{unet_apply.10} parent=1 // pred_check_branch
      %43 = sbr.rel (0) target = $region13
    $region12: #{unet_apply.10} parent=1 // pred_region
      %s45 = ssub.s32 128, 128
      %46 = vsyncadd [#allocation6], %s45
      %s48 = sshll.u32 [#allocation7], 4
      %s49 = int_to_ptr.vmem [resolvable:$true] %s48
      %51 = dma.hbm_to_vmem [thread:$0]  %s2, 128, %s49, [#allocation6]
    $region13: #{unet_apply.10} parent=1 // pred_fallthru
      _
    // Predicated region
    $region14: #{unet_apply.10} parent=1 // pred_check
      _
    $region15: #{unet_apply.10} parent=1 // pred_check_branch
      %53 = sbr.rel (0) target = $region17
    $region16: #{unet_apply.10} parent=1 // pred_region
      %s55 = ssub.s32 128, 128
      %56 = vsyncadd [#allocation9], %s55
      %s58 = sshll.u32 [#allocation8], 4
      %s59 = int_to_ptr.vmem [resolvable:$true] %s58
      %61 = dma.hbm_to_vmem [thread:$0]  %s3, 128, %s59, [#allocation9]
    $region17: #{unet_apply.10} parent=1 // pred_fallthru
      _
    // Predicated region
    $region18: #{unet_apply.10} parent=1 // pred_check
      _
    $region19: #{unet_apply.10} parent=1 // pred_check_branch
      %63 = sbr.rel (0) target = $region21
    $region20: #{unet_apply.10} parent=1 // pred_region
      %s65 = ssub.s32 128, 128
      %66 = vsyncadd [#allocation9], %s65
      %s68 = sshll.u32 [#allocation10], 4
      %s69 = int_to_ptr.vmem [resolvable:$true] %s68
      %71 = dma.hbm_to_vmem [thread:$0]  %s4, 128, %s69, [#allocation9]
    $region21: #{unet_apply.10} parent=1 // pred_fallthru
      _
    // Predicated region
    $region22: #{unet_apply.10} parent=1 // pred_check
      _
    $region23: #{unet_apply.10} parent=1 // pred_check_branch
      %73 = sbr.rel (0) target = $region25
    $region24: #{unet_apply.10} parent=1 // pred_region
      %s75 = ssub.s32 128, 128
      %76 = vsyncadd [#allocation12], %s75
      %s78 = sshll.u32 [#allocation11], 4
      %s79 = int_to_ptr.vmem [resolvable:$true] %s78
      %81 = dma.hbm_to_vmem [thread:$0]  %s5, 128, %s79, [#allocation12]
    $region25: #{unet_apply.10} parent=1 // pred_fallthru
      _
    // Predicated region
    $region26: #{unet_apply.10} parent=1 // pred_check
      _
    $region27: #{unet_apply.10} parent=1 // pred_check_branch
      %83 = sbr.rel (0) target = $region29
    $region28: #{unet_apply.10} parent=1 // pred_region
      %s85 = ssub.s32 64, 64
      %86 = vsyncadd [#allocation12], %s85
      %s88 = sshll.u32 [#allocation13], 4
      %s89 = int_to_ptr.vmem [resolvable:$true] %s88
      %91 = dma.hbm_to_vmem [thread:$0]  %s6, 64, %s89, [#allocation12]
    $region29: #{unet_apply.10} parent=1 // pred_fallthru
      _
    // Predicated region
    $region30: #{unet_apply.10} parent=1 // pred_check
      _
    $region31: #{unet_apply.10} parent=1 // pred_check_branch
      %93 = sbr.rel (0) target = $region33
    $region32: #{unet_apply.10} parent=1 // pred_region
      %s95 = ssub.s32 128, 128
      %96 = vsyncadd [#allocation15], %s95
      %s98 = sshll.u32 [#allocation14], 4
      %s99 = int_to_ptr.vmem [resolvable:$true] %s98
      %101 = dma.hbm_to_vmem [thread:$0]  %s7, 128, %s99, [#allocation15]
    $region33: #{unet_apply.10} parent=1 // pred_fallthru
      _
    // Predicated region
    $region34: #{unet_apply.10} parent=1 // pred_check
      _
    $region35: #{unet_apply.10} parent=1 // pred_check_branch
      %103 = sbr.rel (0) target = $region37
    $region36: #{unet_apply.10} parent=1 // pred_region
      %s105 = ssub.s32 128, 128
      %106 = vsyncadd [#allocation15], %s105
      %s108 = sshll.u32 [#allocation16], 4
      %s109 = int_to_ptr.vmem [resolvable:$true] %s108
      %111 = dma.hbm_to_vmem [thread:$0]  %s8, 128, %s109, [#allocation15]
    $region37: #{unet_apply.10} parent=1 // pred_fallthru
      _
    // Predicated region
    $region38: #{unet_apply.10} parent=1 // pred_check
      _
    $region39: #{unet_apply.10} parent=1 // pred_check_branch
      %113 = sbr.rel (0) target = $region41
    $region40: #{unet_apply.10} parent=1 // pred_region
      %s115 = ssub.s32 128, 128
      %116 = vsyncadd [#allocation18], %s115
      %s118 = sshll.u32 [#allocation17], 4
      %s119 = int_to_ptr.vmem [resolvable:$true] %s118
      %121 = dma.hbm_to_vmem [thread:$0]  %s9, 128, %s119, [#allocation18]
    $region41: #{unet_apply.10} parent=1 // pred_fallthru
      _
    // Predicated region
    $region42: #{unet_apply.10} parent=1 // pred_check
      _
    $region43: #{unet_apply.10} parent=1 // pred_check_branch
      %123 = sbr.rel (0) target = $region45
    $region44: #{unet_apply.10} parent=1 // pred_region
      %124 = dma.done [#allocation3], 512
    $region45: #{unet_apply.10} parent=1 // pred_fallthru
      _
    // Predicated region
    $region46: #{unet_apply.10} parent=1 // pred_check
      _
    $region47: #{unet_apply.10} parent=1 // pred_check_branch
      %126 = sbr.rel (0) target = $region49
    $region48: #{unet_apply.10} parent=1 // pred_region
      %127 = dma.done [#allocation6], 512
    $region49: #{unet_apply.10} parent=1 // pred_fallthru
      _
    // Predicated region
    $region50: #{unet_apply.10} parent=1 // pred_check
      _
    $region51: #{unet_apply.10} parent=1 // pred_check_branch
      %129 = sbr.rel (0) target = $region53
    $region52: #{unet_apply.10} parent=1 // pred_region
      %130 = dma.done [#allocation6], 128
    $region53: #{unet_apply.10} parent=1 // pred_fallthru
      _
    // Predicated region
    $region54: #{unet_apply.10} parent=1 // pred_check
      _
    $region55: #{unet_apply.10} parent=1 // pred_check_branch
      %132 = sbr.rel (0) target = $region57
    $region56: #{unet_apply.10} parent=1 // pred_region
      %133 = dma.done [#allocation9], 128
    $region57: #{unet_apply.10} parent=1 // pred_fallthru
      _
    // Predicated region
    $region58: #{unet_apply.10} parent=1 // pred_check
      _
    $region59: #{unet_apply.10} parent=1 // pred_check_branch
      %135 = sbr.rel (0) target = $region61
    $region60: #{unet_apply.10} parent=1 // pred_region
      %136 = dma.done [#allocation9], 128
    $region61: #{unet_apply.10} parent=1 // pred_fallthru
      _
    // Predicated region
    $region62: #{unet_apply.10} parent=1 // pred_check
      _
    $region63: #{unet_apply.10} parent=1 // pred_check_branch
      %138 = sbr.rel (0) target = $region65
    $region64: #{unet_apply.10} parent=1 // pred_region
      %139 = dma.done [#allocation12], 128
    $region65: #{unet_apply.10} parent=1 // pred_fallthru
      _
    // Predicated region
    $region66: #{unet_apply.10} parent=1 // pred_check
      _
    $region67: #{unet_apply.10} parent=1 // pred_check_branch
      %141 = sbr.rel (0) target = $region69
    $region68: #{unet_apply.10} parent=1 // pred_region
      %142 = dma.done [#allocation12], 64
    $region69: #{unet_apply.10} parent=1 // pred_fallthru
      _
    // Predicated region
    $region70: #{unet_apply.10} parent=1 // pred_check
      _
    $region71: #{unet_apply.10} parent=1 // pred_check_branch
      %144 = sbr.rel (0) target = $region73
    $region72: #{unet_apply.10} parent=1 // pred_region
      %145 = dma.done [#allocation15], 128
    $region73: #{unet_apply.10} parent=1 // pred_fallthru
      _
    // Predicated region
    $region74: #{unet_apply.10} parent=1 // pred_check
      _
    $region75: #{unet_apply.10} parent=1 // pred_check_branch
      %147 = sbr.rel (0) target = $region77
    $region76: #{unet_apply.10} parent=1 // pred_region
      %148 = dma.done [#allocation15], 128
    $region77: #{unet_apply.10} parent=1 // pred_fallthru
      _
    // Predicated region
    $region78: #{unet_apply.10} parent=1 // pred_check
      _
    $region79: #{unet_apply.10} parent=1 // pred_check_branch
      %150 = sbr.rel (0) target = $region81
    $region80: #{unet_apply.10} parent=1 // pred_region
      %151 = dma.done [#allocation18], 128
    $region81: #{unet_apply.10} parent=1 // pred_fallthru
      _
    %v153 = vld [vmem:[#allocation2] sm:$0xff]
    %v154 = vld [vmem:[#allocation2 + $0x8] sm:$0xff]
    %v155 = vld [vmem:[#allocation2 + $0x10] sm:$0xff]
    %v156 = vld [vmem:[#allocation2 + $0x18] sm:$0xff]
    %v157 = vld [vmem:[#allocation5] sm:$0xff]
    %v158 = vld [vmem:[#allocation5 + $0x8] sm:$0xff]
    %v159 = vld [vmem:[#allocation5 + $0x10] sm:$0xff]
    %v160 = vld [vmem:[#allocation5 + $0x18] sm:$0xff]
    %v161 = vld [vmem:[#allocation7] sm:$0xff]
    %v162 = vld [vmem:[#allocation8] sm:$0xff]
    %v163 = vld [vmem:[#allocation10] sm:$0xff]
    %v164 = vld [vmem:[#allocation11] sm:$0xff]
    %v165 = vlaneseq
    %v166 = vand.u32 %v165, 127
    %v167 = vadd.s32 %v166, 128
    %v168 = vadd.s32 %v166, 256
    %v169 = vadd.s32 %v166, 384
    %v170 = vand.u32 %v166, 15
    %v171 = vand.u32 %v167, 15
    %v172 = vand.u32 %v168, 15
    %v173 = vand.u32 %v169, 15
    %v174 = vshra.s32 %v166, 4
    %v175 = vshra.s32 %v167, 4
    %v176 = vshra.s32 %v168, 4
    %v177 = vshra.s32 %v169, 4
    %v178 = vand.u32 %v174, 15
    %v179 = vand.u32 %v175, 15
    %v180 = vand.u32 %v176, 15
    %v181 = vand.u32 %v177, 15
    %182 = vrot.lane.b32.xlu0 %v153, 17
    %v183 = vpop.permute.xlu0 %182
    %184 = vrot.lane.b32.xlu0 %v157, 17
    %v185 = vpop.permute.xlu0 %184
    %186 = vrot.lane.b32.xlu0 %v154, 17
    %v187 = vpop.permute.xlu0 %186
    %188 = vrot.lane.b32.xlu0 %v158, 17
    %v189 = vpop.permute.xlu0 %188
    %190 = vrot.lane.b32.xlu0 %v155, 17
    %v191 = vpop.permute.xlu0 %190
    %192 = vrot.lane.b32.xlu0 %v159, 17
    %v193 = vpop.permute.xlu0 %192
    %194 = vrot.lane.b32.xlu0 %v156, 17
    %v195 = vpop.permute.xlu0 %194
    %196 = vrot.lane.b32.xlu0 %v160, 17
    %v197 = vpop.permute.xlu0 %196
    %vm198 = vcmp.lt.s32.totalorder %v166, 17
    %v199 = vsel %vm198, %v191, %v195
    %v200 = vsel %vm198, %v193, %v197
    %v201 = vsel %vm198, %v187, %v191
    %v202 = vsel %vm198, %v189, %v193
    %v203 = vsel %vm198, %v183, %v187
    %v204 = vsel %vm198, %v185, %v189
    %v205 = vsel %vm198, %v195, %v183
    %v206 = vsel %vm198, %v197, %v185
    %vm207 = vcmp.ge.s32.totalorder %v178, 1
    %vm208 = vcmp.ge.s32.totalorder %v179, 1
    %vm209 = vcmp.ge.s32.totalorder %v180, 1
    %vm210 = vcmp.ge.s32.totalorder %v181, 1
    %vm211 = vcmp.ge.s32.totalorder %v170, 1
    %vm212 = vcmp.ge.s32.totalorder %v171, 1
    %vm213 = vcmp.ge.s32.totalorder %v172, 1
    %vm214 = vcmp.ge.s32.totalorder %v173, 1
    %vm215 = vmand %vm207, %vm211
    %vm216 = vmand %vm208, %vm212
    %vm217 = vmand %vm209, %vm213
    %vm218 = vmand %vm210, %vm214
    %v219 = vsel %vm215, %v205, 0.0
    %v220 = vsel %vm216, %v203, 0.0
    %v221 = vsel %vm217, %v201, 0.0
    %v222 = vsel %vm218, %v199, 0.0
    %v223 = vsel %vm215, %v206, 0.0
    %v224 = vsel %vm216, %v204, 0.0
    %v225 = vsel %vm217, %v202, 0.0
    %v226 = vsel %vm218, %v200, 0.0
    %227 = vrot.lane.b32.xlu0 %v153, 16
    %v228 = vpop.permute.xlu0 %227
    %229 = vrot.lane.b32.xlu0 %v157, 16
    %v230 = vpop.permute.xlu0 %229
    %231 = vrot.lane.b32.xlu0 %v154, 16
    %v232 = vpop.permute.xlu0 %231
    %233 = vrot.lane.b32.xlu0 %v158, 16
    %v234 = vpop.permute.xlu0 %233
    %235 = vrot.lane.b32.xlu0 %v155, 16
    %v236 = vpop.permute.xlu0 %235
    %237 = vrot.lane.b32.xlu0 %v159, 16
    %v238 = vpop.permute.xlu0 %237
    %239 = vrot.lane.b32.xlu0 %v156, 16
    %v240 = vpop.permute.xlu0 %239
    %241 = vrot.lane.b32.xlu0 %v160, 16
    %v242 = vpop.permute.xlu0 %241
    %vm243 = vcmp.lt.s32.totalorder %v166, 16
    %v244 = vsel %vm243, %v236, %v240
    %v245 = vsel %vm243, %v238, %v242
    %v246 = vsel %vm243, %v232, %v236
    %v247 = vsel %vm243, %v234, %v238
    %v248 = vsel %vm243, %v228, %v232
    %v249 = vsel %vm243, %v230, %v234
    %v250 = vsel %vm243, %v240, %v228
    %v251 = vsel %vm243, %v242, %v230
    %v252 = vsel %vm207, %v250, 0.0
    %v253 = vsel %vm208, %v248, 0.0
    %v254 = vsel %vm209, %v246, 0.0
    %v255 = vsel %vm210, %v244, 0.0
    %v256 = vsel %vm207, %v251, 0.0
    %v257 = vsel %vm208, %v249, 0.0
    %v258 = vsel %vm209, %v247, 0.0
    %v259 = vsel %vm210, %v245, 0.0
    %260 = vrot.lane.b32.xlu0 %v153, 15
    %v261 = vpop.permute.xlu0 %260
    %262 = vrot.lane.b32.xlu0 %v157, 15
    %v263 = vpop.permute.xlu0 %262
    %264 = vrot.lane.b32.xlu0 %v154, 15
    %v265 = vpop.permute.xlu0 %264
    %266 = vrot.lane.b32.xlu0 %v158, 15
    %v267 = vpop.permute.xlu0 %266
    %268 = vrot.lane.b32.xlu0 %v155, 15
    %v269 = vpop.permute.xlu0 %268
    %270 = vrot.lane.b32.xlu0 %v159, 15
    %v271 = vpop.permute.xlu0 %270
    %272 = vrot.lane.b32.xlu0 %v156, 15
    %v273 = vpop.permute.xlu0 %272
    %274 = vrot.lane.b32.xlu0 %v160, 15
    %v275 = vpop.permute.xlu0 %274
    %vm276 = vcmp.lt.s32.totalorder %v166, 15
    %v277 = vsel %vm276, %v269, %v273
    %v278 = vsel %vm276, %v271, %v275
    %v279 = vsel %vm276, %v265, %v269
    %v280 = vsel %vm276, %v267, %v271
    %v281 = vsel %vm276, %v261, %v265
    %v282 = vsel %vm276, %v263, %v267
    %v283 = vsel %vm276, %v273, %v261
    %v284 = vsel %vm276, %v275, %v263
    %vm285 = vcmp.lt.s32.totalorder %v170, 15
    %vm286 = vcmp.lt.s32.totalorder %v171, 15
    %vm287 = vcmp.lt.s32.totalorder %v172, 15
    %vm288 = vcmp.lt.s32.totalorder %v173, 15
    %vm289 = vmand %vm207, %vm285
    %vm290 = vmand %vm208, %vm286
    %vm291 = vmand %vm209, %vm287
    %vm292 = vmand %vm210, %vm288
    %v293 = vsel %vm289, %v283, 0.0
    %v294 = vsel %vm290, %v281, 0.0
    %v295 = vsel %vm291, %v279, 0.0
    %v296 = vsel %vm292, %v277, 0.0
    %v297 = vsel %vm289, %v284, 0.0
    %v298 = vsel %vm290, %v282, 0.0
    %v299 = vsel %vm291, %v280, 0.0
    %v300 = vsel %vm292, %v278, 0.0
    %301 = vrot.lane.b32.xlu0 %v153, 1
    %v302 = vpop.permute.xlu0 %301
    %303 = vrot.lane.b32.xlu0 %v157, 1
    %v304 = vpop.permute.xlu0 %303
    %305 = vrot.lane.b32.xlu0 %v154, 1
    %v306 = vpop.permute.xlu0 %305
    %307 = vrot.lane.b32.xlu0 %v158, 1
    %v308 = vpop.permute.xlu0 %307
    %309 = vrot.lane.b32.xlu0 %v155, 1
    %v310 = vpop.permute.xlu0 %309
    %311 = vrot.lane.b32.xlu0 %v159, 1
    %v312 = vpop.permute.xlu0 %311
    %313 = vrot.lane.b32.xlu0 %v156, 1
    %v314 = vpop.permute.xlu0 %313
    %315 = vrot.lane.b32.xlu0 %v160, 1
    %v316 = vpop.permute.xlu0 %315
    %vm317 = vcmp.lt.s32.totalorder %v166, 1
    %v318 = vsel %vm317, %v310, %v314
    %v319 = vsel %vm317, %v312, %v316
    %v320 = vsel %vm317, %v306, %v310
    %v321 = vsel %vm317, %v308, %v312
    %v322 = vsel %vm317, %v302, %v306
    %v323 = vsel %vm317, %v304, %v308
    %v324 = vsel %vm317, %v314, %v302
    %v325 = vsel %vm317, %v316, %v304
    %v326 = vsel %vm211, %v324, 0.0
    %v327 = vsel %vm212, %v322, 0.0
    %v328 = vsel %vm213, %v320, 0.0
    %v329 = vsel %vm214, %v318, 0.0
    %v330 = vsel %vm211, %v325, 0.0
    %v331 = vsel %vm212, %v323, 0.0
    %v332 = vsel %vm213, %v321, 0.0
    %v333 = vsel %vm214, %v319, 0.0
    %334 = vrot.lane.b32.xlu0 %v153, 127
    %v335 = vpop.permute.xlu0 %334
    %336 = vrot.lane.b32.xlu0 %v157, 127
    %v337 = vpop.permute.xlu0 %336
    %338 = vrot.lane.b32.xlu0 %v154, 127
    %v339 = vpop.permute.xlu0 %338
    %340 = vrot.lane.b32.xlu0 %v158, 127
    %v341 = vpop.permute.xlu0 %340
    %342 = vrot.lane.b32.xlu0 %v155, 127
    %v343 = vpop.permute.xlu0 %342
    %344 = vrot.lane.b32.xlu0 %v159, 127
    %v345 = vpop.permute.xlu0 %344
    %346 = vrot.lane.b32.xlu0 %v156, 127
    %v347 = vpop.permute.xlu0 %346
    %348 = vrot.lane.b32.xlu0 %v160, 127
    %v349 = vpop.permute.xlu0 %348
    %vm350 = vcmp.lt.s32.totalorder %v166, 127
    %v351 = vsel %vm350, %v343, %v347
    %v352 = vsel %vm350, %v345, %v349
    %v353 = vsel %vm350, %v339, %v343
    %v354 = vsel %vm350, %v341, %v345
    %v355 = vsel %vm350, %v335, %v339
    %v356 = vsel %vm350, %v337, %v341
    %v357 = vsel %vm350, %v347, %v335
    %v358 = vsel %vm350, %v349, %v337
    %v359 = vsel %vm285, %v355, 0.0
    %v360 = vsel %vm286, %v353, 0.0
    %v361 = vsel %vm287, %v351, 0.0
    %v362 = vsel %vm288, %v357, 0.0
    %v363 = vsel %vm285, %v356, 0.0
    %v364 = vsel %vm286, %v354, 0.0
    %v365 = vsel %vm287, %v352, 0.0
    %v366 = vsel %vm288, %v358, 0.0
    %367 = vrot.lane.b32.xlu0 %v153, 113
    %v368 = vpop.permute.xlu0 %367
    %369 = vrot.lane.b32.xlu0 %v157, 113
    %v370 = vpop.permute.xlu0 %369
    %371 = vrot.lane.b32.xlu0 %v154, 113
    %v372 = vpop.permute.xlu0 %371
    %373 = vrot.lane.b32.xlu0 %v158, 113
    %v374 = vpop.permute.xlu0 %373
    %375 = vrot.lane.b32.xlu0 %v155, 113
    %v376 = vpop.permute.xlu0 %375
    %377 = vrot.lane.b32.xlu0 %v159, 113
    %v378 = vpop.permute.xlu0 %377
    %379 = vrot.lane.b32.xlu0 %v156, 113
    %v380 = vpop.permute.xlu0 %379
    %381 = vrot.lane.b32.xlu0 %v160, 113
    %v382 = vpop.permute.xlu0 %381
    %vm383 = vcmp.lt.s32.totalorder %v166, 113
    %v384 = vsel %vm383, %v376, %v380
    %v385 = vsel %vm383, %v378, %v382
    %v386 = vsel %vm383, %v372, %v376
    %v387 = vsel %vm383, %v374, %v378
    %v388 = vsel %vm383, %v368, %v372
    %v389 = vsel %vm383, %v370, %v374
    %v390 = vsel %vm383, %v380, %v368
    %v391 = vsel %vm383, %v382, %v370
    %vm392 = vcmp.lt.s32.totalorder %v178, 15
    %vm393 = vcmp.lt.s32.totalorder %v179, 15
    %vm394 = vcmp.lt.s32.totalorder %v180, 15
    %vm395 = vcmp.lt.s32.totalorder %v181, 15
    %vm396 = vmand %vm392, %vm211
    %vm397 = vmand %vm393, %vm212
    %vm398 = vmand %vm394, %vm213
    %vm399 = vmand %vm395, %vm214
    %v400 = vsel %vm396, %v388, 0.0
    %v401 = vsel %vm397, %v386, 0.0
    %v402 = vsel %vm398, %v384, 0.0
    %v403 = vsel %vm399, %v390, 0.0
    %v404 = vsel %vm396, %v389, 0.0
    %v405 = vsel %vm397, %v387, 0.0
    %v406 = vsel %vm398, %v385, 0.0
    %v407 = vsel %vm399, %v391, 0.0
    %408 = vrot.lane.b32.xlu0 %v153, 112
    %v409 = vpop.permute.xlu0 %408
    %410 = vrot.lane.b32.xlu0 %v157, 112
    %v411 = vpop.permute.xlu0 %410
    %412 = vrot.lane.b32.xlu0 %v154, 112
    %v413 = vpop.permute.xlu0 %412
    %414 = vrot.lane.b32.xlu0 %v158, 112
    %v415 = vpop.permute.xlu0 %414
    %416 = vrot.lane.b32.xlu0 %v155, 112
    %v417 = vpop.permute.xlu0 %416
    %418 = vrot.lane.b32.xlu0 %v159, 112
    %v419 = vpop.permute.xlu0 %418
    %420 = vrot.lane.b32.xlu0 %v156, 112
    %v421 = vpop.permute.xlu0 %420
    %422 = vrot.lane.b32.xlu0 %v160, 112
    %v423 = vpop.permute.xlu0 %422
    %vm424 = vcmp.lt.s32.totalorder %v166, 112
    %v425 = vsel %vm424, %v417, %v421
    %v426 = vsel %vm424, %v419, %v423
    %v427 = vsel %vm424, %v413, %v417
    %v428 = vsel %vm424, %v415, %v419
    %v429 = vsel %vm424, %v409, %v413
    %v430 = vsel %vm424, %v411, %v415
    %v431 = vsel %vm424, %v421, %v409
    %v432 = vsel %vm424, %v423, %v411
    %v433 = vsel %vm392, %v429, 0.0
    %v434 = vsel %vm393, %v427, 0.0
    %v435 = vsel %vm394, %v425, 0.0
    %v436 = vsel %vm395, %v431, 0.0
    %v437 = vsel %vm392, %v430, 0.0
    %v438 = vsel %vm393, %v428, 0.0
    %v439 = vsel %vm394, %v426, 0.0
    %v440 = vsel %vm395, %v432, 0.0
    %441 = vrot.lane.b32.xlu0 %v153, 111
    %v442 = vpop.permute.xlu0 %441
    %443 = vrot.lane.b32.xlu0 %v157, 111
    %v444 = vpop.permute.xlu0 %443
    %445 = vrot.lane.b32.xlu0 %v154, 111
    %v446 = vpop.permute.xlu0 %445
    %447 = vrot.lane.b32.xlu0 %v158, 111
    %v448 = vpop.permute.xlu0 %447
    %449 = vrot.lane.b32.xlu0 %v155, 111
    %v450 = vpop.permute.xlu0 %449
    %451 = vrot.lane.b32.xlu0 %v159, 111
    %v452 = vpop.permute.xlu0 %451
    %453 = vrot.lane.b32.xlu0 %v156, 111
    %v454 = vpop.permute.xlu0 %453
    %455 = vrot.lane.b32.xlu0 %v160, 111
    %v456 = vpop.permute.xlu0 %455
    %vm457 = vcmp.lt.s32.totalorder %v166, 111
    %v458 = vsel %vm457, %v450, %v454
    %v459 = vsel %vm457, %v452, %v456
    %v460 = vsel %vm457, %v446, %v450
    %v461 = vsel %vm457, %v448, %v452
    %v462 = vsel %vm457, %v442, %v446
    %v463 = vsel %vm457, %v444, %v448
    %v464 = vsel %vm457, %v454, %v442
    %v465 = vsel %vm457, %v456, %v444
    %vm466 = vmand %vm392, %vm285
    %vm467 = vmand %vm393, %vm286
    %vm468 = vmand %vm394, %vm287
    %vm469 = vmand %vm395, %vm288
    %v470 = vsel %vm466, %v462, 0.0
    %v471 = vsel %vm467, %v460, 0.0
    %v472 = vsel %vm468, %v458, 0.0
    %v473 = vsel %vm469, %v464, 0.0
    %v474 = vsel %vm466, %v463, 0.0
    %v475 = vsel %vm467, %v461, 0.0
    %v476 = vsel %vm468, %v459, 0.0
    %v477 = vsel %vm469, %v465, 0.0
    %v478 = vpack.c.bf16 %v223, %v219
    %v479 = vpack.c.bf16 %v224, %v220
    %v480 = vpack.c.bf16 %v225, %v221
    %v481 = vpack.c.bf16 %v226, %v222
    %v482 = vpack.c.bf16 %v256, %v252
    %v483 = vpack.c.bf16 %v257, %v253
    %v484 = vpack.c.bf16 %v258, %v254
    %v485 = vpack.c.bf16 %v259, %v255
    %v486 = vpack.c.bf16 %v297, %v293
    %v487 = vpack.c.bf16 %v298, %v294
    %v488 = vpack.c.bf16 %v299, %v295
    %v489 = vpack.c.bf16 %v300, %v296
    %v490 = vpack.c.bf16 %v330, %v326
    %v491 = vpack.c.bf16 %v331, %v327
    %v492 = vpack.c.bf16 %v332, %v328
    %v493 = vpack.c.bf16 %v333, %v329
    %v494 = vpack.c.bf16 %v157, %v153
    %v495 = vpack.c.bf16 %v158, %v154
    %v496 = vpack.c.bf16 %v159, %v155
    %v497 = vpack.c.bf16 %v160, %v156
    %v498 = vpack.c.bf16 %v363, %v359
    %v499 = vpack.c.bf16 %v364, %v360
    %v500 = vpack.c.bf16 %v365, %v361
    %v501 = vpack.c.bf16 %v366, %v362
    %v502 = vpack.c.bf16 %v404, %v400
    %v503 = vpack.c.bf16 %v405, %v401
    %v504 = vpack.c.bf16 %v406, %v402
    %v505 = vpack.c.bf16 %v407, %v403
    %v506 = vpack.c.bf16 %v437, %v433
    %v507 = vpack.c.bf16 %v438, %v434
    %v508 = vpack.c.bf16 %v439, %v435
    %v509 = vpack.c.bf16 %v440, %v436
    %v510 = vpack.c.bf16 %v474, %v470
    %v511 = vpack.c.bf16 %v475, %v471
    %v512 = vpack.c.bf16 %v476, %v472
    %v513 = vpack.c.bf16 %v477, %v473
    %515 = vset.pattern.permute.xlu0 0
    %516 = vperm.xlu0 %515, %v162
    %v517 = vpop.permute.xlu0 %516
    %v520 = vunpack.c.l.b16 %v161
    %v521 = vunpack.c.h.b16 %v161
    %v522 = vpack.c.b16 %v520, %v520
    %v523 = vpack.c.b16 %v521, %v521
    %vm525 = vcmask 130048
    %v527 = vsel %vm525, %v523, 0
    %529 = vmatprep.subr.bf16.mxu0 %v479
    %530 = vmatpush1.bf16.msra.mxu0 %v478
    %531 = vmatprep.subr.bf16.mxu0 %v483
    %532 = vmatpush1.bf16.msra.mxu0 %v482
    %533 = vmatprep.subr.bf16.mxu0 %v487
    %534 = vmatpush1.bf16.msra.mxu0 %v486
    %535 = vmatprep.subr.bf16.mxu0 %v491
    %536 = vmatpush1.bf16.msra.mxu0 %v490
    %537 = vmatprep.subr.bf16.mxu0 %v495
    %538 = vmatpush1.bf16.msra.mxu0 %v494
    %539 = vmatprep.subr.bf16.mxu0 %v499
    %540 = vmatpush1.bf16.msra.mxu0 %v498
    %541 = vmatprep.subr.bf16.mxu0 %v503
    %542 = vmatpush1.bf16.msra.mxu0 %v502
    %543 = vmatprep.subr.bf16.mxu0 %v507
    %544 = vmatpush1.bf16.msra.mxu0 %v506
    %545 = vmatprep.subr.bf16.mxu0 %v511
    %546 = vmatpush1.bf16.msra.mxu0 %v510
    %547 = vmatprep.subr.bf16.mxu0 0
    %548 = vmatpush1.bf16.msra.mxu0 0
    %549 = vmatprep.subr.bf16.mxu0 0
    %550 = vmatpush1.bf16.msra.mxu0 0
    %551 = vmatprep.subr.bf16.mxu0 0
    %552 = vmatpush1.bf16.msra.mxu0 0
    %553 = vmatprep.subr.bf16.mxu0 0
    %554 = vmatpush1.bf16.msra.mxu0 0
    %555 = vmatprep.subr.bf16.mxu0 0
    %556 = vmatpush1.bf16.msra.mxu0 0
    %557 = vmatprep.subr.bf16.mxu0 0
    %558 = vmatpush1.bf16.msra.mxu0 0
    %559 = vmatprep.subr.bf16.mxu0 0
    %560 = vmatpush1.bf16.msra.mxu0 0
    %561 = vmatprep.mubr.bf16.mxu0 %v527
    %562 = vmatmul.mubr.bf16.gmra.mrb[0].mxu0 %v522
    %v563 = vpop.f32.mrb[0].mxu0
    %v564 = vadd.f32 %v517, %v563
    %v565 = vpop.f32.mrb[0].mxu0
    %v566 = vadd.f32 %v517, %v565
    %v567 = vpop.f32.mrb[0].mxu0
    %v568 = vpop.f32.mrb[0].mxu0
    %569 = vdwg.mxu0
    %570 = vmatprep.subr.bf16.mxu0 %v481
    %571 = vmatpush1.bf16.msra.mxu0 %v480
    %572 = vmatprep.subr.bf16.mxu0 %v485
    %573 = vmatpush1.bf16.msra.mxu0 %v484
    %574 = vmatprep.subr.bf16.mxu0 %v489
    %575 = vmatpush1.bf16.msra.mxu0 %v488
    %576 = vmatprep.subr.bf16.mxu0 %v493
    %577 = vmatpush1.bf16.msra.mxu0 %v492
    %578 = vmatprep.subr.bf16.mxu0 %v497
    %579 = vmatpush1.bf16.msra.mxu0 %v496
    %580 = vmatprep.subr.bf16.mxu0 %v501
    %581 = vmatpush1.bf16.msra.mxu0 %v500
    %582 = vmatprep.subr.bf16.mxu0 %v505
    %583 = vmatpush1.bf16.msra.mxu0 %v504
    %584 = vmatprep.subr.bf16.mxu0 %v509
    %585 = vmatpush1.bf16.msra.mxu0 %v508
    %586 = vmatprep.subr.bf16.mxu0 %v513
    %587 = vmatpush1.bf16.msra.mxu0 %v512
    %588 = vmatprep.subr.bf16.mxu0 0
    %589 = vmatpush1.bf16.msra.mxu0 0
    %590 = vmatprep.subr.bf16.mxu0 0
    %591 = vmatpush1.bf16.msra.mxu0 0
    %592 = vmatprep.subr.bf16.mxu0 0
    %593 = vmatpush1.bf16.msra.mxu0 0
    %594 = vmatprep.subr.bf16.mxu0 0
    %595 = vmatpush1.bf16.msra.mxu0 0
    %596 = vmatprep.subr.bf16.mxu0 0
    %597 = vmatpush1.bf16.msra.mxu0 0
    %598 = vmatprep.subr.bf16.mxu0 0
    %599 = vmatpush1.bf16.msra.mxu0 0
    %600 = vmatprep.subr.bf16.mxu0 0
    %601 = vmatpush1.bf16.msra.mxu0 0
    %602 = vmatprep.mubr.bf16.mxu0 %v527
    %603 = vmatmul.mubr.bf16.gmra.mrb[0].mxu0 %v522
    %v604 = vpop.f32.mrb[0].mxu0
    %v605 = vadd.f32 %v517, %v604
    %v606 = vpop.f32.mrb[0].mxu0
    %v607 = vadd.f32 %v517, %v606
    %v608 = vpop.f32.mrb[0].mxu0
    %v609 = vpop.f32.mrb[0].mxu0
    %610 = vdwg.mxu0
    %v611 = vadd.f32 %v564, %v566
    %v612 = vadd.f32 %v611, %v605
    %v613 = vadd.f32 %v612, %v607
    %614 = vadd.xlane.f32.xlu0 %v613
    %v615 = vpop.xlane.xlu0 %614
    %v616 = vmul.f32 %v615, 0.001953125
    %v617 = vsub.f32 %v564, %v616
    %v618 = vsub.f32 %v566, %v616
    %v619 = vsub.f32 %v605, %v616
    %v620 = vsub.f32 %v607, %v616
    %v621 = vmul.f32 %v617, %v617
    %v622 = vmul.f32 %v618, %v618
    %v623 = vmul.f32 %v619, %v619
    %v624 = vmul.f32 %v620, %v620
    %v625 = vadd.f32 %v621, %v622
    %v626 = vadd.f32 %v625, %v623
    %v627 = vadd.f32 %v626, %v624
    %628 = vadd.xlane.f32.xlu0 %v627
    %v629 = vpop.xlane.xlu0 %628
    %v630 = vmul.f32 %v629, 0.001953125
    %v631 = vadd.f32 %v630, 1e-05
    %v632 = vrsqrt.pop %v631
    %v633 = vmul.f32 %v163, %v632
    %635 = vset.pattern.permute.xlu0 0
    %636 = vperm.xlu0 %635, %v633
    %v637 = vpop.permute.xlu0 %636
    %v639 = vmul.f32 %v617, %v637
    %v640 = vmul.f32 %v618, %v637
    %v641 = vmul.f32 %v619, %v637
    %v642 = vmul.f32 %v620, %v637
    %644 = vset.pattern.permute.xlu0 0
    %645 = vperm.xlu0 %644, %v164
    %v646 = vpop.permute.xlu0 %645
    %v648 = vadd.f32 %v639, %v646
    %v649 = vadd.f32 %v640, %v646
    %v650 = vadd.f32 %v641, %v646
    %v651 = vadd.f32 %v642, %v646
    %v652 = vmax.f32 %v648, 0.0
    %v653 = vmax.f32 %v649, 0.0
    %v654 = vmax.f32 %v650, 0.0
    %v655 = vmax.f32 %v651, 0.0
    %v656 = vld [vmem:[#allocation13] sm:$0xf]
    %v657 = vld [vmem:[#allocation14] sm:$0xff]
    %v658 = vld [vmem:[#allocation16] sm:$0xff]
    %v659 = vld [vmem:[#allocation17] sm:$0xff]
    %660 = vrot.lane.b32.xlu0 %v652, 17
    %v661 = vpop.permute.xlu0 %660
    %662 = vrot.lane.b32.xlu0 %v653, 17
    %v663 = vpop.permute.xlu0 %662
    %664 = vrot.lane.b32.xlu0 %v654, 17
    %v665 = vpop.permute.xlu0 %664
    %666 = vrot.lane.b32.xlu0 %v655, 17
    %v667 = vpop.permute.xlu0 %666
    %v668 = vsel %vm198, %v665, %v667
    %v669 = vsel %vm198, %v663, %v665
    %v670 = vsel %vm198, %v661, %v663
    %v671 = vsel %vm198, %v667, %v661
    %v672 = vsel %vm215, %v671, 0.0
    %v673 = vsel %vm216, %v670, 0.0
    %v674 = vsel %vm217, %v669, 0.0
    %v675 = vsel %vm218, %v668, 0.0
    %676 = vrot.lane.b32.xlu0 %v652, 16
    %v677 = vpop.permute.xlu0 %676
    %678 = vrot.lane.b32.xlu0 %v653, 16
    %v679 = vpop.permute.xlu0 %678
    %680 = vrot.lane.b32.xlu0 %v654, 16
    %v681 = vpop.permute.xlu0 %680
    %682 = vrot.lane.b32.xlu0 %v655, 16
    %v683 = vpop.permute.xlu0 %682
    %v684 = vsel %vm243, %v681, %v683
    %v685 = vsel %vm243, %v679, %v681
    %v686 = vsel %vm243, %v677, %v679
    %v687 = vsel %vm243, %v683, %v677
    %v688 = vsel %vm207, %v687, 0.0
    %v689 = vsel %vm208, %v686, 0.0
    %v690 = vsel %vm209, %v685, 0.0
    %v691 = vsel %vm210, %v684, 0.0
    %692 = vrot.lane.b32.xlu0 %v652, 15
    %v693 = vpop.permute.xlu0 %692
    %694 = vrot.lane.b32.xlu0 %v653, 15
    %v695 = vpop.permute.xlu0 %694
    %696 = vrot.lane.b32.xlu0 %v654, 15
    %v697 = vpop.permute.xlu0 %696
    %698 = vrot.lane.b32.xlu0 %v655, 15
    %v699 = vpop.permute.xlu0 %698
    %v700 = vsel %vm276, %v697, %v699
    %v701 = vsel %vm276, %v695, %v697
    %v702 = vsel %vm276, %v693, %v695
    %v703 = vsel %vm276, %v699, %v693
    %v704 = vsel %vm289, %v703, 0.0
    %v705 = vsel %vm290, %v702, 0.0
    %v706 = vsel %vm291, %v701, 0.0
    %v707 = vsel %vm292, %v700, 0.0
    %708 = vrot.lane.b32.xlu0 %v652, 1
    %v709 = vpop.permute.xlu0 %708
    %710 = vrot.lane.b32.xlu0 %v653, 1
    %v711 = vpop.permute.xlu0 %710
    %712 = vrot.lane.b32.xlu0 %v654, 1
    %v713 = vpop.permute.xlu0 %712
    %714 = vrot.lane.b32.xlu0 %v655, 1
    %v715 = vpop.permute.xlu0 %714
    %v716 = vsel %vm317, %v713, %v715
    %v717 = vsel %vm317, %v711, %v713
    %v718 = vsel %vm317, %v709, %v711
    %v719 = vsel %vm317, %v715, %v709
    %v720 = vsel %vm211, %v719, 0.0
    %v721 = vsel %vm212, %v718, 0.0
    %v722 = vsel %vm213, %v717, 0.0
    %v723 = vsel %vm214, %v716, 0.0
    %724 = vrot.lane.b32.xlu0 %v652, 127
    %v725 = vpop.permute.xlu0 %724
    %726 = vrot.lane.b32.xlu0 %v653, 127
    %v727 = vpop.permute.xlu0 %726
    %728 = vrot.lane.b32.xlu0 %v654, 127
    %v729 = vpop.permute.xlu0 %728
    %730 = vrot.lane.b32.xlu0 %v655, 127
    %v731 = vpop.permute.xlu0 %730
    %v732 = vsel %vm350, %v729, %v731
    %v733 = vsel %vm350, %v727, %v729
    %v734 = vsel %vm350, %v725, %v727
    %v735 = vsel %vm350, %v731, %v725
    %v736 = vsel %vm285, %v734, 0.0
    %v737 = vsel %vm286, %v733, 0.0
    %v738 = vsel %vm287, %v732, 0.0
    %v739 = vsel %vm288, %v735, 0.0
    %740 = vrot.lane.b32.xlu0 %v652, 113
    %v741 = vpop.permute.xlu0 %740
    %742 = vrot.lane.b32.xlu0 %v653, 113
    %v743 = vpop.permute.xlu0 %742
    %744 = vrot.lane.b32.xlu0 %v654, 113
    %v745 = vpop.permute.xlu0 %744
    %746 = vrot.lane.b32.xlu0 %v655, 113
    %v747 = vpop.permute.xlu0 %746
    %v748 = vsel %vm383, %v745, %v747
    %v749 = vsel %vm383, %v743, %v745
    %v750 = vsel %vm383, %v741, %v743
    %v751 = vsel %vm383, %v747, %v741
    %v752 = vsel %vm396, %v750, 0.0
    %v753 = vsel %vm397, %v749, 0.0
    %v754 = vsel %vm398, %v748, 0.0
    %v755 = vsel %vm399, %v751, 0.0
    %756 = vrot.lane.b32.xlu0 %v652, 112
    %v757 = vpop.permute.xlu0 %756
    %758 = vrot.lane.b32.xlu0 %v653, 112
    %v759 = vpop.permute.xlu0 %758
    %760 = vrot.lane.b32.xlu0 %v654, 112
    %v761 = vpop.permute.xlu0 %760
    %762 = vrot.lane.b32.xlu0 %v655, 112
    %v763 = vpop.permute.xlu0 %762
    %v764 = vsel %vm424, %v761, %v763
    %v765 = vsel %vm424, %v759, %v761
    %v766 = vsel %vm424, %v757, %v759
    %v767 = vsel %vm424, %v763, %v757
    %v768 = vsel %vm392, %v766, 0.0
    %v769 = vsel %vm393, %v765, 0.0
    %v770 = vsel %vm394, %v764, 0.0
    %v771 = vsel %vm395, %v767, 0.0
    %772 = vrot.lane.b32.xlu0 %v652, 111
    %v773 = vpop.permute.xlu0 %772
    %774 = vrot.lane.b32.xlu0 %v653, 111
    %v775 = vpop.permute.xlu0 %774
    %776 = vrot.lane.b32.xlu0 %v654, 111
    %v777 = vpop.permute.xlu0 %776
    %778 = vrot.lane.b32.xlu0 %v655, 111
    %v779 = vpop.permute.xlu0 %778
    %v780 = vsel %vm457, %v777, %v779
    %v781 = vsel %vm457, %v775, %v777
    %v782 = vsel %vm457, %v773, %v775
    %v783 = vsel %vm457, %v779, %v773
    %v784 = vsel %vm466, %v782, 0.0
    %v785 = vsel %vm467, %v781, 0.0
    %v786 = vsel %vm468, %v780, 0.0
    %v787 = vsel %vm469, %v783, 0.0
    %v788 = vpack.c.bf16 %v688, %v672
    %v789 = vpack.c.bf16 %v689, %v673
    %v790 = vpack.c.bf16 %v690, %v674
    %v791 = vpack.c.bf16 %v691, %v675
    %v792 = vpack.c.bf16 %v720, %v704
    %v793 = vpack.c.bf16 %v721, %v705
    %v794 = vpack.c.bf16 %v722, %v706
    %v795 = vpack.c.bf16 %v723, %v707
    %v796 = vpack.c.bf16 %v736, %v652
    %v797 = vpack.c.bf16 %v737, %v653
    %v798 = vpack.c.bf16 %v738, %v654
    %v799 = vpack.c.bf16 %v739, %v655
    %v800 = vpack.c.bf16 %v768, %v752
    %v801 = vpack.c.bf16 %v769, %v753
    %v802 = vpack.c.bf16 %v770, %v754
    %v803 = vpack.c.bf16 %v771, %v755
    %v804 = vpack.c.bf16 %v784, %v784
    %v805 = vpack.c.bf16 %v785, %v785
    %v806 = vpack.c.bf16 %v786, %v786
    %v807 = vpack.c.bf16 %v787, %v787
    %809 = vset.pattern.permute.xlu0 0
    %810 = vperm.xlu0 %809, %v657
    %v811 = vpop.permute.xlu0 %810
    %vm813 = vcmask 588800
    %v815 = vsel %vm813, %v656, 0
    %vm817 = vcmask 1043456
    %v819 = vsel %vm817, %v804, 0
    %v822 = vsel %vm817, %v805, 0
    %v825 = vsel %vm817, %v806, 0
    %v828 = vsel %vm817, %v807, 0
    %830 = vmatprep.subr.bf16.mxu0 %v789
    %831 = vmatpush1.bf16.msra.mxu0 %v788
    %832 = vmatprep.subr.bf16.mxu0 %v793
    %833 = vmatpush1.bf16.msra.mxu0 %v792
    %834 = vmatprep.subr.bf16.mxu0 %v797
    %835 = vmatpush1.bf16.msra.mxu0 %v796
    %836 = vmatprep.subr.bf16.mxu0 %v801
    %837 = vmatpush1.bf16.msra.mxu0 %v800
    %838 = vmatprep.subr.bf16.mxu0 %v822
    %839 = vmatpush1.bf16.msra.mxu0 %v819
    %840 = vmatprep.subr.bf16.mxu0 0
    %841 = vmatpush1.bf16.msra.mxu0 0
    %842 = vmatprep.subr.bf16.mxu0 0
    %843 = vmatpush1.bf16.msra.mxu0 0
    %844 = vmatprep.subr.bf16.mxu0 0
    %845 = vmatpush1.bf16.msra.mxu0 0
    %846 = vmatprep.subr.bf16.mxu0 0
    %847 = vmatpush1.bf16.msra.mxu0 0
    %848 = vmatprep.subr.bf16.mxu0 0
    %849 = vmatpush1.bf16.msra.mxu0 0
    %850 = vmatprep.subr.bf16.mxu0 0
    %851 = vmatpush1.bf16.msra.mxu0 0
    %852 = vmatprep.subr.bf16.mxu0 0
    %853 = vmatpush1.bf16.msra.mxu0 0
    %854 = vmatprep.subr.bf16.mxu0 0
    %855 = vmatpush1.bf16.msra.mxu0 0
    %856 = vmatprep.subr.bf16.mxu0 0
    %857 = vmatpush1.bf16.msra.mxu0 0
    %858 = vmatprep.subr.bf16.mxu0 0
    %859 = vmatpush1.bf16.msra.mxu0 0
    %860 = vmatprep.subr.bf16.mxu0 0
    %861 = vmatpush1.bf16.msra.mxu0 0
    %862 = vmatprep.mubr.bf16.mxu0 0
    %863 = vmatmul.mubr.bf16.gmra.mrb[0].mxu0 %v815
    %v864 = vpop.f32.mrb[0].mxu0
    %v865 = vadd.f32 %v811, %v864
    %v866 = vpop.f32.mrb[0].mxu0
    %v867 = vadd.f32 %v811, %v866
    %v868 = vpop.f32.mrb[0].mxu0
    %v869 = vpop.f32.mrb[0].mxu0
    %870 = vdwg.mxu0
    %871 = vmatprep.subr.bf16.mxu0 %v791
    %872 = vmatpush1.bf16.msra.mxu0 %v790
    %873 = vmatprep.subr.bf16.mxu0 %v795
    %874 = vmatpush1.bf16.msra.mxu0 %v794
    %875 = vmatprep.subr.bf16.mxu0 %v799
    %876 = vmatpush1.bf16.msra.mxu0 %v798
    %877 = vmatprep.subr.bf16.mxu0 %v803
    %878 = vmatpush1.bf16.msra.mxu0 %v802
    %879 = vmatprep.subr.bf16.mxu0 %v828
    %880 = vmatpush1.bf16.msra.mxu0 %v825
    %881 = vmatprep.subr.bf16.mxu0 0
    %882 = vmatpush1.bf16.msra.mxu0 0
    %883 = vmatprep.subr.bf16.mxu0 0
    %884 = vmatpush1.bf16.msra.mxu0 0
    %885 = vmatprep.subr.bf16.mxu0 0
    %886 = vmatpush1.bf16.msra.mxu0 0
    %887 = vmatprep.subr.bf16.mxu0 0
    %888 = vmatpush1.bf16.msra.mxu0 0
    %889 = vmatprep.subr.bf16.mxu0 0
    %890 = vmatpush1.bf16.msra.mxu0 0
    %891 = vmatprep.subr.bf16.mxu0 0
    %892 = vmatpush1.bf16.msra.mxu0 0
    %893 = vmatprep.subr.bf16.mxu0 0
    %894 = vmatpush1.bf16.msra.mxu0 0
    %895 = vmatprep.subr.bf16.mxu0 0
    %896 = vmatpush1.bf16.msra.mxu0 0
    %897 = vmatprep.subr.bf16.mxu0 0
    %898 = vmatpush1.bf16.msra.mxu0 0
    %899 = vmatprep.subr.bf16.mxu0 0
    %900 = vmatpush1.bf16.msra.mxu0 0
    %901 = vmatprep.subr.bf16.mxu0 0
    %902 = vmatpush1.bf16.msra.mxu0 0
    %903 = vmatprep.mubr.bf16.mxu0 0
    %904 = vmatmul.mubr.bf16.gmra.mrb[0].mxu0 %v815
    %v905 = vpop.f32.mrb[0].mxu0
    %v906 = vadd.f32 %v811, %v905
    %v907 = vpop.f32.mrb[0].mxu0
    %v908 = vadd.f32 %v811, %v907
    %v909 = vpop.f32.mrb[0].mxu0
    %v910 = vpop.f32.mrb[0].mxu0
    %911 = vdwg.mxu0
    %v912 = vadd.f32 %v865, %v867
    %v913 = vadd.f32 %v912, %v906
    %v914 = vadd.f32 %v913, %v908
    %915 = vadd.xlane.f32.xlu0 %v914
    %v916 = vpop.xlane.xlu0 %915
    %v917 = vmul.f32 %v916, 0.001953125
    %v918 = vsub.f32 %v865, %v917
    %v919 = vsub.f32 %v867, %v917
    %v920 = vsub.f32 %v906, %v917
    %v921 = vsub.f32 %v908, %v917
    %v922 = vmul.f32 %v918, %v918
    %v923 = vmul.f32 %v919, %v919
    %v924 = vmul.f32 %v920, %v920
    %v925 = vmul.f32 %v921, %v921
    %v926 = vadd.f32 %v922, %v923
    %v927 = vadd.f32 %v926, %v924
    %v928 = vadd.f32 %v927, %v925
    %929 = vadd.xlane.f32.xlu0 %v928
    %v930 = vpop.xlane.xlu0 %929
    %v931 = vmul.f32 %v930, 0.001953125
    %v932 = vadd.f32 %v931, 1e-05
    %v933 = vrsqrt.pop %v932
    %v934 = vmul.f32 %v658, %v933
    %936 = vset.pattern.permute.xlu0 0
    %937 = vperm.xlu0 %936, %v934
    %v938 = vpop.permute.xlu0 %937
    %v940 = vmul.f32 %v918, %v938
    %v941 = vmul.f32 %v919, %v938
    %v942 = vmul.f32 %v920, %v938
    %v943 = vmul.f32 %v921, %v938
    %945 = vset.pattern.permute.xlu0 0
    %946 = vperm.xlu0 %945, %v659
    %v947 = vpop.permute.xlu0 %946
    %v949 = vadd.f32 %v940, %v947
    %v950 = vadd.f32 %v941, %v947
    %v951 = vadd.f32 %v942, %v947
    %v952 = vadd.f32 %v943, %v947
    %v953 = vmax.f32 %v949, 0.0
    %v954 = vmax.f32 %v950, 0.0
    %v955 = vmax.f32 %v951, 0.0
    %v956 = vmax.f32 %v952, 0.0
    %957 = vst [vmem:[#allocation19] sm:$0xff] %v953
    %958 = vst [vmem:[#allocation19 + $0x8] sm:$0xff] %v954
    %959 = vst [vmem:[#allocation19 + $0x10] sm:$0xff] %v955
    %960 = vst [vmem:[#allocation19 + $0x18] sm:$0xff] %v956
    // Predicated region
    $region82: #{unet_apply.10} parent=1 // pred_check
      _
    $region83: #{unet_apply.10} parent=1 // pred_check_branch
      %962 = sbr.rel (0) target = $region85
    $region84: #{unet_apply.10} parent=1 // pred_region
      %s964 = ssub.s32 512, 512
      %965 = vsyncadd [#allocation4], %s964
      %s967 = sshll.u32 [#allocation19], 4
      %s968 = int_to_ptr.vmem [resolvable:$true] %s967
      %970 = dma.vmem_to_hbm [thread:$0]  %s968, 512, %s10, [#allocation4]
    $region85: #{unet_apply.10} parent=1 // pred_fallthru
      _
    // Predicated region
    $region86: #{unet_apply.10} parent=1 // pred_check
      _
    $region87: #{unet_apply.10} parent=1 // pred_check_branch
      %972 = sbr.rel (0) target = $region89
    $region88: #{unet_apply.10} parent=1 // pred_region
      %973 = dma.done [#allocation4], 512
    $region89: #{unet_apply.10} parent=1 // pred_fallthru
      _
    %974 = vsyncpa [#allocation3], 1
    %975 = vsyncpa [#allocation6], 1
    %976 = vsyncpa [#allocation9], 1
    %977 = vsyncpa [#allocation12], 1
    %978 = vsyncpa [#allocation15], 1
    %979 = vsyncpa [#allocation18], 1
    %980 = vsyncpa [#allocation4], 1

</llo_original>
